<compile_context>
chip_gen: v6e
topology: v6e:2x2x1
jax: 0.10.0
libtpu: 0.0.40
codegen_flags: <defaults>
</compile_context>

<pallas_src>
import numpy as np
import jax
import jax.numpy as jnp
from jax.experimental import pallas as pl
from jax.experimental.pallas import tpu as pltpu

N_CLASSES = 13
ACTUAL_DIMS = [256, 512, 1024, 300, 100, N_CLASSES]   # PyTorch layer widths
PADDED_DIMS = [256, 512, 1024, 384, 128, 128]          # lane-padded widths
N_LAYERS = 5
BIAS_TOTAL = sum(PADDED_DIMS[1:])                      # 2176 (= 17 * 128)
W4_ROWS = PADDED_DIMS[3]                               # 384 rows of the packed w45
W5_ROWS = PADDED_DIMS[4]                               # 128 rows of the packed w45
MAX_BATCH_TILE = 256


def _round_up(v, m):
    return (v + m - 1) // m * m


def mlp_kernel(x_ref, b_ref, w1_ref, w2_ref, w3_ref, w45_ref, o_ref):
    """One batch tile through the whole 5-layer MLP (Dropout = identity, eval mode)."""
    # Delay each weight load until right before its dot (keeps vreg pressure low;
    # the weights themselves already sit in VMEM courtesy of the BlockSpecs).
    weight_loads = (
        lambda: w1_ref[...],                              # [256, 512]  bf16
        lambda: w2_ref[...],                              # [512, 1024] bf16
        lambda: w3_ref[...],                              # [1024, 384] bf16
        lambda: w45_ref[pl.ds(0, W4_ROWS), :],            # [384, 128]  bf16
        lambda: w45_ref[pl.ds(W4_ROWS, W5_ROWS), :],      # [128, 128]  bf16
    )

    h = x_ref[...]                                        # [TB, 256] bf16
    off = 0
    acc = None
    for i, load_w in enumerate(weight_loads):
        out_dim = PADDED_DIMS[i + 1]
        acc = jnp.dot(h, load_w(), preferred_element_type=jnp.float32)
        acc = acc + b_ref[:, off:off + out_dim]           # [1, out] broadcast, f32
        off += out_dim
        if i < N_LAYERS - 1:
            # ReLU fused with the bf16 down-cast; padded lanes are exactly 0.
            h = jnp.maximum(acc, 0.0).astype(jnp.bfloat16)
    o_ref[...] = acc                                      # [TB, 128] f32 (lanes 13: are 0)


def mlp_forward(x, weights, bias_pack):
    """x: [B, 256] float; weights: [w1, w2, w3, w45] zero-padded bf16 [in_pad, out_pad]
    (w45 = rows of w4 stacked over w5); bias_pack: [1, 2176] f32 (padded lanes zero)."""
    batch = x.shape[0]
    tb = min(MAX_BATCH_TILE, _round_up(batch, 16))
    b_pad = _round_up(batch, tb)
    grid = (b_pad // tb,)

    x_bf = x.astype(jnp.bfloat16)
    if b_pad != batch:
        x_bf = jnp.pad(x_bf, ((0, b_pad - batch), (0, 0)))

    w1, w2, w3, w45 = weights

    def const_spec(shape):
        return pl.BlockSpec(shape, lambda i: (0, 0))

    flops = 2 * b_pad * sum(PADDED_DIMS[j] * PADDED_DIMS[j + 1] for j in range(N_LAYERS))
    bytes_accessed = (
        x_bf.size * 2
        + sum(int(w.size) for w in weights) * 2
        + BIAS_TOTAL * 4
        + b_pad * PADDED_DIMS[-1] * 4
    )

    out_padded = pl.pallas_call(
        mlp_kernel,
        out_shape=jax.ShapeDtypeStruct((b_pad, PADDED_DIMS[-1]), jnp.float32),
        grid=grid,
        in_specs=[
            pl.BlockSpec((tb, ACTUAL_DIMS[0]), lambda i: (i, 0)),   # x tile
            const_spec((1, BIAS_TOTAL)),                            # packed biases
            const_spec(w1.shape),                                   # resident weights
            const_spec(w2.shape),
            const_spec(w3.shape),
            const_spec(w45.shape),
        ],
        out_specs=pl.BlockSpec((tb, PADDED_DIMS[-1]), lambda i: (i, 0)),
        compiler_params=pltpu.CompilerParams(dimension_semantics=("parallel",)),
        cost_estimate=pl.CostEstimate(flops=flops, transcendentals=0,
                                      bytes_accessed=bytes_accessed),
    )(x_bf, bias_pack, w1, w2, w3, w45)
    return out_padded[:batch, :N_CLASSES]


def init_params(key):
    """Deterministic init mirroring nn.Linear's U(-1/sqrt(fan_in), +..) range.

    Weights are zero-padded bf16 [in_pad, out_pad] (transposed vs PyTorch); w4 and w5
    are stacked row-wise into one [512, 128] buffer.  Biases are packed (zero-padded)
    into a single f32 [1, BIAS_TOTAL] buffer.  Zero padding is what keeps the padded
    lanes inert through ReLU and the following layers.
    """
    padded = []
    bias_pack = np.zeros((1, BIAS_TOTAL), np.float32)
    off = 0
    for i in range(N_LAYERS):
        fan_in, fan_out = ACTUAL_DIMS[i], ACTUAL_DIMS[i + 1]
        in_pad, out_pad = PADDED_DIMS[i], PADDED_DIMS[i + 1]
        kw, kb = jax.random.split(jax.random.fold_in(key, i))
        bound = 1.0 / (fan_in ** 0.5)
        w = jax.random.uniform(kw, (fan_in, fan_out), jnp.float32, -bound, bound)
        b = jax.random.uniform(kb, (fan_out,), jnp.float32, -bound, bound)
        wp = jnp.zeros((in_pad, out_pad), jnp.float32).at[:fan_in, :fan_out].set(w)
        padded.append(wp.astype(jnp.bfloat16))
        bias_pack[0, off:off + fan_out] = np.asarray(b)
        off += out_pad
    w45 = jnp.concatenate([padded[3], padded[4]], axis=0)   # [512, 128] bf16
    weights = [padded[0], padded[1], padded[2], w45]
    return weights, jnp.asarray(bias_pack)


def reference_forward(x, weights, bias_pack):
    """Numpy f32 reference applying the same bf16 weight/activation casts as the kernel."""
    w1, w2, w3, w45 = weights
    ws = [w1, w2, w3, w45[:W4_ROWS], w45[W4_ROWS:]]
    bias = np.asarray(bias_pack)
    h = np.asarray(jnp.asarray(x, jnp.bfloat16).astype(jnp.float32))
    off = 0
    for i, w in enumerate(ws):
        out_dim = PADDED_DIMS[i + 1]
        w_f32 = np.asarray(jnp.asarray(w, jnp.float32))
        h = h @ w_f32 + bias[:, off:off + out_dim]
        off += out_dim
        if i < N_LAYERS - 1:
            h = np.maximum(h, 0.0)
            h = np.asarray(jnp.asarray(h, jnp.bfloat16).astype(jnp.float32))
    return h[:, :N_CLASSES]


if __name__ == "__main__":
    key = jax.random.PRNGKey(0)
    kx, kp = jax.random.split(key)

    batch = 8
    x = jax.random.normal(kx, (batch, ACTUAL_DIMS[0]), jnp.float32)
    weights, bias_pack = init_params(kp)

    out = mlp_forward(x, weights, bias_pack)
    out = jax.block_until_ready(out)

    ref = reference_forward(x, weights, bias_pack)
    assert out.shape == (batch, N_CLASSES), out.shape
    max_err = float(np.max(np.abs(np.asarray(out) - ref)))
    assert max_err < 2e-3, max_err

    print("KERNEL_OK")
</pallas_src>

<mosaic_0001>
module attributes {stable_mosaic.version = 11 : i64} {
  func.func @mlp_kernel(%arg0: i32, %arg1: memref<16x256xbf16, #tpu.memory_space<vmem>>, %arg2: memref<1x2176xf32, #tpu.memory_space<vmem>>, %arg3: memref<256x512xbf16, #tpu.memory_space<vmem>>, %arg4: memref<512x1024xbf16, #tpu.memory_space<vmem>>, %arg5: memref<1024x384xbf16, #tpu.memory_space<vmem>>, %arg6: memref<512x128xbf16, #tpu.memory_space<vmem>>, %arg7: memref<16x128xf32, #tpu.memory_space<vmem>>) attributes {dimension_semantics = [#tpu.dimension_semantics<parallel>], iteration_bounds = array<i64: 1>, scalar_prefetch = 0 : i64, scratch_operands = 0 : i64, tpu.core_type = #tpu.core_type<tc>, window_params = [{transform_indices = @transform_0, window_bounds = array<i64: 16, 256>}, {pipeline_mode = #tpu.pipeline_mode<synchronous>, transform_indices = @transform_1, window_bounds = array<i64: 1, 2176>}, {pipeline_mode = #tpu.pipeline_mode<synchronous>, transform_indices = @transform_2, window_bounds = array<i64: 256, 512>}, {pipeline_mode = #tpu.pipeline_mode<synchronous>, transform_indices = @transform_3, window_bounds = array<i64: 512, 1024>}, {pipeline_mode = #tpu.pipeline_mode<synchronous>, transform_indices = @transform_4, window_bounds = array<i64: 1024, 384>}, {pipeline_mode = #tpu.pipeline_mode<synchronous>, transform_indices = @transform_5, window_bounds = array<i64: 512, 128>}, {transform_indices = @transform_6, window_bounds = array<i64: 16, 128>}]} {
    %c0 = arith.constant 0 : index
    %c0_0 = arith.constant 0 : index
    %0 = vector.load %arg1[%c0, %c0_0] : memref<16x256xbf16, #tpu.memory_space<vmem>>, vector<16x256xbf16>
    %c0_1 = arith.constant 0 : index
    %c0_2 = arith.constant 0 : index
    %1 = vector.load %arg3[%c0_1, %c0_2] : memref<256x512xbf16, #tpu.memory_space<vmem>>, vector<256x512xbf16>
    %cst = arith.constant dense<0.000000e+00> : vector<16x512xf32>
    %2 = tpu.matmul %0, %1, %cst {dimension_numbers = #tpu.dot_dimension_numbers<[1], [0], [0], [1], [0, 0, 1, 1], [], []>} : vector<16x256xbf16>, vector<256x512xbf16>, vector<16x512xf32> -> vector<16x512xf32>
    %c0_3 = arith.constant 0 : index
    %c0_4 = arith.constant 0 : index
    %3 = vector.load %arg2[%c0_3, %c0_4] : memref<1x2176xf32, #tpu.memory_space<vmem>>, vector<1x512xf32>
    %4 = vector.broadcast %3 : vector<1x512xf32> to vector<16x512xf32>
    %5 = arith.addf %2, %4 : vector<16x512xf32>
    %cst_5 = arith.constant 0.000000e+00 : f32
    %6 = vector.broadcast %cst_5 : f32 to vector<16x512xf32>
    %7 = arith.maximumf %5, %6 : vector<16x512xf32>
    %8 = arith.truncf %7 : vector<16x512xf32> to vector<16x512xbf16>
    %c0_6 = arith.constant 0 : index
    %c0_7 = arith.constant 0 : index
    %9 = vector.load %arg4[%c0_6, %c0_7] : memref<512x1024xbf16, #tpu.memory_space<vmem>>, vector<512x1024xbf16>
    %cst_8 = arith.constant dense<0.000000e+00> : vector<16x1024xf32>
    %10 = tpu.matmul %8, %9, %cst_8 {dimension_numbers = #tpu.dot_dimension_numbers<[1], [0], [0], [1], [0, 0, 1, 1], [], []>} : vector<16x512xbf16>, vector<512x1024xbf16>, vector<16x1024xf32> -> vector<16x1024xf32>
    %c0_9 = arith.constant 0 : index
    %c512 = arith.constant 512 : index
    %11 = vector.load %arg2[%c0_9, %c512] : memref<1x2176xf32, #tpu.memory_space<vmem>>, vector<1x1024xf32>
    %12 = vector.broadcast %11 : vector<1x1024xf32> to vector<16x1024xf32>
    %13 = arith.addf %10, %12 : vector<16x1024xf32>
    %cst_10 = arith.constant 0.000000e+00 : f32
    %14 = vector.broadcast %cst_10 : f32 to vector<16x1024xf32>
    %15 = arith.maximumf %13, %14 : vector<16x1024xf32>
    %16 = arith.truncf %15 : vector<16x1024xf32> to vector<16x1024xbf16>
    %c0_11 = arith.constant 0 : index
    %c0_12 = arith.constant 0 : index
    %17 = vector.load %arg5[%c0_11, %c0_12] : memref<1024x384xbf16, #tpu.memory_space<vmem>>, vector<1024x384xbf16>
    %cst_13 = arith.constant dense<0.000000e+00> : vector<16x384xf32>
    %18 = tpu.matmul %16, %17, %cst_13 {dimension_numbers = #tpu.dot_dimension_numbers<[1], [0], [0], [1], [0, 0, 1, 1], [], []>} : vector<16x1024xbf16>, vector<1024x384xbf16>, vector<16x384xf32> -> vector<16x384xf32>
    %c0_14 = arith.constant 0 : index
    %c1536 = arith.constant 1536 : index
    %19 = vector.load %arg2[%c0_14, %c1536] : memref<1x2176xf32, #tpu.memory_space<vmem>>, vector<1x384xf32>
    %20 = vector.broadcast %19 : vector<1x384xf32> to vector<16x384xf32>
    %21 = arith.addf %18, %20 : vector<16x384xf32>
    %cst_15 = arith.constant 0.000000e+00 : f32
    %22 = vector.broadcast %cst_15 : f32 to vector<16x384xf32>
    %23 = arith.maximumf %21, %22 : vector<16x384xf32>
    %24 = arith.truncf %23 : vector<16x384xf32> to vector<16x384xbf16>
    %c0_16 = arith.constant 0 : index
    %c0_17 = arith.constant 0 : index
    %25 = vector.load %arg6[%c0_16, %c0_17] : memref<512x128xbf16, #tpu.memory_space<vmem>>, vector<384x128xbf16>
    %cst_18 = arith.constant dense<0.000000e+00> : vector<16x128xf32>
    %26 = tpu.matmul %24, %25, %cst_18 {dimension_numbers = #tpu.dot_dimension_numbers<[1], [0], [0], [1], [0, 0, 1, 1], [], []>} : vector<16x384xbf16>, vector<384x128xbf16>, vector<16x128xf32> -> vector<16x128xf32>
    %c0_19 = arith.constant 0 : index
    %c1920 = arith.constant 1920 : index
    %27 = vector.load %arg2[%c0_19, %c1920] : memref<1x2176xf32, #tpu.memory_space<vmem>>, vector<1x128xf32>
    %28 = vector.broadcast %27 : vector<1x128xf32> to vector<16x128xf32>
    %29 = arith.addf %26, %28 : vector<16x128xf32>
    %cst_20 = arith.constant 0.000000e+00 : f32
    %30 = vector.broadcast %cst_20 : f32 to vector<16x128xf32>
    %31 = arith.maximumf %29, %30 : vector<16x128xf32>
    %32 = arith.truncf %31 : vector<16x128xf32> to vector<16x128xbf16>
    %c384 = arith.constant 384 : index
    %c0_21 = arith.constant 0 : index
    %33 = vector.load %arg6[%c384, %c0_21] : memref<512x128xbf16, #tpu.memory_space<vmem>>, vector<128x128xbf16>
    %cst_22 = arith.constant dense<0.000000e+00> : vector<16x128xf32>
    %34 = tpu.matmul %32, %33, %cst_22 {dimension_numbers = #tpu.dot_dimension_numbers<[1], [0], [0], [1], [0, 0, 1, 1], [], []>} : vector<16x128xbf16>, vector<128x128xbf16>, vector<16x128xf32> -> vector<16x128xf32>
    %c0_23 = arith.constant 0 : index
    %c2048 = arith.constant 2048 : index
    %35 = vector.load %arg2[%c0_23, %c2048] : memref<1x2176xf32, #tpu.memory_space<vmem>>, vector<1x128xf32>
    %36 = vector.broadcast %35 : vector<1x128xf32> to vector<16x128xf32>
    %37 = arith.addf %34, %36 : vector<16x128xf32>
    %c0_24 = arith.constant 0 : index
    %c0_25 = arith.constant 0 : index
    %38 = vector.load %arg7[%c0_24, %c0_25] : memref<16x128xf32, #tpu.memory_space<vmem>>, vector<16x128xf32>
    tpu.vector_store %arg7[%c0_24, %c0_25], %37 {strides = array<i32>} : memref<16x128xf32, #tpu.memory_space<vmem>>, vector<16x128xf32>,
    return
  }
  func.func @transform_0(%arg0: i32) -> (i32, i32) {
    %c0_i32 = arith.constant 0 : i32
    %c0_i32_0 = arith.constant 0 : i32
    return %arg0, %c0_i32 : i32, i32
  }
  func.func @transform_1(%arg0: i32) -> (i32, i32) {
    %c0_i32 = arith.constant 0 : i32
    %c0_i32_0 = arith.constant 0 : i32
    %c0_i32_1 = arith.constant 0 : i32
    return %c0_i32, %c0_i32_0 : i32, i32
  }
  func.func @transform_2(%arg0: i32) -> (i32, i32) {
    %c0_i32 = arith.constant 0 : i32
    %c0_i32_0 = arith.constant 0 : i32
    %c0_i32_1 = arith.constant 0 : i32
    return %c0_i32, %c0_i32_0 : i32, i32
  }
  func.func @transform_3(%arg0: i32) -> (i32, i32) {
    %c0_i32 = arith.constant 0 : i32
    %c0_i32_0 = arith.constant 0 : i32
    %c0_i32_1 = arith.constant 0 : i32
    return %c0_i32, %c0_i32_0 : i32, i32
  }
  func.func @transform_4(%arg0: i32) -> (i32, i32) {
    %c0_i32 = arith.constant 0 : i32
    %c0_i32_0 = arith.constant 0 : i32
    %c0_i32_1 = arith.constant 0 : i32
    return %c0_i32, %c0_i32_0 : i32, i32
  }
  func.func @transform_5(%arg0: i32) -> (i32, i32) {
    %c0_i32 = arith.constant 0 : i32
    %c0_i32_0 = arith.constant 0 : i32
    %c0_i32_1 = arith.constant 0 : i32
    return %c0_i32, %c0_i32_0 : i32, i32
  }
  func.func @transform_6(%arg0: i32) -> (i32, i32) {
    %c0_i32 = arith.constant 0 : i32
    %c0_i32_0 = arith.constant 0 : i32
    return %arg0, %c0_i32 : i32, i32
  }
}

</mosaic_0001>

<llo_original>
// kernel: tpu_custom_call.1
$region0: #{tpu_custom_call.1}
  #allocation0 [shape = 'u32[]', space=smem, size = 0x4, offset = 0x4, fixed_abs, tag = 'smem constant byte address 0x4 - core index']
  #allocation1 [shape = 'u32[144,128]{1,0:T(1,128)}', space=vmem, size = 0x12000, scoped, tag = 'internal scratch']
  %s0 = inlined_call_operand.hbm [shape: bf16[16,256], index: 0, kind: input, shape index: {}]
  %s1 = inlined_call_operand.hbm [shape: f32[1,2176], index: 1, kind: input, shape index: {}]
  %s2 = inlined_call_operand.hbm [shape: bf16[256,512], index: 2, kind: input, shape index: {}]
  %s3 = inlined_call_operand.hbm [shape: bf16[512,1024], index: 3, kind: input, shape index: {}]
  %s4 = inlined_call_operand.hbm [shape: bf16[1024,384], index: 4, kind: input, shape index: {}]
  %s5 = inlined_call_operand.hbm [shape: bf16[512,128], index: 5, kind: input, shape index: {}]
  %s6 = inlined_call_operand.hbm [shape: f32[16,128], index: 6, kind: output, shape index: {}]
  %s7 = sld [smem:[#allocation0]]
  $region58: #{tpu_custom_call.1} parent=0
    _
  %s9 = ssub.s32 1, %s7
  %s10 = scalar_select 0, %s9, %s7
  $region1: #{tpu_custom_call.1} parent=0
    #allocation2 [shape = 'u8[8192]{0}', space=vmem, size = 0x2000, scoped, tag = 'input window, operand 0, single buffered']
    #allocation3 [shape = 's32[1]{0}', space=sflag, size = 0x4, scoped, tag = 'scoped memory for tpu_custom_call.1']
    #allocation4 [shape = 's32[1]{0}', space=sflag, size = 0x4, scoped, tag = 'scoped memory for tpu_custom_call.1']
    #allocation5 [shape = 'u8[8704]{0}', space=vmem, size = 0x2400, scoped, tag = 'input window, operand 1, single buffered']
    #allocation6 [shape = 's32[1]{0}', space=sflag, size = 0x4, scoped, tag = 'scoped memory for tpu_custom_call.1']
    #allocation7 [shape = 'u8[262144]{0}', space=vmem, size = 0x40000, scoped, tag = 'input window, operand 2, single buffered']
    #allocation8 [shape = 'u8[1048576]{0}', space=vmem, size = 0x100000, scoped, tag = 'input window, operand 3, single buffered']
    #allocation9 [shape = 's32[1]{0}', space=sflag, size = 0x4, scoped, tag = 'scoped memory for tpu_custom_call.1']
    #allocation10 [shape = 'u8[786432]{0}', space=vmem, size = 0xc0000, scoped, tag = 'input window, operand 4, single buffered']
    #allocation11 [shape = 'u8[131072]{0}', space=vmem, size = 0x20000, scoped, tag = 'input window, operand 5, single buffered']
    #allocation12 [shape = 's32[1]{0}', space=sflag, size = 0x4, scoped, tag = 'scoped memory for tpu_custom_call.1']
    #allocation13 [shape = 'u8[8192]{0}', space=vmem, size = 0x2000, scoped, tag = 'output window, operand 0, single buffered']
    %11 = vsyncpa [#allocation3], 0
    %12 = vsyncpa [#allocation6], 0
    %13 = vsyncpa [#allocation9], 0
    %14 = vsyncpa [#allocation12], 0
    %15 = vsyncpa [#allocation4], 0
    // Predicated region
    $region2: #{tpu_custom_call.1} parent=1 // pred_check
      _
    $region3: #{tpu_custom_call.1} parent=1 // pred_check_branch
      %17 = sbr.rel (0) target = $region5
    $region4: #{tpu_custom_call.1} parent=1 // pred_region
      %s19 = ssub.s32 256, 256
      %20 = vsyncadd [#allocation3], %s19
      %s21 = sshll.u32 [#allocation2], 4
      %s22 = int_to_ptr.vmem [resolvable:$true] %s21
      %27 = dma.hbm_to_vmem [thread:$0]  %s0, 256, %s22, [#allocation3], 128, 128, 8
    $region5: #{tpu_custom_call.1} parent=1 // pred_fallthru
      _
    // Predicated region
    $region6: #{tpu_custom_call.1} parent=1 // pred_check
      _
    $region7: #{tpu_custom_call.1} parent=1 // pred_check_branch
      %29 = sbr.rel (0) target = $region9
    $region8: #{tpu_custom_call.1} parent=1 // pred_region
      %s31 = ssub.s32 272, 272
      %32 = vsyncadd [#allocation6], %s31
      %s34 = sshll.u32 [#allocation5], 4
      %s35 = int_to_ptr.vmem [resolvable:$true] %s34
      %37 = dma.hbm_to_vmem [thread:$0]  %s1, 272, %s35, [#allocation6]
    $region9: #{tpu_custom_call.1} parent=1 // pred_fallthru
      _
    // Predicated region
    $region10: #{tpu_custom_call.1} parent=1 // pred_check
      _
    $region11: #{tpu_custom_call.1} parent=1 // pred_check_branch
      %39 = sbr.rel (0) target = $region13
    $region12: #{tpu_custom_call.1} parent=1 // pred_region
      %s41 = ssub.s32 8192, 8192
      %42 = vsyncadd [#allocation6], %s41
      %s43 = sshll.u32 [#allocation7], 4
      %s44 = int_to_ptr.vmem [resolvable:$true] %s43
      %49 = dma.hbm_to_vmem [thread:$0]  %s2, 8192, %s44, [#allocation6], 256, 256, 16
    $region13: #{tpu_custom_call.1} parent=1 // pred_fallthru
      _
    // Predicated region
    $region14: #{tpu_custom_call.1} parent=1 // pred_check
      _
    $region15: #{tpu_custom_call.1} parent=1 // pred_check_branch
      %51 = sbr.rel (0) target = $region17
    $region16: #{tpu_custom_call.1} parent=1 // pred_region
      %s53 = ssub.s32 32768, 32768
      %54 = vsyncadd [#allocation9], %s53
      %s55 = sshll.u32 [#allocation8], 4
      %s56 = int_to_ptr.vmem [resolvable:$true] %s55
      %61 = dma.hbm_to_vmem [thread:$0]  %s3, 32768, %s56, [#allocation9], 512, 512, 32
    $region17: #{tpu_custom_call.1} parent=1 // pred_fallthru
      _
    // Predicated region
    $region18: #{tpu_custom_call.1} parent=1 // pred_check
      _
    $region19: #{tpu_custom_call.1} parent=1 // pred_check_branch
      %63 = sbr.rel (0) target = $region21
    $region20: #{tpu_custom_call.1} parent=1 // pred_region
      %s65 = ssub.s32 24576, 24576
      %66 = vsyncadd [#allocation9], %s65
      %s67 = sshll.u32 [#allocation10], 4
      %s68 = int_to_ptr.vmem [resolvable:$true] %s67
      %73 = dma.hbm_to_vmem [thread:$0]  %s4, 24576, %s68, [#allocation9], 192, 192, 12
    $region21: #{tpu_custom_call.1} parent=1 // pred_fallthru
      _
    // Predicated region
    $region22: #{tpu_custom_call.1} parent=1 // pred_check
      _
    $region23: #{tpu_custom_call.1} parent=1 // pred_check_branch
      %75 = sbr.rel (0) target = $region25
    $region24: #{tpu_custom_call.1} parent=1 // pred_region
      %s77 = ssub.s32 4096, 4096
      %78 = vsyncadd [#allocation12], %s77
      %s79 = sshll.u32 [#allocation11], 4
      %s80 = int_to_ptr.vmem [resolvable:$true] %s79
      %85 = dma.hbm_to_vmem [thread:$0]  %s5, 4096, %s80, [#allocation12], 64, 64, 4
    $region25: #{tpu_custom_call.1} parent=1 // pred_fallthru
      _
    // Predicated region
    $region26: #{tpu_custom_call.1} parent=1 // pred_check
      _
    $region27: #{tpu_custom_call.1} parent=1 // pred_check_branch
      %87 = sbr.rel (0) target = $region29
    $region28: #{tpu_custom_call.1} parent=1 // pred_region
      %88 = dma.done [#allocation3], 256
    $region29: #{tpu_custom_call.1} parent=1 // pred_fallthru
      _
    // Predicated region
    $region30: #{tpu_custom_call.1} parent=1 // pred_check
      _
    $region31: #{tpu_custom_call.1} parent=1 // pred_check_branch
      %90 = sbr.rel (0) target = $region33
    $region32: #{tpu_custom_call.1} parent=1 // pred_region
      %91 = dma.done [#allocation6], 272
    $region33: #{tpu_custom_call.1} parent=1 // pred_fallthru
      _
    // Predicated region
    $region34: #{tpu_custom_call.1} parent=1 // pred_check
      _
    $region35: #{tpu_custom_call.1} parent=1 // pred_check_branch
      %93 = sbr.rel (0) target = $region37
    $region36: #{tpu_custom_call.1} parent=1 // pred_region
      %94 = dma.done [#allocation6], 8192
    $region37: #{tpu_custom_call.1} parent=1 // pred_fallthru
      _
    // Predicated region
    $region38: #{tpu_custom_call.1} parent=1 // pred_check
      _
    $region39: #{tpu_custom_call.1} parent=1 // pred_check_branch
      %96 = sbr.rel (0) target = $region41
    $region40: #{tpu_custom_call.1} parent=1 // pred_region
      %97 = dma.done [#allocation9], 32768
    $region41: #{tpu_custom_call.1} parent=1 // pred_fallthru
      _
    // Predicated region
    $region42: #{tpu_custom_call.1} parent=1 // pred_check
      _
    $region43: #{tpu_custom_call.1} parent=1 // pred_check_branch
      %99 = sbr.rel (0) target = $region45
    $region44: #{tpu_custom_call.1} parent=1 // pred_region
      %100 = dma.done [#allocation9], 24576
    $region45: #{tpu_custom_call.1} parent=1 // pred_fallthru
      _
    // Predicated region
    $region46: #{tpu_custom_call.1} parent=1 // pred_check
      _
    $region47: #{tpu_custom_call.1} parent=1 // pred_check_branch
      %102 = sbr.rel (0) target = $region49
    $region48: #{tpu_custom_call.1} parent=1 // pred_region
      %103 = dma.done [#allocation12], 4096
    $region49: #{tpu_custom_call.1} parent=1 // pred_fallthru
      _
    %v105 = vld [vmem:[#allocation2] sm:$0xff]
    %v106 = vld [vmem:[#allocation2 + $0x8] sm:$0xff]
    %v107 = vld [vmem:[#allocation7] sm:$0xff]
    %v108 = vld [vmem:[#allocation7 + $0x8] sm:$0xff]
    %v109 = vld [vmem:[#allocation7 + $0x10] sm:$0xff]
    %v110 = vld [vmem:[#allocation7 + $0x18] sm:$0xff]
    %v111 = vld [vmem:[#allocation7 + $0x20] sm:$0xff]
    %v112 = vld [vmem:[#allocation7 + $0x28] sm:$0xff]
    %v113 = vld [vmem:[#allocation7 + $0x30] sm:$0xff]
    %v114 = vld [vmem:[#allocation7 + $0x38] sm:$0xff]
    %v115 = vld [vmem:[#allocation7 + $0x40] sm:$0xff]
    %v116 = vld [vmem:[#allocation7 + $0x48] sm:$0xff]
    %v117 = vld [vmem:[#allocation7 + $0x50] sm:$0xff]
    %v118 = vld [vmem:[#allocation7 + $0x58] sm:$0xff]
    %v119 = vld [vmem:[#allocation7 + $0x60] sm:$0xff]
    %v120 = vld [vmem:[#allocation7 + $0x68] sm:$0xff]
    %v121 = vld [vmem:[#allocation7 + $0x70] sm:$0xff]
    %v122 = vld [vmem:[#allocation7 + $0x78] sm:$0xff]
    %v123 = vld [vmem:[#allocation7 + $0x80] sm:$0xff]
    %v124 = vld [vmem:[#allocation7 + $0x88] sm:$0xff]
    %v125 = vld [vmem:[#allocation7 + $0x90] sm:$0xff]
    %v126 = vld [vmem:[#allocation7 + $0x98] sm:$0xff]
    %v127 = vld [vmem:[#allocation7 + $0xa0] sm:$0xff]
    %v128 = vld [vmem:[#allocation7 + $0xa8] sm:$0xff]
    %v129 = vld [vmem:[#allocation7 + $0xb0] sm:$0xff]
    %v130 = vld [vmem:[#allocation7 + $0xb8] sm:$0xff]
    %v131 = vld [vmem:[#allocation7 + $0xc0] sm:$0xff]
    %v132 = vld [vmem:[#allocation7 + $0xc8] sm:$0xff]
    %v133 = vld [vmem:[#allocation7 + $0xd0] sm:$0xff]
    %v134 = vld [vmem:[#allocation7 + $0xd8] sm:$0xff]
    %v135 = vld [vmem:[#allocation7 + $0xe0] sm:$0xff]
    %v136 = vld [vmem:[#allocation7 + $0xe8] sm:$0xff]
    %v137 = vld [vmem:[#allocation7 + $0xf0] sm:$0xff]
    %v138 = vld [vmem:[#allocation7 + $0xf8] sm:$0xff]
    %v139 = vld [vmem:[#allocation7 + $0x100] sm:$0xff]
    %v140 = vld [vmem:[#allocation7 + $0x108] sm:$0xff]
    %v141 = vld [vmem:[#allocation7 + $0x110] sm:$0xff]
    %v142 = vld [vmem:[#allocation7 + $0x118] sm:$0xff]
    %v143 = vld [vmem:[#allocation7 + $0x120] sm:$0xff]
    %v144 = vld [vmem:[#allocation7 + $0x128] sm:$0xff]
    %v145 = vld [vmem:[#allocation7 + $0x130] sm:$0xff]
    %v146 = vld [vmem:[#allocation7 + $0x138] sm:$0xff]
    %v147 = vld [vmem:[#allocation7 + $0x140] sm:$0xff]
    %v148 = vld [vmem:[#allocation7 + $0x148] sm:$0xff]
    %v149 = vld [vmem:[#allocation7 + $0x150] sm:$0xff]
    %v150 = vld [vmem:[#allocation7 + $0x158] sm:$0xff]
    %v151 = vld [vmem:[#allocation7 + $0x160] sm:$0xff]
    %v152 = vld [vmem:[#allocation7 + $0x168] sm:$0xff]
    %v153 = vld [vmem:[#allocation7 + $0x170] sm:$0xff]
    %v154 = vld [vmem:[#allocation7 + $0x178] sm:$0xff]
    %v155 = vld [vmem:[#allocation7 + $0x180] sm:$0xff]
    %v156 = vld [vmem:[#allocation7 + $0x188] sm:$0xff]
    %v157 = vld [vmem:[#allocation7 + $0x190] sm:$0xff]
    %v158 = vld [vmem:[#allocation7 + $0x198] sm:$0xff]
    %v159 = vld [vmem:[#allocation7 + $0x1a0] sm:$0xff]
    %v160 = vld [vmem:[#allocation7 + $0x1a8] sm:$0xff]
    %v161 = vld [vmem:[#allocation7 + $0x1b0] sm:$0xff]
    %v162 = vld [vmem:[#allocation7 + $0x1b8] sm:$0xff]
    %v163 = vld [vmem:[#allocation7 + $0x1c0] sm:$0xff]
    %v164 = vld [vmem:[#allocation7 + $0x1c8] sm:$0xff]
    %v165 = vld [vmem:[#allocation7 + $0x1d0] sm:$0xff]
    %v166 = vld [vmem:[#allocation7 + $0x1d8] sm:$0xff]
    %v167 = vld [vmem:[#allocation7 + $0x1e0] sm:$0xff]
    %v168 = vld [vmem:[#allocation7 + $0x1e8] sm:$0xff]
    %v169 = vld [vmem:[#allocation7 + $0x1f0] sm:$0xff]
    %v170 = vld [vmem:[#allocation7 + $0x1f8] sm:$0xff]
    %v171 = vld [vmem:[#allocation5] sm:$0xf]
    %v173 = vlaneseq
    %v174 = vshrl.u32 %v173, 7
    %v175 = vsub.s32 0, %v174
    %v176 = vrot.slane %v171, %v175
    %v177 = vlaneseq
    %v178 = vshrl.u32 %v177, 7
    %v179 = vsub.s32 1, %v178
    %v180 = vrot.slane %v171, %v179
    %v181 = vlaneseq
    %v182 = vshrl.u32 %v181, 7
    %v183 = vsub.s32 2, %v182
    %v184 = vrot.slane %v171, %v183
    %v185 = vlaneseq
    %v186 = vshrl.u32 %v185, 7
    %v187 = vsub.s32 3, %v186
    %v188 = vrot.slane %v171, %v187
    %v195 = vunpack.c.l.b16 %v105
    %v196 = vunpack.c.h.b16 %v105
    %v197 = vunpack.c.l.b16 %v106
    %v198 = vunpack.c.h.b16 %v106
    %v199 = vpack.c.b16 %v197, %v195
    %v200 = vpack.c.b16 %v198, %v196
    %v267 = vunpack.c.l.b16 %v107
    %v268 = vunpack.c.h.b16 %v107
    %v269 = vunpack.c.l.b16 %v108
    %v270 = vunpack.c.h.b16 %v108
    %v271 = vunpack.c.l.b16 %v109
    %v272 = vunpack.c.h.b16 %v109
    %v273 = vunpack.c.l.b16 %v110
    %v274 = vunpack.c.h.b16 %v110
    %v275 = vunpack.c.l.b16 %v111
    %v276 = vunpack.c.h.b16 %v111
    %v277 = vunpack.c.l.b16 %v112
    %v278 = vunpack.c.h.b16 %v112
    %v279 = vunpack.c.l.b16 %v113
    %v280 = vunpack.c.h.b16 %v113
    %v281 = vunpack.c.l.b16 %v114
    %v282 = vunpack.c.h.b16 %v114
    %v283 = vunpack.c.l.b16 %v115
    %v284 = vunpack.c.h.b16 %v115
    %v285 = vunpack.c.l.b16 %v116
    %v286 = vunpack.c.h.b16 %v116
    %v287 = vunpack.c.l.b16 %v117
    %v288 = vunpack.c.h.b16 %v117
    %v289 = vunpack.c.l.b16 %v118
    %v290 = vunpack.c.h.b16 %v118
    %v291 = vunpack.c.l.b16 %v119
    %v292 = vunpack.c.h.b16 %v119
    %v293 = vunpack.c.l.b16 %v120
    %v294 = vunpack.c.h.b16 %v120
    %v295 = vunpack.c.l.b16 %v121
    %v296 = vunpack.c.h.b16 %v121
    %v297 = vunpack.c.l.b16 %v122
    %v298 = vunpack.c.h.b16 %v122
    %v299 = vunpack.c.l.b16 %v123
    %v300 = vunpack.c.h.b16 %v123
    %v301 = vunpack.c.l.b16 %v124
    %v302 = vunpack.c.h.b16 %v124
    %v303 = vunpack.c.l.b16 %v125
    %v304 = vunpack.c.h.b16 %v125
    %v305 = vunpack.c.l.b16 %v126
    %v306 = vunpack.c.h.b16 %v126
    %v307 = vunpack.c.l.b16 %v127
    %v308 = vunpack.c.h.b16 %v127
    %v309 = vunpack.c.l.b16 %v128
    %v310 = vunpack.c.h.b16 %v128
    %v311 = vunpack.c.l.b16 %v129
    %v312 = vunpack.c.h.b16 %v129
    %v313 = vunpack.c.l.b16 %v130
    %v314 = vunpack.c.h.b16 %v130
    %v315 = vunpack.c.l.b16 %v131
    %v316 = vunpack.c.h.b16 %v131
    %v317 = vunpack.c.l.b16 %v132
    %v318 = vunpack.c.h.b16 %v132
    %v319 = vunpack.c.l.b16 %v133
    %v320 = vunpack.c.h.b16 %v133
    %v321 = vunpack.c.l.b16 %v134
    %v322 = vunpack.c.h.b16 %v134
    %v323 = vunpack.c.l.b16 %v135
    %v324 = vunpack.c.h.b16 %v135
    %v325 = vunpack.c.l.b16 %v136
    %v326 = vunpack.c.h.b16 %v136
    %v327 = vunpack.c.l.b16 %v137
    %v328 = vunpack.c.h.b16 %v137
    %v329 = vunpack.c.l.b16 %v138
    %v330 = vunpack.c.h.b16 %v138
    %v331 = vunpack.c.l.b16 %v139
    %v332 = vunpack.c.h.b16 %v139
    %v333 = vunpack.c.l.b16 %v140
    %v334 = vunpack.c.h.b16 %v140
    %v335 = vunpack.c.l.b16 %v141
    %v336 = vunpack.c.h.b16 %v141
    %v337 = vunpack.c.l.b16 %v142
    %v338 = vunpack.c.h.b16 %v142
    %v339 = vunpack.c.l.b16 %v143
    %v340 = vunpack.c.h.b16 %v143
    %v341 = vunpack.c.l.b16 %v144
    %v342 = vunpack.c.h.b16 %v144
    %v343 = vunpack.c.l.b16 %v145
    %v344 = vunpack.c.h.b16 %v145
    %v345 = vunpack.c.l.b16 %v146
    %v346 = vunpack.c.h.b16 %v146
    %v347 = vunpack.c.l.b16 %v147
    %v348 = vunpack.c.h.b16 %v147
    %v349 = vunpack.c.l.b16 %v148
    %v350 = vunpack.c.h.b16 %v148
    %v351 = vunpack.c.l.b16 %v149
    %v352 = vunpack.c.h.b16 %v149
    %v353 = vunpack.c.l.b16 %v150
    %v354 = vunpack.c.h.b16 %v150
    %v355 = vunpack.c.l.b16 %v151
    %v356 = vunpack.c.h.b16 %v151
    %v357 = vunpack.c.l.b16 %v152
    %v358 = vunpack.c.h.b16 %v152
    %v359 = vunpack.c.l.b16 %v153
    %v360 = vunpack.c.h.b16 %v153
    %v361 = vunpack.c.l.b16 %v154
    %v362 = vunpack.c.h.b16 %v154
    %v363 = vunpack.c.l.b16 %v155
    %v364 = vunpack.c.h.b16 %v155
    %v365 = vunpack.c.l.b16 %v156
    %v366 = vunpack.c.h.b16 %v156
    %v367 = vunpack.c.l.b16 %v157
    %v368 = vunpack.c.h.b16 %v157
    %v369 = vunpack.c.l.b16 %v158
    %v370 = vunpack.c.h.b16 %v158
    %v371 = vunpack.c.l.b16 %v159
    %v372 = vunpack.c.h.b16 %v159
    %v373 = vunpack.c.l.b16 %v160
    %v374 = vunpack.c.h.b16 %v160
    %v375 = vunpack.c.l.b16 %v161
    %v376 = vunpack.c.h.b16 %v161
    %v377 = vunpack.c.l.b16 %v162
    %v378 = vunpack.c.h.b16 %v162
    %v379 = vunpack.c.l.b16 %v163
    %v380 = vunpack.c.h.b16 %v163
    %v381 = vunpack.c.l.b16 %v164
    %v382 = vunpack.c.h.b16 %v164
    %v383 = vunpack.c.l.b16 %v165
    %v384 = vunpack.c.h.b16 %v165
    %v385 = vunpack.c.l.b16 %v166
    %v386 = vunpack.c.h.b16 %v166
    %v387 = vunpack.c.l.b16 %v167
    %v388 = vunpack.c.h.b16 %v167
    %v389 = vunpack.c.l.b16 %v168
    %v390 = vunpack.c.h.b16 %v168
    %v391 = vunpack.c.l.b16 %v169
    %v392 = vunpack.c.h.b16 %v169
    %v393 = vunpack.c.l.b16 %v170
    %v394 = vunpack.c.h.b16 %v170
    %v395 = vpack.c.b16 %v271, %v267
    %v396 = vpack.c.b16 %v272, %v268
    %v397 = vpack.c.b16 %v273, %v269
    %v398 = vpack.c.b16 %v274, %v270
    %v399 = vpack.c.b16 %v279, %v275
    %v400 = vpack.c.b16 %v280, %v276
    %v401 = vpack.c.b16 %v281, %v277
    %v402 = vpack.c.b16 %v282, %v278
    %v403 = vpack.c.b16 %v287, %v283
    %v404 = vpack.c.b16 %v288, %v284
    %v405 = vpack.c.b16 %v289, %v285
    %v406 = vpack.c.b16 %v290, %v286
    %v407 = vpack.c.b16 %v295, %v291
    %v408 = vpack.c.b16 %v296, %v292
    %v409 = vpack.c.b16 %v297, %v293
    %v410 = vpack.c.b16 %v298, %v294
    %v411 = vpack.c.b16 %v303, %v299
    %v412 = vpack.c.b16 %v304, %v300
    %v413 = vpack.c.b16 %v305, %v301
    %v414 = vpack.c.b16 %v306, %v302
    %v415 = vpack.c.b16 %v311, %v307
    %v416 = vpack.c.b16 %v312, %v308
    %v417 = vpack.c.b16 %v313, %v309
    %v418 = vpack.c.b16 %v314, %v310
    %v419 = vpack.c.b16 %v319, %v315
    %v420 = vpack.c.b16 %v320, %v316
    %v421 = vpack.c.b16 %v321, %v317
    %v422 = vpack.c.b16 %v322, %v318
    %v423 = vpack.c.b16 %v327, %v323
    %v424 = vpack.c.b16 %v328, %v324
    %v425 = vpack.c.b16 %v329, %v325
    %v426 = vpack.c.b16 %v330, %v326
    %v427 = vpack.c.b16 %v335, %v331
    %v428 = vpack.c.b16 %v336, %v332
    %v429 = vpack.c.b16 %v337, %v333
    %v430 = vpack.c.b16 %v338, %v334
    %v431 = vpack.c.b16 %v343, %v339
    %v432 = vpack.c.b16 %v344, %v340
    %v433 = vpack.c.b16 %v345, %v341
    %v434 = vpack.c.b16 %v346, %v342
    %v435 = vpack.c.b16 %v351, %v347
    %v436 = vpack.c.b16 %v352, %v348
    %v437 = vpack.c.b16 %v353, %v349
    %v438 = vpack.c.b16 %v354, %v350
    %v439 = vpack.c.b16 %v359, %v355
    %v440 = vpack.c.b16 %v360, %v356
    %v441 = vpack.c.b16 %v361, %v357
    %v442 = vpack.c.b16 %v362, %v358
    %v443 = vpack.c.b16 %v367, %v363
    %v444 = vpack.c.b16 %v368, %v364
    %v445 = vpack.c.b16 %v369, %v365
    %v446 = vpack.c.b16 %v370, %v366
    %v447 = vpack.c.b16 %v375, %v371
    %v448 = vpack.c.b16 %v376, %v372
    %v449 = vpack.c.b16 %v377, %v373
    %v450 = vpack.c.b16 %v378, %v374
    %v451 = vpack.c.b16 %v383, %v379
    %v452 = vpack.c.b16 %v384, %v380
    %v453 = vpack.c.b16 %v385, %v381
    %v454 = vpack.c.b16 %v386, %v382
    %v455 = vpack.c.b16 %v391, %v387
    %v456 = vpack.c.b16 %v392, %v388
    %v457 = vpack.c.b16 %v393, %v389
    %v458 = vpack.c.b16 %v394, %v390
    %523 = vmatprep.subr.bf16.mxu0 %v424
    %524 = vmatpush1.bf16.msra.mxu0 %v423
    %525 = vmatprep.subr.bf16.mxu0 %v420
    %526 = vmatpush1.bf16.msra.mxu0 %v419
    %527 = vmatprep.subr.bf16.mxu0 %v416
    %528 = vmatpush1.bf16.msra.mxu0 %v415
    %529 = vmatprep.subr.bf16.mxu0 %v412
    %530 = vmatpush1.bf16.msra.mxu0 %v411
    %531 = vmatprep.subr.bf16.mxu0 %v408
    %532 = vmatpush1.bf16.msra.mxu0 %v407
    %533 = vmatprep.subr.bf16.mxu0 %v404
    %534 = vmatpush1.bf16.msra.mxu0 %v403
    %535 = vmatprep.subr.bf16.mxu0 %v400
    %536 = vmatpush1.bf16.msra.mxu0 %v399
    %537 = vmatprep.subr.bf16.mxu0 %v396
    %538 = vmatpush1.bf16.msra.mxu0 %v395
    %539 = vmatprep.subr.bf16.mxu0 %v456
    %540 = vmatpush2.bf16.msra.mxu0 %v455
    %541 = vmatprep.subr.bf16.mxu0 %v452
    %542 = vmatpush2.bf16.msra.mxu0 %v451
    %543 = vmatprep.subr.bf16.mxu0 %v448
    %544 = vmatpush2.bf16.msra.mxu0 %v447
    %545 = vmatprep.subr.bf16.mxu0 %v444
    %546 = vmatpush2.bf16.msra.mxu0 %v443
    %547 = vmatprep.subr.bf16.mxu0 %v440
    %548 = vmatpush2.bf16.msra.mxu0 %v439
    %549 = vmatprep.subr.bf16.mxu0 %v436
    %550 = vmatpush2.bf16.msra.mxu0 %v435
    %551 = vmatprep.subr.bf16.mxu0 %v432
    %552 = vmatpush2.bf16.msra.mxu0 %v431
    %553 = vmatprep.subr.bf16.mxu0 %v428
    %554 = vmatpush2.bf16.msra.mxu0 %v427
    %555 = vmatprep.mubr.bf16.mxu0 %v200
    %556 = vmatmul.mubr.bf16.gmra.mxu0 %v199
    %v557 = vpop.f32.mrf.mxu0
    %v558 = vadd.f32 %v176, %v557
    %v559 = vpop.f32.mrf.mxu0
    %v560 = vadd.f32 %v180, %v559
    %v561 = vpop.f32.mrf.mxu0
    %v562 = vadd.f32 %v176, %v561
    %v563 = vpop.f32.mrf.mxu0
    %v564 = vadd.f32 %v180, %v563
    %565 = vdwg.mxu0
    %566 = vmatprep.subr.bf16.mxu0 %v426
    %567 = vmatpush1.bf16.msra.mxu0 %v425
    %568 = vmatprep.subr.bf16.mxu0 %v422
    %569 = vmatpush1.bf16.msra.mxu0 %v421
    %570 = vmatprep.subr.bf16.mxu0 %v418
    %571 = vmatpush1.bf16.msra.mxu0 %v417
    %572 = vmatprep.subr.bf16.mxu0 %v414
    %573 = vmatpush1.bf16.msra.mxu0 %v413
    %574 = vmatprep.subr.bf16.mxu0 %v410
    %575 = vmatpush1.bf16.msra.mxu0 %v409
    %576 = vmatprep.subr.bf16.mxu0 %v406
    %577 = vmatpush1.bf16.msra.mxu0 %v405
    %578 = vmatprep.subr.bf16.mxu0 %v402
    %579 = vmatpush1.bf16.msra.mxu0 %v401
    %580 = vmatprep.subr.bf16.mxu0 %v398
    %581 = vmatpush1.bf16.msra.mxu0 %v397
    %582 = vmatprep.subr.bf16.mxu0 %v458
    %583 = vmatpush2.bf16.msra.mxu0 %v457
    %584 = vmatprep.subr.bf16.mxu0 %v454
    %585 = vmatpush2.bf16.msra.mxu0 %v453
    %586 = vmatprep.subr.bf16.mxu0 %v450
    %587 = vmatpush2.bf16.msra.mxu0 %v449
    %588 = vmatprep.subr.bf16.mxu0 %v446
    %589 = vmatpush2.bf16.msra.mxu0 %v445
    %590 = vmatprep.subr.bf16.mxu0 %v442
    %591 = vmatpush2.bf16.msra.mxu0 %v441
    %592 = vmatprep.subr.bf16.mxu0 %v438
    %593 = vmatpush2.bf16.msra.mxu0 %v437
    %594 = vmatprep.subr.bf16.mxu0 %v434
    %595 = vmatpush2.bf16.msra.mxu0 %v433
    %596 = vmatprep.subr.bf16.mxu0 %v430
    %597 = vmatpush2.bf16.msra.mxu0 %v429
    %598 = vmatprep.mubr.bf16.mxu0 %v200
    %599 = vmatmul.mubr.bf16.gmra.mxu0 %v199
    %v600 = vpop.f32.mrf.mxu0
    %v601 = vadd.f32 %v184, %v600
    %v602 = vpop.f32.mrf.mxu0
    %v603 = vadd.f32 %v188, %v602
    %v604 = vpop.f32.mrf.mxu0
    %v605 = vadd.f32 %v184, %v604
    %v606 = vpop.f32.mrf.mxu0
    %v607 = vadd.f32 %v188, %v606
    %608 = vdwg.mxu0
    %v609 = vmax.f32 %v558, 0.0
    %v610 = vmax.f32 %v560, 0.0
    %v611 = vmax.f32 %v601, 0.0
    %v612 = vmax.f32 %v603, 0.0
    %v613 = vmax.f32 %v562, 0.0
    %v614 = vmax.f32 %v564, 0.0
    %v615 = vmax.f32 %v605, 0.0
    %v616 = vmax.f32 %v607, 0.0
    %v617 = vpack.c.bf16 %v613, %v609
    %v618 = vpack.c.bf16 %v614, %v610
    %v619 = vpack.c.bf16 %v615, %v611
    %v620 = vpack.c.bf16 %v616, %v612
    %v621 = vld [vmem:[#allocation8] sm:$0xff]
    %v622 = vld [vmem:[#allocation8 + $0x8] sm:$0xff]
    %v623 = vld [vmem:[#allocation8 + $0x10] sm:$0xff]
    %v624 = vld [vmem:[#allocation8 + $0x18] sm:$0xff]
    %v625 = vld [vmem:[#allocation8 + $0x20] sm:$0xff]
    %v626 = vld [vmem:[#allocation8 + $0x28] sm:$0xff]
    %v627 = vld [vmem:[#allocation8 + $0x30] sm:$0xff]
    %v628 = vld [vmem:[#allocation8 + $0x38] sm:$0xff]
    %v629 = vld [vmem:[#allocation8 + $0x40] sm:$0xff]
    %v630 = vld [vmem:[#allocation8 + $0x48] sm:$0xff]
    %v631 = vld [vmem:[#allocation8 + $0x50] sm:$0xff]
    %v632 = vld [vmem:[#allocation8 + $0x58] sm:$0xff]
    %v633 = vld [vmem:[#allocation8 + $0x60] sm:$0xff]
    %v634 = vld [vmem:[#allocation8 + $0x68] sm:$0xff]
    %v635 = vld [vmem:[#allocation8 + $0x70] sm:$0xff]
    %v636 = vld [vmem:[#allocation8 + $0x78] sm:$0xff]
    %v637 = vld [vmem:[#allocation8 + $0x80] sm:$0xff]
    %v638 = vld [vmem:[#allocation8 + $0x88] sm:$0xff]
    %v639 = vld [vmem:[#allocation8 + $0x90] sm:$0xff]
    %v640 = vld [vmem:[#allocation8 + $0x98] sm:$0xff]
    %v641 = vld [vmem:[#allocation8 + $0xa0] sm:$0xff]
    %v642 = vld [vmem:[#allocation8 + $0xa8] sm:$0xff]
    %v643 = vld [vmem:[#allocation8 + $0xb0] sm:$0xff]
    %v644 = vld [vmem:[#allocation8 + $0xb8] sm:$0xff]
    %v645 = vld [vmem:[#allocation8 + $0xc0] sm:$0xff]
    %v646 = vld [vmem:[#allocation8 + $0xc8] sm:$0xff]
    %v647 = vld [vmem:[#allocation8 + $0xd0] sm:$0xff]
    %v648 = vld [vmem:[#allocation8 + $0xd8] sm:$0xff]
    %v649 = vld [vmem:[#allocation8 + $0xe0] sm:$0xff]
    %v650 = vld [vmem:[#allocation8 + $0xe8] sm:$0xff]
    %v651 = vld [vmem:[#allocation8 + $0xf0] sm:$0xff]
    %v652 = vld [vmem:[#allocation8 + $0xf8] sm:$0xff]
    %v653 = vld [vmem:[#allocation8 + $0x100] sm:$0xff]
    %v654 = vld [vmem:[#allocation8 + $0x108] sm:$0xff]
    %v655 = vld [vmem:[#allocation8 + $0x110] sm:$0xff]
    %v656 = vld [vmem:[#allocation8 + $0x118] sm:$0xff]
    %v657 = vld [vmem:[#allocation8 + $0x120] sm:$0xff]
    %v658 = vld [vmem:[#allocation8 + $0x128] sm:$0xff]
    %v659 = vld [vmem:[#allocation8 + $0x130] sm:$0xff]
    %v660 = vld [vmem:[#allocation8 + $0x138] sm:$0xff]
    %v661 = vld [vmem:[#allocation8 + $0x140] sm:$0xff]
    %v662 = vld [vmem:[#allocation8 + $0x148] sm:$0xff]
    %v663 = vld [vmem:[#allocation8 + $0x150] sm:$0xff]
    %v664 = vld [vmem:[#allocation8 + $0x158] sm:$0xff]
    %v665 = vld [vmem:[#allocation8 + $0x160] sm:$0xff]
    %v666 = vld [vmem:[#allocation8 + $0x168] sm:$0xff]
    %v667 = vld [vmem:[#allocation8 + $0x170] sm:$0xff]
    %v668 = vld [vmem:[#allocation8 + $0x178] sm:$0xff]
    %v669 = vld [vmem:[#allocation8 + $0x180] sm:$0xff]
    %v670 = vld [vmem:[#allocation8 + $0x188] sm:$0xff]
    %v671 = vld [vmem:[#allocation8 + $0x190] sm:$0xff]
    %v672 = vld [vmem:[#allocation8 + $0x198] sm:$0xff]
    %v673 = vld [vmem:[#allocation8 + $0x1a0] sm:$0xff]
    %v674 = vld [vmem:[#allocation8 + $0x1a8] sm:$0xff]
    %v675 = vld [vmem:[#allocation8 + $0x1b0] sm:$0xff]
    %v676 = vld [vmem:[#allocation8 + $0x1b8] sm:$0xff]
    %v677 = vld [vmem:[#allocation8 + $0x1c0] sm:$0xff]
    %v678 = vld [vmem:[#allocation8 + $0x1c8] sm:$0xff]
    %v679 = vld [vmem:[#allocation8 + $0x1d0] sm:$0xff]
    %v680 = vld [vmem:[#allocation8 + $0x1d8] sm:$0xff]
    %v681 = vld [vmem:[#allocation8 + $0x1e0] sm:$0xff]
    %v682 = vld [vmem:[#allocation8 + $0x1e8] sm:$0xff]
    %v683 = vld [vmem:[#allocation8 + $0x1f0] sm:$0xff]
    %v684 = vld [vmem:[#allocation8 + $0x1f8] sm:$0xff]
    %v685 = vld [vmem:[#allocation8 + $0x200] sm:$0xff]
    %v686 = vld [vmem:[#allocation8 + $0x208] sm:$0xff]
    %v687 = vld [vmem:[#allocation8 + $0x210] sm:$0xff]
    %v688 = vld [vmem:[#allocation8 + $0x218] sm:$0xff]
    %v689 = vld [vmem:[#allocation8 + $0x220] sm:$0xff]
    %v690 = vld [vmem:[#allocation8 + $0x228] sm:$0xff]
    %v691 = vld [vmem:[#allocation8 + $0x230] sm:$0xff]
    %v692 = vld [vmem:[#allocation8 + $0x238] sm:$0xff]
    %v693 = vld [vmem:[#allocation8 + $0x240] sm:$0xff]
    %v694 = vld [vmem:[#allocation8 + $0x248] sm:$0xff]
    %v695 = vld [vmem:[#allocation8 + $0x250] sm:$0xff]
    %v696 = vld [vmem:[#allocation8 + $0x258] sm:$0xff]
    %v697 = vld [vmem:[#allocation8 + $0x260] sm:$0xff]
    %v698 = vld [vmem:[#allocation8 + $0x268] sm:$0xff]
    %v699 = vld [vmem:[#allocation8 + $0x270] sm:$0xff]
    %v700 = vld [vmem:[#allocation8 + $0x278] sm:$0xff]
    %v701 = vld [vmem:[#allocation8 + $0x280] sm:$0xff]
    %v702 = vld [vmem:[#allocation8 + $0x288] sm:$0xff]
    %v703 = vld [vmem:[#allocation8 + $0x290] sm:$0xff]
    %v704 = vld [vmem:[#allocation8 + $0x298] sm:$0xff]
    %v705 = vld [vmem:[#allocation8 + $0x2a0] sm:$0xff]
    %v706 = vld [vmem:[#allocation8 + $0x2a8] sm:$0xff]
    %v707 = vld [vmem:[#allocation8 + $0x2b0] sm:$0xff]
    %v708 = vld [vmem:[#allocation8 + $0x2b8] sm:$0xff]
    %v709 = vld [vmem:[#allocation8 + $0x2c0] sm:$0xff]
    %v710 = vld [vmem:[#allocation8 + $0x2c8] sm:$0xff]
    %v711 = vld [vmem:[#allocation8 + $0x2d0] sm:$0xff]
    %v712 = vld [vmem:[#allocation8 + $0x2d8] sm:$0xff]
    %v713 = vld [vmem:[#allocation8 + $0x2e0] sm:$0xff]
    %v714 = vld [vmem:[#allocation8 + $0x2e8] sm:$0xff]
    %v715 = vld [vmem:[#allocation8 + $0x2f0] sm:$0xff]
    %v716 = vld [vmem:[#allocation8 + $0x2f8] sm:$0xff]
    %v717 = vld [vmem:[#allocation8 + $0x300] sm:$0xff]
    %v718 = vld [vmem:[#allocation8 + $0x308] sm:$0xff]
    %v719 = vld [vmem:[#allocation8 + $0x310] sm:$0xff]
    %v720 = vld [vmem:[#allocation8 + $0x318] sm:$0xff]
    %v721 = vld [vmem:[#allocation8 + $0x320] sm:$0xff]
    %v722 = vld [vmem:[#allocation8 + $0x328] sm:$0xff]
    %v723 = vld [vmem:[#allocation8 + $0x330] sm:$0xff]
    %v724 = vld [vmem:[#allocation8 + $0x338] sm:$0xff]
    %v725 = vld [vmem:[#allocation8 + $0x340] sm:$0xff]
    %v726 = vld [vmem:[#allocation8 + $0x348] sm:$0xff]
    %v727 = vld [vmem:[#allocation8 + $0x350] sm:$0xff]
    %v728 = vld [vmem:[#allocation8 + $0x358] sm:$0xff]
    %v729 = vld [vmem:[#allocation8 + $0x360] sm:$0xff]
    %v730 = vld [vmem:[#allocation8 + $0x368] sm:$0xff]
    %v731 = vld [vmem:[#allocation8 + $0x370] sm:$0xff]
    %v732 = vld [vmem:[#allocation8 + $0x378] sm:$0xff]
    %v733 = vld [vmem:[#allocation8 + $0x380] sm:$0xff]
    %v734 = vld [vmem:[#allocation8 + $0x388] sm:$0xff]
    %v735 = vld [vmem:[#allocation8 + $0x390] sm:$0xff]
    %v736 = vld [vmem:[#allocation8 + $0x398] sm:$0xff]
    %v737 = vld [vmem:[#allocation8 + $0x3a0] sm:$0xff]
    %v738 = vld [vmem:[#allocation8 + $0x3a8] sm:$0xff]
    %v739 = vld [vmem:[#allocation8 + $0x3b0] sm:$0xff]
    %v740 = vld [vmem:[#allocation8 + $0x3b8] sm:$0xff]
    %v741 = vld [vmem:[#allocation8 + $0x3c0] sm:$0xff]
    %v742 = vld [vmem:[#allocation8 + $0x3c8] sm:$0xff]
    %v743 = vld [vmem:[#allocation8 + $0x3d0] sm:$0xff]
    %v744 = vld [vmem:[#allocation8 + $0x3d8] sm:$0xff]
    %v745 = vld [vmem:[#allocation8 + $0x3e0] sm:$0xff]
    %v746 = vld [vmem:[#allocation8 + $0x3e8] sm:$0xff]
    %v747 = vld [vmem:[#allocation8 + $0x3f0] sm:$0xff]
    %v748 = vld [vmem:[#allocation8 + $0x3f8] sm:$0xff]
    %v749 = vld [vmem:[#allocation8 + $0x400] sm:$0xff]
    %v750 = vld [vmem:[#allocation8 + $0x408] sm:$0xff]
    %v751 = vld [vmem:[#allocation8 + $0x410] sm:$0xff]
    %v752 = vld [vmem:[#allocation8 + $0x418] sm:$0xff]
    %v753 = vld [vmem:[#allocation8 + $0x420] sm:$0xff]
    %v754 = vld [vmem:[#allocation8 + $0x428] sm:$0xff]
    %v755 = vld [vmem:[#allocation8 + $0x430] sm:$0xff]
    %v756 = vld [vmem:[#allocation8 + $0x438] sm:$0xff]
    %v757 = vld [vmem:[#allocation8 + $0x440] sm:$0xff]
    %v758 = vld [vmem:[#allocation8 + $0x448] sm:$0xff]
    %v759 = vld [vmem:[#allocation8 + $0x450] sm:$0xff]
    %v760 = vld [vmem:[#allocation8 + $0x458] sm:$0xff]
    %v761 = vld [vmem:[#allocation8 + $0x460] sm:$0xff]
    %v762 = vld [vmem:[#allocation8 + $0x468] sm:$0xff]
    %v763 = vld [vmem:[#allocation8 + $0x470] sm:$0xff]
    %v764 = vld [vmem:[#allocation8 + $0x478] sm:$0xff]
    %v765 = vld [vmem:[#allocation8 + $0x480] sm:$0xff]
    %v766 = vld [vmem:[#allocation8 + $0x488] sm:$0xff]
    %v767 = vld [vmem:[#allocation8 + $0x490] sm:$0xff]
    %v768 = vld [vmem:[#allocation8 + $0x498] sm:$0xff]
    %v769 = vld [vmem:[#allocation8 + $0x4a0] sm:$0xff]
    %v770 = vld [vmem:[#allocation8 + $0x4a8] sm:$0xff]
    %v771 = vld [vmem:[#allocation8 + $0x4b0] sm:$0xff]
    %v772 = vld [vmem:[#allocation8 + $0x4b8] sm:$0xff]
    %v773 = vld [vmem:[#allocation8 + $0x4c0] sm:$0xff]
    %v774 = vld [vmem:[#allocation8 + $0x4c8] sm:$0xff]
    %v775 = vld [vmem:[#allocation8 + $0x4d0] sm:$0xff]
    %v776 = vld [vmem:[#allocation8 + $0x4d8] sm:$0xff]
    %v777 = vld [vmem:[#allocation8 + $0x4e0] sm:$0xff]
    %v778 = vld [vmem:[#allocation8 + $0x4e8] sm:$0xff]
    %v779 = vld [vmem:[#allocation8 + $0x4f0] sm:$0xff]
    %v780 = vld [vmem:[#allocation8 + $0x4f8] sm:$0xff]
    %v781 = vld [vmem:[#allocation8 + $0x500] sm:$0xff]
    %v782 = vld [vmem:[#allocation8 + $0x508] sm:$0xff]
    %v783 = vld [vmem:[#allocation8 + $0x510] sm:$0xff]
    %v784 = vld [vmem:[#allocation8 + $0x518] sm:$0xff]
    %v785 = vld [vmem:[#allocation8 + $0x520] sm:$0xff]
    %v786 = vld [vmem:[#allocation8 + $0x528] sm:$0xff]
    %v787 = vld [vmem:[#allocation8 + $0x530] sm:$0xff]
    %v788 = vld [vmem:[#allocation8 + $0x538] sm:$0xff]
    %v789 = vld [vmem:[#allocation8 + $0x540] sm:$0xff]
    %v790 = vld [vmem:[#allocation8 + $0x548] sm:$0xff]
    %v791 = vld [vmem:[#allocation8 + $0x550] sm:$0xff]
    %v792 = vld [vmem:[#allocation8 + $0x558] sm:$0xff]
    %v793 = vld [vmem:[#allocation8 + $0x560] sm:$0xff]
    %v794 = vld [vmem:[#allocation8 + $0x568] sm:$0xff]
    %v795 = vld [vmem:[#allocation8 + $0x570] sm:$0xff]
    %v796 = vld [vmem:[#allocation8 + $0x578] sm:$0xff]
    %v797 = vld [vmem:[#allocation8 + $0x580] sm:$0xff]
    %v798 = vld [vmem:[#allocation8 + $0x588] sm:$0xff]
    %v799 = vld [vmem:[#allocation8 + $0x590] sm:$0xff]
    %v800 = vld [vmem:[#allocation8 + $0x598] sm:$0xff]
    %v801 = vld [vmem:[#allocation8 + $0x5a0] sm:$0xff]
    %v802 = vld [vmem:[#allocation8 + $0x5a8] sm:$0xff]
    %v803 = vld [vmem:[#allocation8 + $0x5b0] sm:$0xff]
    %v804 = vld [vmem:[#allocation8 + $0x5b8] sm:$0xff]
    %v805 = vld [vmem:[#allocation8 + $0x5c0] sm:$0xff]
    %v806 = vld [vmem:[#allocation8 + $0x5c8] sm:$0xff]
    %v807 = vld [vmem:[#allocation8 + $0x5d0] sm:$0xff]
    %v808 = vld [vmem:[#allocation8 + $0x5d8] sm:$0xff]
    %v809 = vld [vmem:[#allocation8 + $0x5e0] sm:$0xff]
    %v810 = vld [vmem:[#allocation8 + $0x5e8] sm:$0xff]
    %v811 = vld [vmem:[#allocation8 + $0x5f0] sm:$0xff]
    %v812 = vld [vmem:[#allocation8 + $0x5f8] sm:$0xff]
    %v813 = vld [vmem:[#allocation8 + $0x600] sm:$0xff]
    %v814 = vld [vmem:[#allocation8 + $0x608] sm:$0xff]
    %v815 = vld [vmem:[#allocation8 + $0x610] sm:$0xff]
    %v816 = vld [vmem:[#allocation8 + $0x618] sm:$0xff]
    %v817 = vld [vmem:[#allocation8 + $0x620] sm:$0xff]
    %v818 = vld [vmem:[#allocation8 + $0x628] sm:$0xff]
    %v819 = vld [vmem:[#allocation8 + $0x630] sm:$0xff]
    %v820 = vld [vmem:[#allocation8 + $0x638] sm:$0xff]
    %v821 = vld [vmem:[#allocation8 + $0x640] sm:$0xff]
    %v822 = vld [vmem:[#allocation8 + $0x648] sm:$0xff]
    %v823 = vld [vmem:[#allocation8 + $0x650] sm:$0xff]
    %v824 = vld [vmem:[#allocation8 + $0x658] sm:$0xff]
    %v825 = vld [vmem:[#allocation8 + $0x660] sm:$0xff]
    %v826 = vld [vmem:[#allocation8 + $0x668] sm:$0xff]
    %v827 = vld [vmem:[#allocation8 + $0x670] sm:$0xff]
    %v828 = vld [vmem:[#allocation8 + $0x678] sm:$0xff]
    %v829 = vld [vmem:[#allocation8 + $0x680] sm:$0xff]
    %v830 = vld [vmem:[#allocation8 + $0x688] sm:$0xff]
    %v831 = vld [vmem:[#allocation8 + $0x690] sm:$0xff]
    %v832 = vld [vmem:[#allocation8 + $0x698] sm:$0xff]
    %v833 = vld [vmem:[#allocation8 + $0x6a0] sm:$0xff]
    %v834 = vld [vmem:[#allocation8 + $0x6a8] sm:$0xff]
    %v835 = vld [vmem:[#allocation8 + $0x6b0] sm:$0xff]
    %v836 = vld [vmem:[#allocation8 + $0x6b8] sm:$0xff]
    %v837 = vld [vmem:[#allocation8 + $0x6c0] sm:$0xff]
    %v838 = vld [vmem:[#allocation8 + $0x6c8] sm:$0xff]
    %v839 = vld [vmem:[#allocation8 + $0x6d0] sm:$0xff]
    %v840 = vld [vmem:[#allocation8 + $0x6d8] sm:$0xff]
    %v841 = vld [vmem:[#allocation8 + $0x6e0] sm:$0xff]
    %v842 = vld [vmem:[#allocation8 + $0x6e8] sm:$0xff]
    %v843 = vld [vmem:[#allocation8 + $0x6f0] sm:$0xff]
    %v844 = vld [vmem:[#allocation8 + $0x6f8] sm:$0xff]
    %v845 = vld [vmem:[#allocation8 + $0x700] sm:$0xff]
    %v846 = vld [vmem:[#allocation8 + $0x708] sm:$0xff]
    %v847 = vld [vmem:[#allocation8 + $0x710] sm:$0xff]
    %v848 = vld [vmem:[#allocation8 + $0x718] sm:$0xff]
    %v849 = vld [vmem:[#allocation8 + $0x720] sm:$0xff]
    %v850 = vld [vmem:[#allocation8 + $0x728] sm:$0xff]
    %v851 = vld [vmem:[#allocation8 + $0x730] sm:$0xff]
    %v852 = vld [vmem:[#allocation8 + $0x738] sm:$0xff]
    %v853 = vld [vmem:[#allocation8 + $0x740] sm:$0xff]
    %v854 = vld [vmem:[#allocation8 + $0x748] sm:$0xff]
    %v855 = vld [vmem:[#allocation8 + $0x750] sm:$0xff]
    %v856 = vld [vmem:[#allocation8 + $0x758] sm:$0xff]
    %v857 = vld [vmem:[#allocation8 + $0x760] sm:$0xff]
    %v858 = vld [vmem:[#allocation8 + $0x768] sm:$0xff]
    %v859 = vld [vmem:[#allocation8 + $0x770] sm:$0xff]
    %v860 = vld [vmem:[#allocation8 + $0x778] sm:$0xff]
    %v861 = vld [vmem:[#allocation8 + $0x780] sm:$0xff]
    %v862 = vld [vmem:[#allocation8 + $0x788] sm:$0xff]
    %v863 = vld [vmem:[#allocation8 + $0x790] sm:$0xff]
    %v864 = vld [vmem:[#allocation8 + $0x798] sm:$0xff]
    %v865 = vld [vmem:[#allocation8 + $0x7a0] sm:$0xff]
    %v866 = vld [vmem:[#allocation8 + $0x7a8] sm:$0xff]
    %v867 = vld [vmem:[#allocation8 + $0x7b0] sm:$0xff]
    %v868 = vld [vmem:[#allocation8 + $0x7b8] sm:$0xff]
    %v869 = vld [vmem:[#allocation8 + $0x7c0] sm:$0xff]
    %v870 = vld [vmem:[#allocation8 + $0x7c8] sm:$0xff]
    %v871 = vld [vmem:[#allocation8 + $0x7d0] sm:$0xff]
    %v872 = vld [vmem:[#allocation8 + $0x7d8] sm:$0xff]
    %v873 = vld [vmem:[#allocation8 + $0x7e0] sm:$0xff]
    %v874 = vld [vmem:[#allocation8 + $0x7e8] sm:$0xff]
    %v875 = vld [vmem:[#allocation8 + $0x7f0] sm:$0xff]
    %v876 = vld [vmem:[#allocation8 + $0x7f8] sm:$0xff]
    %v877 = vld [vmem:[#allocation5 + $0x4] sm:$0xff]
    %v879 = vlaneseq
    %v880 = vshrl.u32 %v879, 7
    %v881 = vsub.s32 0, %v880
    %v882 = vrot.slane %v877, %v881
    %v883 = vlaneseq
    %v884 = vshrl.u32 %v883, 7
    %v885 = vsub.s32 1, %v884
    %v886 = vrot.slane %v877, %v885
    %v887 = vlaneseq
    %v888 = vshrl.u32 %v887, 7
    %v889 = vsub.s32 2, %v888
    %v890 = vrot.slane %v877, %v889
    %v891 = vlaneseq
    %v892 = vshrl.u32 %v891, 7
    %v893 = vsub.s32 3, %v892
    %v894 = vrot.slane %v877, %v893
    %v895 = vlaneseq
    %v896 = vshrl.u32 %v895, 7
    %v897 = vsub.s32 4, %v896
    %v898 = vrot.slane %v877, %v897
    %v899 = vlaneseq
    %v900 = vshrl.u32 %v899, 7
    %v901 = vsub.s32 5, %v900
    %v902 = vrot.slane %v877, %v901
    %v903 = vlaneseq
    %v904 = vshrl.u32 %v903, 7
    %v905 = vsub.s32 6, %v904
    %v906 = vrot.slane %v877, %v905
    %v907 = vlaneseq
    %v908 = vshrl.u32 %v907, 7
    %v909 = vsub.s32 7, %v908
    %v910 = vrot.slane %v877, %v909
    %v1175 = vunpack.c.l.b16 %v621
    %v1176 = vunpack.c.h.b16 %v621
    %v1177 = vunpack.c.l.b16 %v622
    %v1178 = vunpack.c.h.b16 %v622
    %v1179 = vunpack.c.l.b16 %v623
    %v1180 = vunpack.c.h.b16 %v623
    %v1181 = vunpack.c.l.b16 %v624
    %v1182 = vunpack.c.h.b16 %v624
    %v1183 = vunpack.c.l.b16 %v625
    %v1184 = vunpack.c.h.b16 %v625
    %v1185 = vunpack.c.l.b16 %v626
    %v1186 = vunpack.c.h.b16 %v626
    %v1187 = vunpack.c.l.b16 %v627
    %v1188 = vunpack.c.h.b16 %v627
    %v1189 = vunpack.c.l.b16 %v628
    %v1190 = vunpack.c.h.b16 %v628
    %v1191 = vunpack.c.l.b16 %v629
    %v1192 = vunpack.c.h.b16 %v629
    %v1193 = vunpack.c.l.b16 %v630
    %v1194 = vunpack.c.h.b16 %v630
    %v1195 = vunpack.c.l.b16 %v631
    %v1196 = vunpack.c.h.b16 %v631
    %v1197 = vunpack.c.l.b16 %v632
    %v1198 = vunpack.c.h.b16 %v632
    %v1199 = vunpack.c.l.b16 %v633
    %v1200 = vunpack.c.h.b16 %v633
    %v1201 = vunpack.c.l.b16 %v634
    %v1202 = vunpack.c.h.b16 %v634
    %v1203 = vunpack.c.l.b16 %v635
    %v1204 = vunpack.c.h.b16 %v635
    %v1205 = vunpack.c.l.b16 %v636
    %v1206 = vunpack.c.h.b16 %v636
    %v1207 = vunpack.c.l.b16 %v637
    %v1208 = vunpack.c.h.b16 %v637
    %v1209 = vunpack.c.l.b16 %v638
    %v1210 = vunpack.c.h.b16 %v638
    %v1211 = vunpack.c.l.b16 %v639
    %v1212 = vunpack.c.h.b16 %v639
    %v1213 = vunpack.c.l.b16 %v640
    %v1214 = vunpack.c.h.b16 %v640
    %v1215 = vunpack.c.l.b16 %v641
    %v1216 = vunpack.c.h.b16 %v641
    %v1217 = vunpack.c.l.b16 %v642
    %v1218 = vunpack.c.h.b16 %v642
    %v1219 = vunpack.c.l.b16 %v643
    %v1220 = vunpack.c.h.b16 %v643
    %v1221 = vunpack.c.l.b16 %v644
    %v1222 = vunpack.c.h.b16 %v644
    %v1223 = vunpack.c.l.b16 %v645
    %v1224 = vunpack.c.h.b16 %v645
    %v1225 = vunpack.c.l.b16 %v646
    %v1226 = vunpack.c.h.b16 %v646
    %v1227 = vunpack.c.l.b16 %v647
    %v1228 = vunpack.c.h.b16 %v647
    %v1229 = vunpack.c.l.b16 %v648
    %v1230 = vunpack.c.h.b16 %v648
    %v1231 = vunpack.c.l.b16 %v649
    %v1232 = vunpack.c.h.b16 %v649
    %v1233 = vunpack.c.l.b16 %v650
    %v1234 = vunpack.c.h.b16 %v650
    %v1235 = vunpack.c.l.b16 %v651
    %v1236 = vunpack.c.h.b16 %v651
    %v1237 = vunpack.c.l.b16 %v652
    %v1238 = vunpack.c.h.b16 %v652
    %v1239 = vunpack.c.l.b16 %v653
    %v1240 = vunpack.c.h.b16 %v653
    %v1241 = vunpack.c.l.b16 %v654
    %v1242 = vunpack.c.h.b16 %v654
    %v1243 = vunpack.c.l.b16 %v655
    %v1244 = vunpack.c.h.b16 %v655
    %v1245 = vunpack.c.l.b16 %v656
    %v1246 = vunpack.c.h.b16 %v656
    %v1247 = vunpack.c.l.b16 %v657
    %v1248 = vunpack.c.h.b16 %v657
    %v1249 = vunpack.c.l.b16 %v658
    %v1250 = vunpack.c.h.b16 %v658
    %v1251 = vunpack.c.l.b16 %v659
    %v1252 = vunpack.c.h.b16 %v659
    %v1253 = vunpack.c.l.b16 %v660
    %v1254 = vunpack.c.h.b16 %v660
    %v1255 = vunpack.c.l.b16 %v661
    %v1256 = vunpack.c.h.b16 %v661
    %v1257 = vunpack.c.l.b16 %v662
    %v1258 = vunpack.c.h.b16 %v662
    %v1259 = vunpack.c.l.b16 %v663
    %v1260 = vunpack.c.h.b16 %v663
    %v1261 = vunpack.c.l.b16 %v664
    %v1262 = vunpack.c.h.b16 %v664
    %v1263 = vunpack.c.l.b16 %v665
    %v1264 = vunpack.c.h.b16 %v665
    %v1265 = vunpack.c.l.b16 %v666
    %v1266 = vunpack.c.h.b16 %v666
    %v1267 = vunpack.c.l.b16 %v667
    %v1268 = vunpack.c.h.b16 %v667
    %v1269 = vunpack.c.l.b16 %v668
    %v1270 = vunpack.c.h.b16 %v668
    %v1271 = vunpack.c.l.b16 %v669
    %v1272 = vunpack.c.h.b16 %v669
    %v1273 = vunpack.c.l.b16 %v670
    %v1274 = vunpack.c.h.b16 %v670
    %v1275 = vunpack.c.l.b16 %v671
    %v1276 = vunpack.c.h.b16 %v671
    %v1277 = vunpack.c.l.b16 %v672
    %v1278 = vunpack.c.h.b16 %v672
    %v1279 = vunpack.c.l.b16 %v673
    %v1280 = vunpack.c.h.b16 %v673
    %v1281 = vunpack.c.l.b16 %v674
    %v1282 = vunpack.c.h.b16 %v674
    %v1283 = vunpack.c.l.b16 %v675
    %v1284 = vunpack.c.h.b16 %v675
    %v1285 = vunpack.c.l.b16 %v676
    %v1286 = vunpack.c.h.b16 %v676
    %v1287 = vunpack.c.l.b16 %v677
    %v1288 = vunpack.c.h.b16 %v677
    %v1289 = vunpack.c.l.b16 %v678
    %v1290 = vunpack.c.h.b16 %v678
    %v1291 = vunpack.c.l.b16 %v679
    %v1292 = vunpack.c.h.b16 %v679
    %v1293 = vunpack.c.l.b16 %v680
    %v1294 = vunpack.c.h.b16 %v680
    %v1295 = vunpack.c.l.b16 %v681
    %v1296 = vunpack.c.h.b16 %v681
    %v1297 = vunpack.c.l.b16 %v682
    %v1298 = vunpack.c.h.b16 %v682
    %v1299 = vunpack.c.l.b16 %v683
    %v1300 = vunpack.c.h.b16 %v683
    %v1301 = vunpack.c.l.b16 %v684
    %v1302 = vunpack.c.h.b16 %v684
    %v1303 = vunpack.c.l.b16 %v685
    %v1304 = vunpack.c.h.b16 %v685
    %v1305 = vunpack.c.l.b16 %v686
    %v1306 = vunpack.c.h.b16 %v686
    %v1307 = vunpack.c.l.b16 %v687
    %v1308 = vunpack.c.h.b16 %v687
    %v1309 = vunpack.c.l.b16 %v688
    %v1310 = vunpack.c.h.b16 %v688
    %v1311 = vunpack.c.l.b16 %v689
    %v1312 = vunpack.c.h.b16 %v689
    %v1313 = vunpack.c.l.b16 %v690
    %v1314 = vunpack.c.h.b16 %v690
    %v1315 = vunpack.c.l.b16 %v691
    %v1316 = vunpack.c.h.b16 %v691
    %v1317 = vunpack.c.l.b16 %v692
    %v1318 = vunpack.c.h.b16 %v692
    %v1319 = vunpack.c.l.b16 %v693
    %v1320 = vunpack.c.h.b16 %v693
    %v1321 = vunpack.c.l.b16 %v694
    %v1322 = vunpack.c.h.b16 %v694
    %v1323 = vunpack.c.l.b16 %v695
    %v1324 = vunpack.c.h.b16 %v695
    %v1325 = vunpack.c.l.b16 %v696
    %v1326 = vunpack.c.h.b16 %v696
    %v1327 = vunpack.c.l.b16 %v697
    %v1328 = vunpack.c.h.b16 %v697
    %v1329 = vunpack.c.l.b16 %v698
    %v1330 = vunpack.c.h.b16 %v698
    %v1331 = vunpack.c.l.b16 %v699
    %v1332 = vunpack.c.h.b16 %v699
    %v1333 = vunpack.c.l.b16 %v700
    %v1334 = vunpack.c.h.b16 %v700
    %v1335 = vunpack.c.l.b16 %v701
    %v1336 = vunpack.c.h.b16 %v701
    %v1337 = vunpack.c.l.b16 %v702
    %v1338 = vunpack.c.h.b16 %v702
    %v1339 = vunpack.c.l.b16 %v703
    %v1340 = vunpack.c.h.b16 %v703
    %v1341 = vunpack.c.l.b16 %v704
    %v1342 = vunpack.c.h.b16 %v704
    %v1343 = vunpack.c.l.b16 %v705
    %v1344 = vunpack.c.h.b16 %v705
    %v1345 = vunpack.c.l.b16 %v706
    %v1346 = vunpack.c.h.b16 %v706
    %v1347 = vunpack.c.l.b16 %v707
    %v1348 = vunpack.c.h.b16 %v707
    %v1349 = vunpack.c.l.b16 %v708
    %v1350 = vunpack.c.h.b16 %v708
    %v1351 = vunpack.c.l.b16 %v709
    %v1352 = vunpack.c.h.b16 %v709
    %v1353 = vunpack.c.l.b16 %v710
    %v1354 = vunpack.c.h.b16 %v710
    %v1355 = vunpack.c.l.b16 %v711
    %v1356 = vunpack.c.h.b16 %v711
    %v1357 = vunpack.c.l.b16 %v712
    %v1358 = vunpack.c.h.b16 %v712
    %v1359 = vunpack.c.l.b16 %v713
    %v1360 = vunpack.c.h.b16 %v713
    %v1361 = vunpack.c.l.b16 %v714
    %v1362 = vunpack.c.h.b16 %v714
    %v1363 = vunpack.c.l.b16 %v715
    %v1364 = vunpack.c.h.b16 %v715
    %v1365 = vunpack.c.l.b16 %v716
    %v1366 = vunpack.c.h.b16 %v716
    %v1367 = vunpack.c.l.b16 %v717
    %v1368 = vunpack.c.h.b16 %v717
    %v1369 = vunpack.c.l.b16 %v718
    %v1370 = vunpack.c.h.b16 %v718
    %v1371 = vunpack.c.l.b16 %v719
    %v1372 = vunpack.c.h.b16 %v719
    %v1373 = vunpack.c.l.b16 %v720
    %v1374 = vunpack.c.h.b16 %v720
    %v1375 = vunpack.c.l.b16 %v721
    %v1376 = vunpack.c.h.b16 %v721
    %v1377 = vunpack.c.l.b16 %v722
    %v1378 = vunpack.c.h.b16 %v722
    %v1379 = vunpack.c.l.b16 %v723
    %v1380 = vunpack.c.h.b16 %v723
    %v1381 = vunpack.c.l.b16 %v724
    %v1382 = vunpack.c.h.b16 %v724
    %v1383 = vunpack.c.l.b16 %v725
    %v1384 = vunpack.c.h.b16 %v725
    %v1385 = vunpack.c.l.b16 %v726
    %v1386 = vunpack.c.h.b16 %v726
    %v1387 = vunpack.c.l.b16 %v727
    %v1388 = vunpack.c.h.b16 %v727
    %v1389 = vunpack.c.l.b16 %v728
    %v1390 = vunpack.c.h.b16 %v728
    %v1391 = vunpack.c.l.b16 %v729
    %v1392 = vunpack.c.h.b16 %v729
    %v1393 = vunpack.c.l.b16 %v730
    %v1394 = vunpack.c.h.b16 %v730
    %v1395 = vunpack.c.l.b16 %v731
    %v1396 = vunpack.c.h.b16 %v731
    %v1397 = vunpack.c.l.b16 %v732
    %v1398 = vunpack.c.h.b16 %v732
    %v1399 = vunpack.c.l.b16 %v733
    %v1400 = vunpack.c.h.b16 %v733
    %v1401 = vunpack.c.l.b16 %v734
    %v1402 = vunpack.c.h.b16 %v734
    %v1403 = vunpack.c.l.b16 %v735
    %v1404 = vunpack.c.h.b16 %v735
    %v1405 = vunpack.c.l.b16 %v736
    %v1406 = vunpack.c.h.b16 %v736
    %v1407 = vunpack.c.l.b16 %v737
    %v1408 = vunpack.c.h.b16 %v737
    %v1409 = vunpack.c.l.b16 %v738
    %v1410 = vunpack.c.h.b16 %v738
    %v1411 = vunpack.c.l.b16 %v739
    %v1412 = vunpack.c.h.b16 %v739
    %v1413 = vunpack.c.l.b16 %v740
    %v1414 = vunpack.c.h.b16 %v740
    %v1415 = vunpack.c.l.b16 %v741
    %v1416 = vunpack.c.h.b16 %v741
    %v1417 = vunpack.c.l.b16 %v742
    %v1418 = vunpack.c.h.b16 %v742
    %v1419 = vunpack.c.l.b16 %v743
    %v1420 = vunpack.c.h.b16 %v743
    %v1421 = vunpack.c.l.b16 %v744
    %v1422 = vunpack.c.h.b16 %v744
    %v1423 = vunpack.c.l.b16 %v745
    %v1424 = vunpack.c.h.b16 %v745
    %v1425 = vunpack.c.l.b16 %v746
    %v1426 = vunpack.c.h.b16 %v746
    %v1427 = vunpack.c.l.b16 %v747
    %v1428 = vunpack.c.h.b16 %v747
    %v1429 = vunpack.c.l.b16 %v748
    %v1430 = vunpack.c.h.b16 %v748
    %v1431 = vunpack.c.l.b16 %v749
    %v1432 = vunpack.c.h.b16 %v749
    %v1433 = vunpack.c.l.b16 %v750
    %v1434 = vunpack.c.h.b16 %v750
    %v1435 = vunpack.c.l.b16 %v751
    %v1436 = vunpack.c.h.b16 %v751
    %v1437 = vunpack.c.l.b16 %v752
    %v1438 = vunpack.c.h.b16 %v752
    %v1439 = vunpack.c.l.b16 %v753
    %v1440 = vunpack.c.h.b16 %v753
    %v1441 = vunpack.c.l.b16 %v754
    %v1442 = vunpack.c.h.b16 %v754
    %v1443 = vunpack.c.l.b16 %v755
    %v1444 = vunpack.c.h.b16 %v755
    %v1445 = vunpack.c.l.b16 %v756
    %v1446 = vunpack.c.h.b16 %v756
    %v1447 = vunpack.c.l.b16 %v757
    %v1448 = vunpack.c.h.b16 %v757
    %v1449 = vunpack.c.l.b16 %v758
    %v1450 = vunpack.c.h.b16 %v758
    %v1451 = vunpack.c.l.b16 %v759
    %v1452 = vunpack.c.h.b16 %v759
    %v1453 = vunpack.c.l.b16 %v760
    %v1454 = vunpack.c.h.b16 %v760
    %v1455 = vunpack.c.l.b16 %v761
    %v1456 = vunpack.c.h.b16 %v761
    %v1457 = vunpack.c.l.b16 %v762
    %v1458 = vunpack.c.h.b16 %v762
    %v1459 = vunpack.c.l.b16 %v763
    %v1460 = vunpack.c.h.b16 %v763
    %v1461 = vunpack.c.l.b16 %v764
    %v1462 = vunpack.c.h.b16 %v764
    %v1463 = vunpack.c.l.b16 %v765
    %v1464 = vunpack.c.h.b16 %v765
    %v1465 = vunpack.c.l.b16 %v766
    %v1466 = vunpack.c.h.b16 %v766
    %v1467 = vunpack.c.l.b16 %v767
    %v1468 = vunpack.c.h.b16 %v767
    %v1469 = vunpack.c.l.b16 %v768
    %v1470 = vunpack.c.h.b16 %v768
    %v1471 = vunpack.c.l.b16 %v769
    %v1472 = vunpack.c.h.b16 %v769
    %v1473 = vunpack.c.l.b16 %v770
    %v1474 = vunpack.c.h.b16 %v770
    %v1475 = vunpack.c.l.b16 %v771
    %v1476 = vunpack.c.h.b16 %v771
    %v1477 = vunpack.c.l.b16 %v772
    %v1478 = vunpack.c.h.b16 %v772
    %v1479 = vunpack.c.l.b16 %v773
    %v1480 = vunpack.c.h.b16 %v773
    %v1481 = vunpack.c.l.b16 %v774
    %v1482 = vunpack.c.h.b16 %v774
    %v1483 = vunpack.c.l.b16 %v775
    %v1484 = vunpack.c.h.b16 %v775
    %v1485 = vunpack.c.l.b16 %v776
    %v1486 = vunpack.c.h.b16 %v776
    %v1487 = vunpack.c.l.b16 %v777
    %v1488 = vunpack.c.h.b16 %v777
    %v1489 = vunpack.c.l.b16 %v778
    %v1490 = vunpack.c.h.b16 %v778
    %v1491 = vunpack.c.l.b16 %v779
    %v1492 = vunpack.c.h.b16 %v779
    %v1493 = vunpack.c.l.b16 %v780
    %v1494 = vunpack.c.h.b16 %v780
    %v1495 = vunpack.c.l.b16 %v781
    %v1496 = vunpack.c.h.b16 %v781
    %v1497 = vunpack.c.l.b16 %v782
    %v1498 = vunpack.c.h.b16 %v782
    %v1499 = vunpack.c.l.b16 %v783
    %v1500 = vunpack.c.h.b16 %v783
    %v1501 = vunpack.c.l.b16 %v784
    %v1502 = vunpack.c.h.b16 %v784
    %v1503 = vunpack.c.l.b16 %v785
    %v1504 = vunpack.c.h.b16 %v785
    %v1505 = vunpack.c.l.b16 %v786
    %v1506 = vunpack.c.h.b16 %v786
    %v1507 = vunpack.c.l.b16 %v787
    %v1508 = vunpack.c.h.b16 %v787
    %v1509 = vunpack.c.l.b16 %v788
    %v1510 = vunpack.c.h.b16 %v788
    %v1511 = vunpack.c.l.b16 %v789
    %v1512 = vunpack.c.h.b16 %v789
    %v1513 = vunpack.c.l.b16 %v790
    %v1514 = vunpack.c.h.b16 %v790
    %v1515 = vunpack.c.l.b16 %v791
    %v1516 = vunpack.c.h.b16 %v791
    %v1517 = vunpack.c.l.b16 %v792
    %v1518 = vunpack.c.h.b16 %v792
    %v1519 = vunpack.c.l.b16 %v793
    %v1520 = vunpack.c.h.b16 %v793
    %v1521 = vunpack.c.l.b16 %v794
    %v1522 = vunpack.c.h.b16 %v794
    %v1523 = vunpack.c.l.b16 %v795
    %v1524 = vunpack.c.h.b16 %v795
    %v1525 = vunpack.c.l.b16 %v796
    %v1526 = vunpack.c.h.b16 %v796
    %v1527 = vunpack.c.l.b16 %v797
    %v1528 = vunpack.c.h.b16 %v797
    %v1529 = vunpack.c.l.b16 %v798
    %v1530 = vunpack.c.h.b16 %v798
    %v1531 = vunpack.c.l.b16 %v799
    %v1532 = vunpack.c.h.b16 %v799
    %v1533 = vunpack.c.l.b16 %v800
    %v1534 = vunpack.c.h.b16 %v800
    %v1535 = vunpack.c.l.b16 %v801
    %v1536 = vunpack.c.h.b16 %v801
    %v1537 = vunpack.c.l.b16 %v802
    %v1538 = vunpack.c.h.b16 %v802
    %v1539 = vunpack.c.l.b16 %v803
    %v1540 = vunpack.c.h.b16 %v803
    %v1541 = vunpack.c.l.b16 %v804
    %v1542 = vunpack.c.h.b16 %v804
    %v1543 = vunpack.c.l.b16 %v805
    %v1544 = vunpack.c.h.b16 %v805
    %v1545 = vunpack.c.l.b16 %v806
    %v1546 = vunpack.c.h.b16 %v806
    %v1547 = vunpack.c.l.b16 %v807
    %v1548 = vunpack.c.h.b16 %v807
    %v1549 = vunpack.c.l.b16 %v808
    %v1550 = vunpack.c.h.b16 %v808
    %v1551 = vunpack.c.l.b16 %v809
    %v1552 = vunpack.c.h.b16 %v809
    %v1553 = vunpack.c.l.b16 %v810
    %v1554 = vunpack.c.h.b16 %v810
    %v1555 = vunpack.c.l.b16 %v811
    %v1556 = vunpack.c.h.b16 %v811
    %v1557 = vunpack.c.l.b16 %v812
    %v1558 = vunpack.c.h.b16 %v812
    %v1559 = vunpack.c.l.b16 %v813
    %v1560 = vunpack.c.h.b16 %v813
    %v1561 = vunpack.c.l.b16 %v814
    %v1562 = vunpack.c.h.b16 %v814
    %v1563 = vunpack.c.l.b16 %v815
    %v1564 = vunpack.c.h.b16 %v815
    %v1565 = vunpack.c.l.b16 %v816
    %v1566 = vunpack.c.h.b16 %v816
    %v1567 = vunpack.c.l.b16 %v817
    %v1568 = vunpack.c.h.b16 %v817
    %v1569 = vunpack.c.l.b16 %v818
    %v1570 = vunpack.c.h.b16 %v818
    %v1571 = vunpack.c.l.b16 %v819
    %v1572 = vunpack.c.h.b16 %v819
    %v1573 = vunpack.c.l.b16 %v820
    %v1574 = vunpack.c.h.b16 %v820
    %v1575 = vunpack.c.l.b16 %v821
    %v1576 = vunpack.c.h.b16 %v821
    %v1577 = vunpack.c.l.b16 %v822
    %v1578 = vunpack.c.h.b16 %v822
    %v1579 = vunpack.c.l.b16 %v823
    %v1580 = vunpack.c.h.b16 %v823
    %v1581 = vunpack.c.l.b16 %v824
    %v1582 = vunpack.c.h.b16 %v824
    %v1583 = vunpack.c.l.b16 %v825
    %v1584 = vunpack.c.h.b16 %v825
    %v1585 = vunpack.c.l.b16 %v826
    %v1586 = vunpack.c.h.b16 %v826
    %v1587 = vunpack.c.l.b16 %v827
    %v1588 = vunpack.c.h.b16 %v827
    %v1589 = vunpack.c.l.b16 %v828
    %v1590 = vunpack.c.h.b16 %v828
    %v1591 = vunpack.c.l.b16 %v829
    %v1592 = vunpack.c.h.b16 %v829
    %v1593 = vunpack.c.l.b16 %v830
    %v1594 = vunpack.c.h.b16 %v830
    %v1595 = vunpack.c.l.b16 %v831
    %v1596 = vunpack.c.h.b16 %v831
    %v1597 = vunpack.c.l.b16 %v832
    %v1598 = vunpack.c.h.b16 %v832
    %v1599 = vunpack.c.l.b16 %v833
    %v1600 = vunpack.c.h.b16 %v833
    %v1601 = vunpack.c.l.b16 %v834
    %v1602 = vunpack.c.h.b16 %v834
    %v1603 = vunpack.c.l.b16 %v835
    %v1604 = vunpack.c.h.b16 %v835
    %v1605 = vunpack.c.l.b16 %v836
    %v1606 = vunpack.c.h.b16 %v836
    %v1607 = vunpack.c.l.b16 %v837
    %v1608 = vunpack.c.h.b16 %v837
    %v1609 = vunpack.c.l.b16 %v838
    %v1610 = vunpack.c.h.b16 %v838
    %v1611 = vunpack.c.l.b16 %v839
    %v1612 = vunpack.c.h.b16 %v839
    %v1613 = vunpack.c.l.b16 %v840
    %v1614 = vunpack.c.h.b16 %v840
    %v1615 = vunpack.c.l.b16 %v841
    %v1616 = vunpack.c.h.b16 %v841
    %v1617 = vunpack.c.l.b16 %v842
    %v1618 = vunpack.c.h.b16 %v842
    %v1619 = vunpack.c.l.b16 %v843
    %v1620 = vunpack.c.h.b16 %v843
    %v1621 = vunpack.c.l.b16 %v844
    %v1622 = vunpack.c.h.b16 %v844
    %v1623 = vunpack.c.l.b16 %v845
    %v1624 = vunpack.c.h.b16 %v845
    %v1625 = vunpack.c.l.b16 %v846
    %v1626 = vunpack.c.h.b16 %v846
    %v1627 = vunpack.c.l.b16 %v847
    %v1628 = vunpack.c.h.b16 %v847
    %v1629 = vunpack.c.l.b16 %v848
    %v1630 = vunpack.c.h.b16 %v848
    %v1631 = vunpack.c.l.b16 %v849
    %v1632 = vunpack.c.h.b16 %v849
    %v1633 = vunpack.c.l.b16 %v850
    %v1634 = vunpack.c.h.b16 %v850
    %v1635 = vunpack.c.l.b16 %v851
    %v1636 = vunpack.c.h.b16 %v851
    %v1637 = vunpack.c.l.b16 %v852
    %v1638 = vunpack.c.h.b16 %v852
    %v1639 = vunpack.c.l.b16 %v853
    %v1640 = vunpack.c.h.b16 %v853
    %v1641 = vunpack.c.l.b16 %v854
    %v1642 = vunpack.c.h.b16 %v854
    %v1643 = vunpack.c.l.b16 %v855
    %v1644 = vunpack.c.h.b16 %v855
    %v1645 = vunpack.c.l.b16 %v856
    %v1646 = vunpack.c.h.b16 %v856
    %v1647 = vunpack.c.l.b16 %v857
    %v1648 = vunpack.c.h.b16 %v857
    %v1649 = vunpack.c.l.b16 %v858
    %v1650 = vunpack.c.h.b16 %v858
    %v1651 = vunpack.c.l.b16 %v859
    %v1652 = vunpack.c.h.b16 %v859
    %v1653 = vunpack.c.l.b16 %v860
    %v1654 = vunpack.c.h.b16 %v860
    %v1655 = vunpack.c.l.b16 %v861
    %v1656 = vunpack.c.h.b16 %v861
    %v1657 = vunpack.c.l.b16 %v862
    %v1658 = vunpack.c.h.b16 %v862
    %v1659 = vunpack.c.l.b16 %v863
    %v1660 = vunpack.c.h.b16 %v863
    %v1661 = vunpack.c.l.b16 %v864
    %v1662 = vunpack.c.h.b16 %v864
    %v1663 = vunpack.c.l.b16 %v865
    %v1664 = vunpack.c.h.b16 %v865
    %v1665 = vunpack.c.l.b16 %v866
    %v1666 = vunpack.c.h.b16 %v866
    %v1667 = vunpack.c.l.b16 %v867
    %v1668 = vunpack.c.h.b16 %v867
    %v1669 = vunpack.c.l.b16 %v868
    %v1670 = vunpack.c.h.b16 %v868
    %v1671 = vunpack.c.l.b16 %v869
    %v1672 = vunpack.c.h.b16 %v869
    %v1673 = vunpack.c.l.b16 %v870
    %v1674 = vunpack.c.h.b16 %v870
    %v1675 = vunpack.c.l.b16 %v871
    %v1676 = vunpack.c.h.b16 %v871
    %v1677 = vunpack.c.l.b16 %v872
    %v1678 = vunpack.c.h.b16 %v872
    %v1679 = vunpack.c.l.b16 %v873
    %v1680 = vunpack.c.h.b16 %v873
    %v1681 = vunpack.c.l.b16 %v874
    %v1682 = vunpack.c.h.b16 %v874
    %v1683 = vunpack.c.l.b16 %v875
    %v1684 = vunpack.c.h.b16 %v875
    %v1685 = vunpack.c.l.b16 %v876
    %v1686 = vunpack.c.h.b16 %v876
    %v1687 = vpack.c.b16 %v1183, %v1175
    %v1688 = vpack.c.b16 %v1184, %v1176
    %v1689 = vpack.c.b16 %v1185, %v1177
    %v1690 = vpack.c.b16 %v1186, %v1178
    %v1691 = vpack.c.b16 %v1187, %v1179
    %v1692 = vpack.c.b16 %v1188, %v1180
    %v1693 = vpack.c.b16 %v1189, %v1181
    %v1694 = vpack.c.b16 %v1190, %v1182
    %v1695 = vpack.c.b16 %v1199, %v1191
    %v1696 = vpack.c.b16 %v1200, %v1192
    %v1697 = vpack.c.b16 %v1201, %v1193
    %v1698 = vpack.c.b16 %v1202, %v1194
    %v1699 = vpack.c.b16 %v1203, %v1195
    %v1700 = vpack.c.b16 %v1204, %v1196
    %v1701 = vpack.c.b16 %v1205, %v1197
    %v1702 = vpack.c.b16 %v1206, %v1198
    %v1703 = vpack.c.b16 %v1215, %v1207
    %v1704 = vpack.c.b16 %v1216, %v1208
    %v1705 = vpack.c.b16 %v1217, %v1209
    %v1706 = vpack.c.b16 %v1218, %v1210
    %v1707 = vpack.c.b16 %v1219, %v1211
    %v1708 = vpack.c.b16 %v1220, %v1212
    %v1709 = vpack.c.b16 %v1221, %v1213
    %v1710 = vpack.c.b16 %v1222, %v1214
    %v1711 = vpack.c.b16 %v1231, %v1223
    %v1712 = vpack.c.b16 %v1232, %v1224
    %v1713 = vpack.c.b16 %v1233, %v1225
    %v1714 = vpack.c.b16 %v1234, %v1226
    %v1715 = vpack.c.b16 %v1235, %v1227
    %v1716 = vpack.c.b16 %v1236, %v1228
    %v1717 = vpack.c.b16 %v1237, %v1229
    %v1718 = vpack.c.b16 %v1238, %v1230
    %v1719 = vpack.c.b16 %v1247, %v1239
    %v1720 = vpack.c.b16 %v1248, %v1240
    %v1721 = vpack.c.b16 %v1249, %v1241
    %v1722 = vpack.c.b16 %v1250, %v1242
    %v1723 = vpack.c.b16 %v1251, %v1243
    %v1724 = vpack.c.b16 %v1252, %v1244
    %v1725 = vpack.c.b16 %v1253, %v1245
    %v1726 = vpack.c.b16 %v1254, %v1246
    %v1727 = vpack.c.b16 %v1263, %v1255
    %v1728 = vpack.c.b16 %v1264, %v1256
    %v1729 = vpack.c.b16 %v1265, %v1257
    %v1730 = vpack.c.b16 %v1266, %v1258
    %v1731 = vpack.c.b16 %v1267, %v1259
    %v1732 = vpack.c.b16 %v1268, %v1260
    %v1733 = vpack.c.b16 %v1269, %v1261
    %v1734 = vpack.c.b16 %v1270, %v1262
    %v1735 = vpack.c.b16 %v1279, %v1271
    %v1736 = vpack.c.b16 %v1280, %v1272
    %v1737 = vpack.c.b16 %v1281, %v1273
    %v1738 = vpack.c.b16 %v1282, %v1274
    %v1739 = vpack.c.b16 %v1283, %v1275
    %v1740 = vpack.c.b16 %v1284, %v1276
    %v1741 = vpack.c.b16 %v1285, %v1277
    %v1742 = vpack.c.b16 %v1286, %v1278
    %v1743 = vpack.c.b16 %v1295, %v1287
    %v1744 = vpack.c.b16 %v1296, %v1288
    %v1745 = vpack.c.b16 %v1297, %v1289
    %v1746 = vpack.c.b16 %v1298, %v1290
    %v1747 = vpack.c.b16 %v1299, %v1291
    %v1748 = vpack.c.b16 %v1300, %v1292
    %v1749 = vpack.c.b16 %v1301, %v1293
    %v1750 = vpack.c.b16 %v1302, %v1294
    %v1751 = vpack.c.b16 %v1311, %v1303
    %v1752 = vpack.c.b16 %v1312, %v1304
    %v1753 = vpack.c.b16 %v1313, %v1305
    %v1754 = vpack.c.b16 %v1314, %v1306
    %v1755 = vpack.c.b16 %v1315, %v1307
    %v1756 = vpack.c.b16 %v1316, %v1308
    %v1757 = vpack.c.b16 %v1317, %v1309
    %v1758 = vpack.c.b16 %v1318, %v1310
    %v1759 = vpack.c.b16 %v1327, %v1319
    %v1760 = vpack.c.b16 %v1328, %v1320
    %v1761 = vpack.c.b16 %v1329, %v1321
    %v1762 = vpack.c.b16 %v1330, %v1322
    %v1763 = vpack.c.b16 %v1331, %v1323
    %v1764 = vpack.c.b16 %v1332, %v1324
    %v1765 = vpack.c.b16 %v1333, %v1325
    %v1766 = vpack.c.b16 %v1334, %v1326
    %v1767 = vpack.c.b16 %v1343, %v1335
    %v1768 = vpack.c.b16 %v1344, %v1336
    %v1769 = vpack.c.b16 %v1345, %v1337
    %v1770 = vpack.c.b16 %v1346, %v1338
    %v1771 = vpack.c.b16 %v1347, %v1339
    %v1772 = vpack.c.b16 %v1348, %v1340
    %v1773 = vpack.c.b16 %v1349, %v1341
    %v1774 = vpack.c.b16 %v1350, %v1342
    %v1775 = vpack.c.b16 %v1359, %v1351
    %v1776 = vpack.c.b16 %v1360, %v1352
    %v1777 = vpack.c.b16 %v1361, %v1353
    %v1778 = vpack.c.b16 %v1362, %v1354
    %v1779 = vpack.c.b16 %v1363, %v1355
    %v1780 = vpack.c.b16 %v1364, %v1356
    %v1781 = vpack.c.b16 %v1365, %v1357
    %v1782 = vpack.c.b16 %v1366, %v1358
    %v1783 = vpack.c.b16 %v1375, %v1367
    %v1784 = vpack.c.b16 %v1376, %v1368
    %v1785 = vpack.c.b16 %v1377, %v1369
    %v1786 = vpack.c.b16 %v1378, %v1370
    %v1787 = vpack.c.b16 %v1379, %v1371
    %v1788 = vpack.c.b16 %v1380, %v1372
    %v1789 = vpack.c.b16 %v1381, %v1373
    %v1790 = vpack.c.b16 %v1382, %v1374
    %v1791 = vpack.c.b16 %v1391, %v1383
    %v1792 = vpack.c.b16 %v1392, %v1384
    %v1793 = vpack.c.b16 %v1393, %v1385
    %v1794 = vpack.c.b16 %v1394, %v1386
    %v1795 = vpack.c.b16 %v1395, %v1387
    %v1796 = vpack.c.b16 %v1396, %v1388
    %v1797 = vpack.c.b16 %v1397, %v1389
    %v1798 = vpack.c.b16 %v1398, %v1390
    %v1799 = vpack.c.b16 %v1407, %v1399
    %v1800 = vpack.c.b16 %v1408, %v1400
    %v1801 = vpack.c.b16 %v1409, %v1401
    %v1802 = vpack.c.b16 %v1410, %v1402
    %v1803 = vpack.c.b16 %v1411, %v1403
    %v1804 = vpack.c.b16 %v1412, %v1404
    %v1805 = vpack.c.b16 %v1413, %v1405
    %v1806 = vpack.c.b16 %v1414, %v1406
    %v1807 = vpack.c.b16 %v1423, %v1415
    %v1808 = vpack.c.b16 %v1424, %v1416
    %v1809 = vpack.c.b16 %v1425, %v1417
    %v1810 = vpack.c.b16 %v1426, %v1418
    %v1811 = vpack.c.b16 %v1427, %v1419
    %v1812 = vpack.c.b16 %v1428, %v1420
    %v1813 = vpack.c.b16 %v1429, %v1421
    %v1814 = vpack.c.b16 %v1430, %v1422
    %v1815 = vpack.c.b16 %v1439, %v1431
    %v1816 = vpack.c.b16 %v1440, %v1432
    %v1817 = vpack.c.b16 %v1441, %v1433
    %v1818 = vpack.c.b16 %v1442, %v1434
    %v1819 = vpack.c.b16 %v1443, %v1435
    %v1820 = vpack.c.b16 %v1444, %v1436
    %v1821 = vpack.c.b16 %v1445, %v1437
    %v1822 = vpack.c.b16 %v1446, %v1438
    %v1823 = vpack.c.b16 %v1455, %v1447
    %v1824 = vpack.c.b16 %v1456, %v1448
    %v1825 = vpack.c.b16 %v1457, %v1449
    %v1826 = vpack.c.b16 %v1458, %v1450
    %v1827 = vpack.c.b16 %v1459, %v1451
    %v1828 = vpack.c.b16 %v1460, %v1452
    %v1829 = vpack.c.b16 %v1461, %v1453
    %v1830 = vpack.c.b16 %v1462, %v1454
    %v1831 = vpack.c.b16 %v1471, %v1463
    %v1832 = vpack.c.b16 %v1472, %v1464
    %v1833 = vpack.c.b16 %v1473, %v1465
    %v1834 = vpack.c.b16 %v1474, %v1466
    %v1835 = vpack.c.b16 %v1475, %v1467
    %v1836 = vpack.c.b16 %v1476, %v1468
    %v1837 = vpack.c.b16 %v1477, %v1469
    %v1838 = vpack.c.b16 %v1478, %v1470
    %v1839 = vpack.c.b16 %v1487, %v1479
    %v1840 = vpack.c.b16 %v1488, %v1480
    %v1841 = vpack.c.b16 %v1489, %v1481
    %v1842 = vpack.c.b16 %v1490, %v1482
    %v1843 = vpack.c.b16 %v1491, %v1483
    %v1844 = vpack.c.b16 %v1492, %v1484
    %v1845 = vpack.c.b16 %v1493, %v1485
    %v1846 = vpack.c.b16 %v1494, %v1486
    %v1847 = vpack.c.b16 %v1503, %v1495
    %v1848 = vpack.c.b16 %v1504, %v1496
    %v1849 = vpack.c.b16 %v1505, %v1497
    %v1850 = vpack.c.b16 %v1506, %v1498
    %v1851 = vpack.c.b16 %v1507, %v1499
    %v1852 = vpack.c.b16 %v1508, %v1500
    %v1853 = vpack.c.b16 %v1509, %v1501
    %v1854 = vpack.c.b16 %v1510, %v1502
    %v1855 = vpack.c.b16 %v1519, %v1511
    %v1856 = vpack.c.b16 %v1520, %v1512
    %v1857 = vpack.c.b16 %v1521, %v1513
    %v1858 = vpack.c.b16 %v1522, %v1514
    %v1859 = vpack.c.b16 %v1523, %v1515
    %v1860 = vpack.c.b16 %v1524, %v1516
    %v1861 = vpack.c.b16 %v1525, %v1517
    %v1862 = vpack.c.b16 %v1526, %v1518
    %v1863 = vpack.c.b16 %v1535, %v1527
    %v1864 = vpack.c.b16 %v1536, %v1528
    %v1865 = vpack.c.b16 %v1537, %v1529
    %v1866 = vpack.c.b16 %v1538, %v1530
    %v1867 = vpack.c.b16 %v1539, %v1531
    %v1868 = vpack.c.b16 %v1540, %v1532
    %v1869 = vpack.c.b16 %v1541, %v1533
    %v1870 = vpack.c.b16 %v1542, %v1534
    %v1871 = vpack.c.b16 %v1551, %v1543
    %v1872 = vpack.c.b16 %v1552, %v1544
    %v1873 = vpack.c.b16 %v1553, %v1545
    %v1874 = vpack.c.b16 %v1554, %v1546
    %v1875 = vpack.c.b16 %v1555, %v1547
    %v1876 = vpack.c.b16 %v1556, %v1548
    %v1877 = vpack.c.b16 %v1557, %v1549
    %v1878 = vpack.c.b16 %v1558, %v1550
    %v1879 = vpack.c.b16 %v1567, %v1559
    %v1880 = vpack.c.b16 %v1568, %v1560
    %v1881 = vpack.c.b16 %v1569, %v1561
    %v1882 = vpack.c.b16 %v1570, %v1562
    %v1883 = vpack.c.b16 %v1571, %v1563
    %v1884 = vpack.c.b16 %v1572, %v1564
    %v1885 = vpack.c.b16 %v1573, %v1565
    %v1886 = vpack.c.b16 %v1574, %v1566
    %v1887 = vpack.c.b16 %v1583, %v1575
    %v1888 = vpack.c.b16 %v1584, %v1576
    %v1889 = vpack.c.b16 %v1585, %v1577
    %v1890 = vpack.c.b16 %v1586, %v1578
    %v1891 = vpack.c.b16 %v1587, %v1579
    %v1892 = vpack.c.b16 %v1588, %v1580
    %v1893 = vpack.c.b16 %v1589, %v1581
    %v1894 = vpack.c.b16 %v1590, %v1582
    %v1895 = vpack.c.b16 %v1599, %v1591
    %v1896 = vpack.c.b16 %v1600, %v1592
    %v1897 = vpack.c.b16 %v1601, %v1593
    %v1898 = vpack.c.b16 %v1602, %v1594
    %v1899 = vpack.c.b16 %v1603, %v1595
    %v1900 = vpack.c.b16 %v1604, %v1596
    %v1901 = vpack.c.b16 %v1605, %v1597
    %v1902 = vpack.c.b16 %v1606, %v1598
    %v1903 = vpack.c.b16 %v1615, %v1607
    %v1904 = vpack.c.b16 %v1616, %v1608
    %v1905 = vpack.c.b16 %v1617, %v1609
    %v1906 = vpack.c.b16 %v1618, %v1610
    %v1907 = vpack.c.b16 %v1619, %v1611
    %v1908 = vpack.c.b16 %v1620, %v1612
    %v1909 = vpack.c.b16 %v1621, %v1613
    %v1910 = vpack.c.b16 %v1622, %v1614
    %v1911 = vpack.c.b16 %v1631, %v1623
    %v1912 = vpack.c.b16 %v1632, %v1624
    %v1913 = vpack.c.b16 %v1633, %v1625
    %v1914 = vpack.c.b16 %v1634, %v1626
    %v1915 = vpack.c.b16 %v1635, %v1627
    %v1916 = vpack.c.b16 %v1636, %v1628
    %v1917 = vpack.c.b16 %v1637, %v1629
    %v1918 = vpack.c.b16 %v1638, %v1630
    %v1919 = vpack.c.b16 %v1647, %v1639
    %v1920 = vpack.c.b16 %v1648, %v1640
    %v1921 = vpack.c.b16 %v1649, %v1641
    %v1922 = vpack.c.b16 %v1650, %v1642
    %v1923 = vpack.c.b16 %v1651, %v1643
    %v1924 = vpack.c.b16 %v1652, %v1644
    %v1925 = vpack.c.b16 %v1653, %v1645
    %v1926 = vpack.c.b16 %v1654, %v1646
    %v1927 = vpack.c.b16 %v1663, %v1655
    %v1928 = vpack.c.b16 %v1664, %v1656
    %v1929 = vpack.c.b16 %v1665, %v1657
    %v1930 = vpack.c.b16 %v1666, %v1658
    %v1931 = vpack.c.b16 %v1667, %v1659
    %v1932 = vpack.c.b16 %v1668, %v1660
    %v1933 = vpack.c.b16 %v1669, %v1661
    %v1934 = vpack.c.b16 %v1670, %v1662
    %v1935 = vpack.c.b16 %v1679, %v1671
    %v1936 = vpack.c.b16 %v1680, %v1672
    %v1937 = vpack.c.b16 %v1681, %v1673
    %v1938 = vpack.c.b16 %v1682, %v1674
    %v1939 = vpack.c.b16 %v1683, %v1675
    %v1940 = vpack.c.b16 %v1684, %v1676
    %v1941 = vpack.c.b16 %v1685, %v1677
    %v1942 = vpack.c.b16 %v1686, %v1678
    %2199 = vmatprep.subr.bf16.mxu0 %v1744
    %2200 = vmatpush1.bf16.msra.mxu0 %v1743
    %2201 = vmatprep.subr.bf16.mxu0 %v1736
    %2202 = vmatpush1.bf16.msra.mxu0 %v1735
    %2203 = vmatprep.subr.bf16.mxu0 %v1728
    %2204 = vmatpush1.bf16.msra.mxu0 %v1727
    %2205 = vmatprep.subr.bf16.mxu0 %v1720
    %2206 = vmatpush1.bf16.msra.mxu0 %v1719
    %2207 = vmatprep.subr.bf16.mxu0 %v1712
    %2208 = vmatpush1.bf16.msra.mxu0 %v1711
    %2209 = vmatprep.subr.bf16.mxu0 %v1704
    %2210 = vmatpush1.bf16.msra.mxu0 %v1703
    %2211 = vmatprep.subr.bf16.mxu0 %v1696
    %2212 = vmatpush1.bf16.msra.mxu0 %v1695
    %2213 = vmatprep.subr.bf16.mxu0 %v1688
    %2214 = vmatpush1.bf16.msra.mxu0 %v1687
    %2215 = vmatprep.subr.bf16.mxu0 %v1808
    %2216 = vmatpush2.bf16.msra.mxu0 %v1807
    %2217 = vmatprep.subr.bf16.mxu0 %v1800
    %2218 = vmatpush2.bf16.msra.mxu0 %v1799
    %2219 = vmatprep.subr.bf16.mxu0 %v1792
    %2220 = vmatpush2.bf16.msra.mxu0 %v1791
    %2221 = vmatprep.subr.bf16.mxu0 %v1784
    %2222 = vmatpush2.bf16.msra.mxu0 %v1783
    %2223 = vmatprep.subr.bf16.mxu0 %v1776
    %2224 = vmatpush2.bf16.msra.mxu0 %v1775
    %2225 = vmatprep.subr.bf16.mxu0 %v1768
    %2226 = vmatpush2.bf16.msra.mxu0 %v1767
    %2227 = vmatprep.subr.bf16.mxu0 %v1760
    %2228 = vmatpush2.bf16.msra.mxu0 %v1759
    %2229 = vmatprep.subr.bf16.mxu0 %v1752
    %2230 = vmatpush2.bf16.msra.mxu0 %v1751
    %2231 = vmatprep.mubr.bf16.mxu0 %v618
    %2232 = vmatmul.mubr.bf16.gmra.mxu0 %v617
    %v2233 = vpop.f32.mrf.mxu0
    %v2234 = vadd.f32 %v882, %v2233
    %v2235 = vpop.f32.mrf.mxu0
    %v2236 = vadd.f32 %v886, %v2235
    %v2237 = vpop.f32.mrf.mxu0
    %v2238 = vadd.f32 %v882, %v2237
    %v2239 = vpop.f32.mrf.mxu0
    %v2240 = vadd.f32 %v886, %v2239
    %2241 = vdwg.mxu0
    %2242 = vmatprep.subr.bf16.mxu0 %v1872
    %2243 = vmatpush1.bf16.msra.mxu0 %v1871
    %2244 = vmatprep.subr.bf16.mxu0 %v1864
    %2245 = vmatpush1.bf16.msra.mxu0 %v1863
    %2246 = vmatprep.subr.bf16.mxu0 %v1856
    %2247 = vmatpush1.bf16.msra.mxu0 %v1855
    %2248 = vmatprep.subr.bf16.mxu0 %v1848
    %2249 = vmatpush1.bf16.msra.mxu0 %v1847
    %2250 = vmatprep.subr.bf16.mxu0 %v1840
    %2251 = vmatpush1.bf16.msra.mxu0 %v1839
    %2252 = vmatprep.subr.bf16.mxu0 %v1832
    %2253 = vmatpush1.bf16.msra.mxu0 %v1831
    %2254 = vmatprep.subr.bf16.mxu0 %v1824
    %2255 = vmatpush1.bf16.msra.mxu0 %v1823
    %2256 = vmatprep.subr.bf16.mxu0 %v1816
    %2257 = vmatpush1.bf16.msra.mxu0 %v1815
    %2258 = vmatprep.subr.bf16.mxu0 %v1936
    %2259 = vmatpush2.bf16.msra.mxu0 %v1935
    %2260 = vmatprep.subr.bf16.mxu0 %v1928
    %2261 = vmatpush2.bf16.msra.mxu0 %v1927
    %2262 = vmatprep.subr.bf16.mxu0 %v1920
    %2263 = vmatpush2.bf16.msra.mxu0 %v1919
    %2264 = vmatprep.subr.bf16.mxu0 %v1912
    %2265 = vmatpush2.bf16.msra.mxu0 %v1911
    %2266 = vmatprep.subr.bf16.mxu0 %v1904
    %2267 = vmatpush2.bf16.msra.mxu0 %v1903
    %2268 = vmatprep.subr.bf16.mxu0 %v1896
    %2269 = vmatpush2.bf16.msra.mxu0 %v1895
    %2270 = vmatprep.subr.bf16.mxu0 %v1888
    %2271 = vmatpush2.bf16.msra.mxu0 %v1887
    %2272 = vmatprep.subr.bf16.mxu0 %v1880
    %2273 = vmatpush2.bf16.msra.mxu0 %v1879
    %2274 = vmatprep.mubr.bf16.mxu0 %v620
    %2275 = vmatmul.mubr.bf16.gmra.mxu0 %v619
    %v2276 = vpop.f32.mrf.mxu0
    %v2277 = vadd.f32 %v2234, %v2276
    %v2278 = vpop.f32.mrf.mxu0
    %v2279 = vadd.f32 %v2236, %v2278
    %v2280 = vpop.f32.mrf.mxu0
    %v2281 = vadd.f32 %v2238, %v2280
    %v2282 = vpop.f32.mrf.mxu0
    %v2283 = vadd.f32 %v2240, %v2282
    %2284 = vdwg.mxu0
    %2285 = vmatprep.subr.bf16.mxu0 %v1746
    %2286 = vmatpush1.bf16.msra.mxu0 %v1745
    %2287 = vmatprep.subr.bf16.mxu0 %v1738
    %2288 = vmatpush1.bf16.msra.mxu0 %v1737
    %2289 = vmatprep.subr.bf16.mxu0 %v1730
    %2290 = vmatpush1.bf16.msra.mxu0 %v1729
    %2291 = vmatprep.subr.bf16.mxu0 %v1722
    %2292 = vmatpush1.bf16.msra.mxu0 %v1721
    %2293 = vmatprep.subr.bf16.mxu0 %v1714
    %2294 = vmatpush1.bf16.msra.mxu0 %v1713
    %2295 = vmatprep.subr.bf16.mxu0 %v1706
    %2296 = vmatpush1.bf16.msra.mxu0 %v1705
    %2297 = vmatprep.subr.bf16.mxu0 %v1698
    %2298 = vmatpush1.bf16.msra.mxu0 %v1697
    %2299 = vmatprep.subr.bf16.mxu0 %v1690
    %2300 = vmatpush1.bf16.msra.mxu0 %v1689
    %2301 = vmatprep.subr.bf16.mxu0 %v1810
    %2302 = vmatpush2.bf16.msra.mxu0 %v1809
    %2303 = vmatprep.subr.bf16.mxu0 %v1802
    %2304 = vmatpush2.bf16.msra.mxu0 %v1801
    %2305 = vmatprep.subr.bf16.mxu0 %v1794
    %2306 = vmatpush2.bf16.msra.mxu0 %v1793
    %2307 = vmatprep.subr.bf16.mxu0 %v1786
    %2308 = vmatpush2.bf16.msra.mxu0 %v1785
    %2309 = vmatprep.subr.bf16.mxu0 %v1778
    %2310 = vmatpush2.bf16.msra.mxu0 %v1777
    %2311 = vmatprep.subr.bf16.mxu0 %v1770
    %2312 = vmatpush2.bf16.msra.mxu0 %v1769
    %2313 = vmatprep.subr.bf16.mxu0 %v1762
    %2314 = vmatpush2.bf16.msra.mxu0 %v1761
    %2315 = vmatprep.subr.bf16.mxu0 %v1754
    %2316 = vmatpush2.bf16.msra.mxu0 %v1753
    %2317 = vmatprep.mubr.bf16.mxu0 %v618
    %2318 = vmatmul.mubr.bf16.gmra.mxu0 %v617
    %v2319 = vpop.f32.mrf.mxu0
    %v2320 = vadd.f32 %v890, %v2319
    %v2321 = vpop.f32.mrf.mxu0
    %v2322 = vadd.f32 %v894, %v2321
    %v2323 = vpop.f32.mrf.mxu0
    %v2324 = vadd.f32 %v890, %v2323
    %v2325 = vpop.f32.mrf.mxu0
    %v2326 = vadd.f32 %v894, %v2325
    %2327 = vdwg.mxu0
    %2328 = vmatprep.subr.bf16.mxu0 %v1874
    %2329 = vmatpush1.bf16.msra.mxu0 %v1873
    %2330 = vmatprep.subr.bf16.mxu0 %v1866
    %2331 = vmatpush1.bf16.msra.mxu0 %v1865
    %2332 = vmatprep.subr.bf16.mxu0 %v1858
    %2333 = vmatpush1.bf16.msra.mxu0 %v1857
    %2334 = vmatprep.subr.bf16.mxu0 %v1850
    %2335 = vmatpush1.bf16.msra.mxu0 %v1849
    %2336 = vmatprep.subr.bf16.mxu0 %v1842
    %2337 = vmatpush1.bf16.msra.mxu0 %v1841
    %2338 = vmatprep.subr.bf16.mxu0 %v1834
    %2339 = vmatpush1.bf16.msra.mxu0 %v1833
    %2340 = vmatprep.subr.bf16.mxu0 %v1826
    %2341 = vmatpush1.bf16.msra.mxu0 %v1825
    %2342 = vmatprep.subr.bf16.mxu0 %v1818
    %2343 = vmatpush1.bf16.msra.mxu0 %v1817
    %2344 = vmatprep.subr.bf16.mxu0 %v1938
    %2345 = vmatpush2.bf16.msra.mxu0 %v1937
    %2346 = vmatprep.subr.bf16.mxu0 %v1930
    %2347 = vmatpush2.bf16.msra.mxu0 %v1929
    %2348 = vmatprep.subr.bf16.mxu0 %v1922
    %2349 = vmatpush2.bf16.msra.mxu0 %v1921
    %2350 = vmatprep.subr.bf16.mxu0 %v1914
    %2351 = vmatpush2.bf16.msra.mxu0 %v1913
    %2352 = vmatprep.subr.bf16.mxu0 %v1906
    %2353 = vmatpush2.bf16.msra.mxu0 %v1905
    %2354 = vmatprep.subr.bf16.mxu0 %v1898
    %2355 = vmatpush2.bf16.msra.mxu0 %v1897
    %2356 = vmatprep.subr.bf16.mxu0 %v1890
    %2357 = vmatpush2.bf16.msra.mxu0 %v1889
    %2358 = vmatprep.subr.bf16.mxu0 %v1882
    %2359 = vmatpush2.bf16.msra.mxu0 %v1881
    %2360 = vmatprep.mubr.bf16.mxu0 %v620
    %2361 = vmatmul.mubr.bf16.gmra.mxu0 %v619
    %v2362 = vpop.f32.mrf.mxu0
    %v2363 = vadd.f32 %v2320, %v2362
    %v2364 = vpop.f32.mrf.mxu0
    %v2365 = vadd.f32 %v2322, %v2364
    %v2366 = vpop.f32.mrf.mxu0
    %v2367 = vadd.f32 %v2324, %v2366
    %v2368 = vpop.f32.mrf.mxu0
    %v2369 = vadd.f32 %v2326, %v2368
    %2370 = vdwg.mxu0
    %2371 = vmatprep.subr.bf16.mxu0 %v1748
    %2372 = vmatpush1.bf16.msra.mxu0 %v1747
    %2373 = vmatprep.subr.bf16.mxu0 %v1740
    %2374 = vmatpush1.bf16.msra.mxu0 %v1739
    %2375 = vmatprep.subr.bf16.mxu0 %v1732
    %2376 = vmatpush1.bf16.msra.mxu0 %v1731
    %2377 = vmatprep.subr.bf16.mxu0 %v1724
    %2378 = vmatpush1.bf16.msra.mxu0 %v1723
    %2379 = vmatprep.subr.bf16.mxu0 %v1716
    %2380 = vmatpush1.bf16.msra.mxu0 %v1715
    %2381 = vmatprep.subr.bf16.mxu0 %v1708
    %2382 = vmatpush1.bf16.msra.mxu0 %v1707
    %2383 = vmatprep.subr.bf16.mxu0 %v1700
    %2384 = vmatpush1.bf16.msra.mxu0 %v1699
    %2385 = vmatprep.subr.bf16.mxu0 %v1692
    %2386 = vmatpush1.bf16.msra.mxu0 %v1691
    %2387 = vmatprep.subr.bf16.mxu0 %v1812
    %2388 = vmatpush2.bf16.msra.mxu0 %v1811
    %2389 = vmatprep.subr.bf16.mxu0 %v1804
    %2390 = vmatpush2.bf16.msra.mxu0 %v1803
    %2391 = vmatprep.subr.bf16.mxu0 %v1796
    %2392 = vmatpush2.bf16.msra.mxu0 %v1795
    %2393 = vmatprep.subr.bf16.mxu0 %v1788
    %2394 = vmatpush2.bf16.msra.mxu0 %v1787
    %2395 = vmatprep.subr.bf16.mxu0 %v1780
    %2396 = vmatpush2.bf16.msra.mxu0 %v1779
    %2397 = vmatprep.subr.bf16.mxu0 %v1772
    %2398 = vmatpush2.bf16.msra.mxu0 %v1771
    %2399 = vmatprep.subr.bf16.mxu0 %v1764
    %2400 = vmatpush2.bf16.msra.mxu0 %v1763
    %2401 = vmatprep.subr.bf16.mxu0 %v1756
    %2402 = vmatpush2.bf16.msra.mxu0 %v1755
    %2403 = vmatprep.mubr.bf16.mxu0 %v618
    %2404 = vmatmul.mubr.bf16.gmra.mxu0 %v617
    %v2405 = vpop.f32.mrf.mxu0
    %v2406 = vadd.f32 %v898, %v2405
    %v2407 = vpop.f32.mrf.mxu0
    %v2408 = vadd.f32 %v902, %v2407
    %v2409 = vpop.f32.mrf.mxu0
    %v2410 = vadd.f32 %v898, %v2409
    %v2411 = vpop.f32.mrf.mxu0
    %v2412 = vadd.f32 %v902, %v2411
    %2413 = vdwg.mxu0
    %2414 = vmatprep.subr.bf16.mxu0 %v1876
    %2415 = vmatpush1.bf16.msra.mxu0 %v1875
    %2416 = vmatprep.subr.bf16.mxu0 %v1868
    %2417 = vmatpush1.bf16.msra.mxu0 %v1867
    %2418 = vmatprep.subr.bf16.mxu0 %v1860
    %2419 = vmatpush1.bf16.msra.mxu0 %v1859
    %2420 = vmatprep.subr.bf16.mxu0 %v1852
    %2421 = vmatpush1.bf16.msra.mxu0 %v1851
    %2422 = vmatprep.subr.bf16.mxu0 %v1844
    %2423 = vmatpush1.bf16.msra.mxu0 %v1843
    %2424 = vmatprep.subr.bf16.mxu0 %v1836
    %2425 = vmatpush1.bf16.msra.mxu0 %v1835
    %2426 = vmatprep.subr.bf16.mxu0 %v1828
    %2427 = vmatpush1.bf16.msra.mxu0 %v1827
    %2428 = vmatprep.subr.bf16.mxu0 %v1820
    %2429 = vmatpush1.bf16.msra.mxu0 %v1819
    %2430 = vmatprep.subr.bf16.mxu0 %v1940
    %2431 = vmatpush2.bf16.msra.mxu0 %v1939
    %2432 = vmatprep.subr.bf16.mxu0 %v1932
    %2433 = vmatpush2.bf16.msra.mxu0 %v1931
    %2434 = vmatprep.subr.bf16.mxu0 %v1924
    %2435 = vmatpush2.bf16.msra.mxu0 %v1923
    %2436 = vmatprep.subr.bf16.mxu0 %v1916
    %2437 = vmatpush2.bf16.msra.mxu0 %v1915
    %2438 = vmatprep.subr.bf16.mxu0 %v1908
    %2439 = vmatpush2.bf16.msra.mxu0 %v1907
    %2440 = vmatprep.subr.bf16.mxu0 %v1900
    %2441 = vmatpush2.bf16.msra.mxu0 %v1899
    %2442 = vmatprep.subr.bf16.mxu0 %v1892
    %2443 = vmatpush2.bf16.msra.mxu0 %v1891
    %2444 = vmatprep.subr.bf16.mxu0 %v1884
    %2445 = vmatpush2.bf16.msra.mxu0 %v1883
    %2446 = vmatprep.mubr.bf16.mxu0 %v620
    %2447 = vmatmul.mubr.bf16.gmra.mxu0 %v619
    %v2448 = vpop.f32.mrf.mxu0
    %v2449 = vadd.f32 %v2406, %v2448
    %v2450 = vpop.f32.mrf.mxu0
    %v2451 = vadd.f32 %v2408, %v2450
    %v2452 = vpop.f32.mrf.mxu0
    %v2453 = vadd.f32 %v2410, %v2452
    %v2454 = vpop.f32.mrf.mxu0
    %v2455 = vadd.f32 %v2412, %v2454
    %2456 = vdwg.mxu0
    %2457 = vmatprep.subr.bf16.mxu0 %v1750
    %2458 = vmatpush1.bf16.msra.mxu0 %v1749
    %2459 = vmatprep.subr.bf16.mxu0 %v1742
    %2460 = vmatpush1.bf16.msra.mxu0 %v1741
    %2461 = vmatprep.subr.bf16.mxu0 %v1734
    %2462 = vmatpush1.bf16.msra.mxu0 %v1733
    %2463 = vmatprep.subr.bf16.mxu0 %v1726
    %2464 = vmatpush1.bf16.msra.mxu0 %v1725
    %2465 = vmatprep.subr.bf16.mxu0 %v1718
    %2466 = vmatpush1.bf16.msra.mxu0 %v1717
    %2467 = vmatprep.subr.bf16.mxu0 %v1710
    %2468 = vmatpush1.bf16.msra.mxu0 %v1709
    %2469 = vmatprep.subr.bf16.mxu0 %v1702
    %2470 = vmatpush1.bf16.msra.mxu0 %v1701
    %2471 = vmatprep.subr.bf16.mxu0 %v1694
    %2472 = vmatpush1.bf16.msra.mxu0 %v1693
    %2473 = vmatprep.subr.bf16.mxu0 %v1814
    %2474 = vmatpush2.bf16.msra.mxu0 %v1813
    %2475 = vmatprep.subr.bf16.mxu0 %v1806
    %2476 = vmatpush2.bf16.msra.mxu0 %v1805
    %2477 = vmatprep.subr.bf16.mxu0 %v1798
    %2478 = vmatpush2.bf16.msra.mxu0 %v1797
    %2479 = vmatprep.subr.bf16.mxu0 %v1790
    %2480 = vmatpush2.bf16.msra.mxu0 %v1789
    %2481 = vmatprep.subr.bf16.mxu0 %v1782
    %2482 = vmatpush2.bf16.msra.mxu0 %v1781
    %2483 = vmatprep.subr.bf16.mxu0 %v1774
    %2484 = vmatpush2.bf16.msra.mxu0 %v1773
    %2485 = vmatprep.subr.bf16.mxu0 %v1766
    %2486 = vmatpush2.bf16.msra.mxu0 %v1765
    %2487 = vmatprep.subr.bf16.mxu0 %v1758
    %2488 = vmatpush2.bf16.msra.mxu0 %v1757
    %2489 = vmatprep.mubr.bf16.mxu0 %v618
    %2490 = vmatmul.mubr.bf16.gmra.mxu0 %v617
    %v2491 = vpop.f32.mrf.mxu0
    %v2492 = vadd.f32 %v906, %v2491
    %v2493 = vpop.f32.mrf.mxu0
    %v2494 = vadd.f32 %v910, %v2493
    %v2495 = vpop.f32.mrf.mxu0
    %v2496 = vadd.f32 %v906, %v2495
    %v2497 = vpop.f32.mrf.mxu0
    %v2498 = vadd.f32 %v910, %v2497
    %2499 = vdwg.mxu0
    %2500 = vmatprep.subr.bf16.mxu0 %v1878
    %2501 = vmatpush1.bf16.msra.mxu0 %v1877
    %2502 = vmatprep.subr.bf16.mxu0 %v1870
    %2503 = vmatpush1.bf16.msra.mxu0 %v1869
    %2504 = vmatprep.subr.bf16.mxu0 %v1862
    %2505 = vmatpush1.bf16.msra.mxu0 %v1861
    %2506 = vmatprep.subr.bf16.mxu0 %v1854
    %2507 = vmatpush1.bf16.msra.mxu0 %v1853
    %2508 = vmatprep.subr.bf16.mxu0 %v1846
    %2509 = vmatpush1.bf16.msra.mxu0 %v1845
    %2510 = vmatprep.subr.bf16.mxu0 %v1838
    %2511 = vmatpush1.bf16.msra.mxu0 %v1837
    %2512 = vmatprep.subr.bf16.mxu0 %v1830
    %2513 = vmatpush1.bf16.msra.mxu0 %v1829
    %2514 = vmatprep.subr.bf16.mxu0 %v1822
    %2515 = vmatpush1.bf16.msra.mxu0 %v1821
    %2516 = vmatprep.subr.bf16.mxu0 %v1942
    %2517 = vmatpush2.bf16.msra.mxu0 %v1941
    %2518 = vmatprep.subr.bf16.mxu0 %v1934
    %2519 = vmatpush2.bf16.msra.mxu0 %v1933
    %2520 = vmatprep.subr.bf16.mxu0 %v1926
    %2521 = vmatpush2.bf16.msra.mxu0 %v1925
    %2522 = vmatprep.subr.bf16.mxu0 %v1918
    %2523 = vmatpush2.bf16.msra.mxu0 %v1917
    %2524 = vmatprep.subr.bf16.mxu0 %v1910
    %2525 = vmatpush2.bf16.msra.mxu0 %v1909
    %2526 = vmatprep.subr.bf16.mxu0 %v1902
    %2527 = vmatpush2.bf16.msra.mxu0 %v1901
    %2528 = vmatprep.subr.bf16.mxu0 %v1894
    %2529 = vmatpush2.bf16.msra.mxu0 %v1893
    %2530 = vmatprep.subr.bf16.mxu0 %v1886
    %2531 = vmatpush2.bf16.msra.mxu0 %v1885
    %2532 = vmatprep.mubr.bf16.mxu0 %v620
    %2533 = vmatmul.mubr.bf16.gmra.mxu0 %v619
    %v2534 = vpop.f32.mrf.mxu0
    %v2535 = vadd.f32 %v2492, %v2534
    %v2536 = vpop.f32.mrf.mxu0
    %v2537 = vadd.f32 %v2494, %v2536
    %v2538 = vpop.f32.mrf.mxu0
    %v2539 = vadd.f32 %v2496, %v2538
    %v2540 = vpop.f32.mrf.mxu0
    %v2541 = vadd.f32 %v2498, %v2540
    %2542 = vdwg.mxu0
    %v2543 = vmax.f32 %v2277, 0.0
    %v2544 = vmax.f32 %v2279, 0.0
    %v2545 = vmax.f32 %v2363, 0.0
    %v2546 = vmax.f32 %v2365, 0.0
    %v2547 = vmax.f32 %v2449, 0.0
    %v2548 = vmax.f32 %v2451, 0.0
    %v2549 = vmax.f32 %v2535, 0.0
    %v2550 = vmax.f32 %v2537, 0.0
    %v2551 = vmax.f32 %v2281, 0.0
    %v2552 = vmax.f32 %v2283, 0.0
    %v2553 = vmax.f32 %v2367, 0.0
    %v2554 = vmax.f32 %v2369, 0.0
    %v2555 = vmax.f32 %v2453, 0.0
    %v2556 = vmax.f32 %v2455, 0.0
    %v2557 = vmax.f32 %v2539, 0.0
    %v2558 = vmax.f32 %v2541, 0.0
    %v2559 = vpack.c.bf16 %v2551, %v2543
    %v2560 = vpack.c.bf16 %v2552, %v2544
    %v2561 = vpack.c.bf16 %v2553, %v2545
    %v2562 = vpack.c.bf16 %v2554, %v2546
    %v2563 = vpack.c.bf16 %v2555, %v2547
    %v2564 = vpack.c.bf16 %v2556, %v2548
    %v2565 = vpack.c.bf16 %v2557, %v2549
    %v2566 = vpack.c.bf16 %v2558, %v2550
    %v2567 = vld [vmem:[#allocation10] sm:$0xff]
    %v2568 = vld [vmem:[#allocation10 + $0x8] sm:$0xf]
    %v2569 = vld [vmem:[#allocation10 + $0xc] sm:$0xff]
    %v2570 = vld [vmem:[#allocation10 + $0x14] sm:$0xf]
    %v2571 = vld [vmem:[#allocation10 + $0x18] sm:$0xff]
    %v2572 = vld [vmem:[#allocation10 + $0x20] sm:$0xf]
    %v2573 = vld [vmem:[#allocation10 + $0x24] sm:$0xff]
    %v2574 = vld [vmem:[#allocation10 + $0x2c] sm:$0xf]
    %v2575 = vld [vmem:[#allocation10 + $0x30] sm:$0xff]
    %v2576 = vld [vmem:[#allocation10 + $0x38] sm:$0xf]
    %v2577 = vld [vmem:[#allocation10 + $0x3c] sm:$0xff]
    %v2578 = vld [vmem:[#allocation10 + $0x44] sm:$0xf]
    %v2579 = vld [vmem:[#allocation10 + $0x48] sm:$0xff]
    %v2580 = vld [vmem:[#allocation10 + $0x50] sm:$0xf]
    %v2581 = vld [vmem:[#allocation10 + $0x54] sm:$0xff]
    %v2582 = vld [vmem:[#allocation10 + $0x5c] sm:$0xf]
    %v2583 = vld [vmem:[#allocation10 + $0x60] sm:$0xff]
    %v2584 = vld [vmem:[#allocation10 + $0x68] sm:$0xf]
    %v2585 = vld [vmem:[#allocation10 + $0x6c] sm:$0xff]
    %v2586 = vld [vmem:[#allocation10 + $0x74] sm:$0xf]
    %v2587 = vld [vmem:[#allocation10 + $0x78] sm:$0xff]
    %v2588 = vld [vmem:[#allocation10 + $0x80] sm:$0xf]
    %v2589 = vld [vmem:[#allocation10 + $0x84] sm:$0xff]
    %v2590 = vld [vmem:[#allocation10 + $0x8c] sm:$0xf]
    %v2591 = vld [vmem:[#allocation10 + $0x90] sm:$0xff]
    %v2592 = vld [vmem:[#allocation10 + $0x98] sm:$0xf]
    %v2593 = vld [vmem:[#allocation10 + $0x9c] sm:$0xff]
    %v2594 = vld [vmem:[#allocation10 + $0xa4] sm:$0xf]
    %v2595 = vld [vmem:[#allocation10 + $0xa8] sm:$0xff]
    %v2596 = vld [vmem:[#allocation10 + $0xb0] sm:$0xf]
    %v2597 = vld [vmem:[#allocation10 + $0xb4] sm:$0xff]
    %v2598 = vld [vmem:[#allocation10 + $0xbc] sm:$0xf]
    %v2599 = vld [vmem:[#allocation10 + $0xc0] sm:$0xff]
    %v2600 = vld [vmem:[#allocation10 + $0xc8] sm:$0xf]
    %v2601 = vld [vmem:[#allocation10 + $0xcc] sm:$0xff]
    %v2602 = vld [vmem:[#allocation10 + $0xd4] sm:$0xf]
    %v2603 = vld [vmem:[#allocation10 + $0xd8] sm:$0xff]
    %v2604 = vld [vmem:[#allocation10 + $0xe0] sm:$0xf]
    %v2605 = vld [vmem:[#allocation10 + $0xe4] sm:$0xff]
    %v2606 = vld [vmem:[#allocation10 + $0xec] sm:$0xf]
    %v2607 = vld [vmem:[#allocation10 + $0xf0] sm:$0xff]
    %v2608 = vld [vmem:[#allocation10 + $0xf8] sm:$0xf]
    %v2609 = vld [vmem:[#allocation10 + $0xfc] sm:$0xff]
    %v2610 = vld [vmem:[#allocation10 + $0x104] sm:$0xf]
    %v2611 = vld [vmem:[#allocation10 + $0x108] sm:$0xff]
    %v2612 = vld [vmem:[#allocation10 + $0x110] sm:$0xf]
    %v2613 = vld [vmem:[#allocation10 + $0x114] sm:$0xff]
    %v2614 = vld [vmem:[#allocation10 + $0x11c] sm:$0xf]
    %v2615 = vld [vmem:[#allocation10 + $0x120] sm:$0xff]
    %v2616 = vld [vmem:[#allocation10 + $0x128] sm:$0xf]
    %v2617 = vld [vmem:[#allocation10 + $0x12c] sm:$0xff]
    %v2618 = vld [vmem:[#allocation10 + $0x134] sm:$0xf]
    %v2619 = vld [vmem:[#allocation10 + $0x138] sm:$0xff]
    %v2620 = vld [vmem:[#allocation10 + $0x140] sm:$0xf]
    %v2621 = vld [vmem:[#allocation10 + $0x144] sm:$0xff]
    %v2622 = vld [vmem:[#allocation10 + $0x14c] sm:$0xf]
    %v2623 = vld [vmem:[#allocation10 + $0x150] sm:$0xff]
    %v2624 = vld [vmem:[#allocation10 + $0x158] sm:$0xf]
    %v2625 = vld [vmem:[#allocation10 + $0x15c] sm:$0xff]
    %v2626 = vld [vmem:[#allocation10 + $0x164] sm:$0xf]
    %v2627 = vld [vmem:[#allocation10 + $0x168] sm:$0xff]
    %v2628 = vld [vmem:[#allocation10 + $0x170] sm:$0xf]
    %v2629 = vld [vmem:[#allocation10 + $0x174] sm:$0xff]
    %v2630 = vld [vmem:[#allocation10 + $0x17c] sm:$0xf]
    %v2631 = vld [vmem:[#allocation10 + $0x180] sm:$0xff]
    %v2632 = vld [vmem:[#allocation10 + $0x188] sm:$0xf]
    %v2633 = vld [vmem:[#allocation10 + $0x18c] sm:$0xff]
    %v2634 = vld [vmem:[#allocation10 + $0x194] sm:$0xf]
    %v2635 = vld [vmem:[#allocation10 + $0x198] sm:$0xff]
    %v2636 = vld [vmem:[#allocation10 + $0x1a0] sm:$0xf]
    %v2637 = vld [vmem:[#allocation10 + $0x1a4] sm:$0xff]
    %v2638 = vld [vmem:[#allocation10 + $0x1ac] sm:$0xf]
    %v2639 = vld [vmem:[#allocation10 + $0x1b0] sm:$0xff]
    %v2640 = vld [vmem:[#allocation10 + $0x1b8] sm:$0xf]
    %v2641 = vld [vmem:[#allocation10 + $0x1bc] sm:$0xff]
    %v2642 = vld [vmem:[#allocation10 + $0x1c4] sm:$0xf]
    %v2643 = vld [vmem:[#allocation10 + $0x1c8] sm:$0xff]
    %v2644 = vld [vmem:[#allocation10 + $0x1d0] sm:$0xf]
    %v2645 = vld [vmem:[#allocation10 + $0x1d4] sm:$0xff]
    %v2646 = vld [vmem:[#allocation10 + $0x1dc] sm:$0xf]
    %v2647 = vld [vmem:[#allocation10 + $0x1e0] sm:$0xff]
    %v2648 = vld [vmem:[#allocation10 + $0x1e8] sm:$0xf]
    %v2649 = vld [vmem:[#allocation10 + $0x1ec] sm:$0xff]
    %v2650 = vld [vmem:[#allocation10 + $0x1f4] sm:$0xf]
    %v2651 = vld [vmem:[#allocation10 + $0x1f8] sm:$0xff]
    %v2652 = vld [vmem:[#allocation10 + $0x200] sm:$0xf]
    %v2653 = vld [vmem:[#allocation10 + $0x204] sm:$0xff]
    %v2654 = vld [vmem:[#allocation10 + $0x20c] sm:$0xf]
    %v2655 = vld [vmem:[#allocation10 + $0x210] sm:$0xff]
    %v2656 = vld [vmem:[#allocation10 + $0x218] sm:$0xf]
    %v2657 = vld [vmem:[#allocation10 + $0x21c] sm:$0xff]
    %v2658 = vld [vmem:[#allocation10 + $0x224] sm:$0xf]
    %v2659 = vld [vmem:[#allocation10 + $0x228] sm:$0xff]
    %v2660 = vld [vmem:[#allocation10 + $0x230] sm:$0xf]
    %v2661 = vld [vmem:[#allocation10 + $0x234] sm:$0xff]
    %v2662 = vld [vmem:[#allocation10 + $0x23c] sm:$0xf]
    %v2663 = vld [vmem:[#allocation10 + $0x240] sm:$0xff]
    %v2664 = vld [vmem:[#allocation10 + $0x248] sm:$0xf]
    %v2665 = vld [vmem:[#allocation10 + $0x24c] sm:$0xff]
    %v2666 = vld [vmem:[#allocation10 + $0x254] sm:$0xf]
    %v2667 = vld [vmem:[#allocation10 + $0x258] sm:$0xff]
    %v2668 = vld [vmem:[#allocation10 + $0x260] sm:$0xf]
    %v2669 = vld [vmem:[#allocation10 + $0x264] sm:$0xff]
    %v2670 = vld [vmem:[#allocation10 + $0x26c] sm:$0xf]
    %v2671 = vld [vmem:[#allocation10 + $0x270] sm:$0xff]
    %v2672 = vld [vmem:[#allocation10 + $0x278] sm:$0xf]
    %v2673 = vld [vmem:[#allocation10 + $0x27c] sm:$0xff]
    %v2674 = vld [vmem:[#allocation10 + $0x284] sm:$0xf]
    %v2675 = vld [vmem:[#allocation10 + $0x288] sm:$0xff]
    %v2676 = vld [vmem:[#allocation10 + $0x290] sm:$0xf]
    %v2677 = vld [vmem:[#allocation10 + $0x294] sm:$0xff]
    %v2678 = vld [vmem:[#allocation10 + $0x29c] sm:$0xf]
    %v2679 = vld [vmem:[#allocation10 + $0x2a0] sm:$0xff]
    %v2680 = vld [vmem:[#allocation10 + $0x2a8] sm:$0xf]
    %v2681 = vld [vmem:[#allocation10 + $0x2ac] sm:$0xff]
    %v2682 = vld [vmem:[#allocation10 + $0x2b4] sm:$0xf]
    %v2683 = vld [vmem:[#allocation10 + $0x2b8] sm:$0xff]
    %v2684 = vld [vmem:[#allocation10 + $0x2c0] sm:$0xf]
    %v2685 = vld [vmem:[#allocation10 + $0x2c4] sm:$0xff]
    %v2686 = vld [vmem:[#allocation10 + $0x2cc] sm:$0xf]
    %v2687 = vld [vmem:[#allocation10 + $0x2d0] sm:$0xff]
    %v2688 = vld [vmem:[#allocation10 + $0x2d8] sm:$0xf]
    %v2689 = vld [vmem:[#allocation10 + $0x2dc] sm:$0xff]
    %v2690 = vld [vmem:[#allocation10 + $0x2e4] sm:$0xf]
    %v2691 = vld [vmem:[#allocation10 + $0x2e8] sm:$0xff]
    %v2692 = vld [vmem:[#allocation10 + $0x2f0] sm:$0xf]
    %v2693 = vld [vmem:[#allocation10 + $0x2f4] sm:$0xff]
    %v2694 = vld [vmem:[#allocation10 + $0x2fc] sm:$0xf]
    %v2695 = vld [vmem:[#allocation10 + $0x300] sm:$0xff]
    %v2696 = vld [vmem:[#allocation10 + $0x308] sm:$0xf]
    %v2697 = vld [vmem:[#allocation10 + $0x30c] sm:$0xff]
    %v2698 = vld [vmem:[#allocation10 + $0x314] sm:$0xf]
    %v2699 = vld [vmem:[#allocation10 + $0x318] sm:$0xff]
    %v2700 = vld [vmem:[#allocation10 + $0x320] sm:$0xf]
    %v2701 = vld [vmem:[#allocation10 + $0x324] sm:$0xff]
    %v2702 = vld [vmem:[#allocation10 + $0x32c] sm:$0xf]
    %v2703 = vld [vmem:[#allocation10 + $0x330] sm:$0xff]
    %v2704 = vld [vmem:[#allocation10 + $0x338] sm:$0xf]
    %v2705 = vld [vmem:[#allocation10 + $0x33c] sm:$0xff]
    %v2706 = vld [vmem:[#allocation10 + $0x344] sm:$0xf]
    %v2707 = vld [vmem:[#allocation10 + $0x348] sm:$0xff]
    %v2708 = vld [vmem:[#allocation10 + $0x350] sm:$0xf]
    %v2709 = vld [vmem:[#allocation10 + $0x354] sm:$0xff]
    %v2710 = vld [vmem:[#allocation10 + $0x35c] sm:$0xf]
    %v2711 = vld [vmem:[#allocation10 + $0x360] sm:$0xff]
    %v2712 = vld [vmem:[#allocation10 + $0x368] sm:$0xf]
    %v2713 = vld [vmem:[#allocation10 + $0x36c] sm:$0xff]
    %v2714 = vld [vmem:[#allocation10 + $0x374] sm:$0xf]
    %v2715 = vld [vmem:[#allocation10 + $0x378] sm:$0xff]
    %v2716 = vld [vmem:[#allocation10 + $0x380] sm:$0xf]
    %v2717 = vld [vmem:[#allocation10 + $0x384] sm:$0xff]
    %v2718 = vld [vmem:[#allocation10 + $0x38c] sm:$0xf]
    %v2719 = vld [vmem:[#allocation10 + $0x390] sm:$0xff]
    %v2720 = vld [vmem:[#allocation10 + $0x398] sm:$0xf]
    %v2721 = vld [vmem:[#allocation10 + $0x39c] sm:$0xff]
    %v2722 = vld [vmem:[#allocation10 + $0x3a4] sm:$0xf]
    %v2723 = vld [vmem:[#allocation10 + $0x3a8] sm:$0xff]
    %v2724 = vld [vmem:[#allocation10 + $0x3b0] sm:$0xf]
    %v2725 = vld [vmem:[#allocation10 + $0x3b4] sm:$0xff]
    %v2726 = vld [vmem:[#allocation10 + $0x3bc] sm:$0xf]
    %v2727 = vld [vmem:[#allocation10 + $0x3c0] sm:$0xff]
    %v2728 = vld [vmem:[#allocation10 + $0x3c8] sm:$0xf]
    %v2729 = vld [vmem:[#allocation10 + $0x3cc] sm:$0xff]
    %v2730 = vld [vmem:[#allocation10 + $0x3d4] sm:$0xf]
    %v2731 = vld [vmem:[#allocation10 + $0x3d8] sm:$0xff]
    %v2732 = vld [vmem:[#allocation10 + $0x3e0] sm:$0xf]
    %v2733 = vld [vmem:[#allocation10 + $0x3e4] sm:$0xff]
    %v2734 = vld [vmem:[#allocation10 + $0x3ec] sm:$0xf]
    %v2735 = vld [vmem:[#allocation10 + $0x3f0] sm:$0xff]
    %v2736 = vld [vmem:[#allocation10 + $0x3f8] sm:$0xf]
    %v2737 = vld [vmem:[#allocation10 + $0x3fc] sm:$0xff]
    %v2738 = vld [vmem:[#allocation10 + $0x404] sm:$0xf]
    %v2739 = vld [vmem:[#allocation10 + $0x408] sm:$0xff]
    %v2740 = vld [vmem:[#allocation10 + $0x410] sm:$0xf]
    %v2741 = vld [vmem:[#allocation10 + $0x414] sm:$0xff]
    %v2742 = vld [vmem:[#allocation10 + $0x41c] sm:$0xf]
    %v2743 = vld [vmem:[#allocation10 + $0x420] sm:$0xff]
    %v2744 = vld [vmem:[#allocation10 + $0x428] sm:$0xf]
    %v2745 = vld [vmem:[#allocation10 + $0x42c] sm:$0xff]
    %v2746 = vld [vmem:[#allocation10 + $0x434] sm:$0xf]
    %v2747 = vld [vmem:[#allocation10 + $0x438] sm:$0xff]
    %v2748 = vld [vmem:[#allocation10 + $0x440] sm:$0xf]
    %v2749 = vld [vmem:[#allocation10 + $0x444] sm:$0xff]
    %v2750 = vld [vmem:[#allocation10 + $0x44c] sm:$0xf]
    %v2751 = vld [vmem:[#allocation10 + $0x450] sm:$0xff]
    %v2752 = vld [vmem:[#allocation10 + $0x458] sm:$0xf]
    %v2753 = vld [vmem:[#allocation10 + $0x45c] sm:$0xff]
    %v2754 = vld [vmem:[#allocation10 + $0x464] sm:$0xf]
    %v2755 = vld [vmem:[#allocation10 + $0x468] sm:$0xff]
    %v2756 = vld [vmem:[#allocation10 + $0x470] sm:$0xf]
    %v2757 = vld [vmem:[#allocation10 + $0x474] sm:$0xff]
    %v2758 = vld [vmem:[#allocation10 + $0x47c] sm:$0xf]
    %v2759 = vld [vmem:[#allocation10 + $0x480] sm:$0xff]
    %v2760 = vld [vmem:[#allocation10 + $0x488] sm:$0xf]
    %v2761 = vld [vmem:[#allocation10 + $0x48c] sm:$0xff]
    %v2762 = vld [vmem:[#allocation10 + $0x494] sm:$0xf]
    %v2763 = vld [vmem:[#allocation10 + $0x498] sm:$0xff]
    %v2764 = vld [vmem:[#allocation10 + $0x4a0] sm:$0xf]
    %v2765 = vld [vmem:[#allocation10 + $0x4a4] sm:$0xff]
    %v2766 = vld [vmem:[#allocation10 + $0x4ac] sm:$0xf]
    %v2767 = vld [vmem:[#allocation10 + $0x4b0] sm:$0xff]
    %v2768 = vld [vmem:[#allocation10 + $0x4b8] sm:$0xf]
    %v2769 = vld [vmem:[#allocation10 + $0x4bc] sm:$0xff]
    %v2770 = vld [vmem:[#allocation10 + $0x4c4] sm:$0xf]
    %v2771 = vld [vmem:[#allocation10 + $0x4c8] sm:$0xff]
    %v2772 = vld [vmem:[#allocation10 + $0x4d0] sm:$0xf]
    %v2773 = vld [vmem:[#allocation10 + $0x4d4] sm:$0xff]
    %v2774 = vld [vmem:[#allocation10 + $0x4dc] sm:$0xf]
    %v2775 = vld [vmem:[#allocation10 + $0x4e0] sm:$0xff]
    %v2776 = vld [vmem:[#allocation10 + $0x4e8] sm:$0xf]
    %v2777 = vld [vmem:[#allocation10 + $0x4ec] sm:$0xff]
    %v2778 = vld [vmem:[#allocation10 + $0x4f4] sm:$0xf]
    %v2779 = vld [vmem:[#allocation10 + $0x4f8] sm:$0xff]
    %v2780 = vld [vmem:[#allocation10 + $0x500] sm:$0xf]
    %v2781 = vld [vmem:[#allocation10 + $0x504] sm:$0xff]
    %v2782 = vld [vmem:[#allocation10 + $0x50c] sm:$0xf]
    %v2783 = vld [vmem:[#allocation10 + $0x510] sm:$0xff]
    %v2784 = vld [vmem:[#allocation10 + $0x518] sm:$0xf]
    %v2785 = vld [vmem:[#allocation10 + $0x51c] sm:$0xff]
    %v2786 = vld [vmem:[#allocation10 + $0x524] sm:$0xf]
    %v2787 = vld [vmem:[#allocation10 + $0x528] sm:$0xff]
    %v2788 = vld [vmem:[#allocation10 + $0x530] sm:$0xf]
    %v2789 = vld [vmem:[#allocation10 + $0x534] sm:$0xff]
    %v2790 = vld [vmem:[#allocation10 + $0x53c] sm:$0xf]
    %v2791 = vld [vmem:[#allocation10 + $0x540] sm:$0xff]
    %v2792 = vld [vmem:[#allocation10 + $0x548] sm:$0xf]
    %v2793 = vld [vmem:[#allocation10 + $0x54c] sm:$0xff]
    %v2794 = vld [vmem:[#allocation10 + $0x554] sm:$0xf]
    %v2795 = vld [vmem:[#allocation10 + $0x558] sm:$0xff]
    %v2796 = vld [vmem:[#allocation10 + $0x560] sm:$0xf]
    %v2797 = vld [vmem:[#allocation10 + $0x564] sm:$0xff]
    %v2798 = vld [vmem:[#allocation10 + $0x56c] sm:$0xf]
    %v2799 = vld [vmem:[#allocation10 + $0x570] sm:$0xff]
    %v2800 = vld [vmem:[#allocation10 + $0x578] sm:$0xf]
    %v2801 = vld [vmem:[#allocation10 + $0x57c] sm:$0xff]
    %v2802 = vld [vmem:[#allocation10 + $0x584] sm:$0xf]
    %v2803 = vld [vmem:[#allocation10 + $0x588] sm:$0xff]
    %v2804 = vld [vmem:[#allocation10 + $0x590] sm:$0xf]
    %v2805 = vld [vmem:[#allocation10 + $0x594] sm:$0xff]
    %v2806 = vld [vmem:[#allocation10 + $0x59c] sm:$0xf]
    %v2807 = vld [vmem:[#allocation10 + $0x5a0] sm:$0xff]
    %v2808 = vld [vmem:[#allocation10 + $0x5a8] sm:$0xf]
    %v2809 = vld [vmem:[#allocation10 + $0x5ac] sm:$0xff]
    %v2810 = vld [vmem:[#allocation10 + $0x5b4] sm:$0xf]
    %v2811 = vld [vmem:[#allocation10 + $0x5b8] sm:$0xff]
    %v2812 = vld [vmem:[#allocation10 + $0x5c0] sm:$0xf]
    %v2813 = vld [vmem:[#allocation10 + $0x5c4] sm:$0xff]
    %v2814 = vld [vmem:[#allocation10 + $0x5cc] sm:$0xf]
    %v2815 = vld [vmem:[#allocation10 + $0x5d0] sm:$0xff]
    %v2816 = vld [vmem:[#allocation10 + $0x5d8] sm:$0xf]
    %v2817 = vld [vmem:[#allocation10 + $0x5dc] sm:$0xff]
    %v2818 = vld [vmem:[#allocation10 + $0x5e4] sm:$0xf]
    %v2819 = vld [vmem:[#allocation10 + $0x5e8] sm:$0xff]
    %v2820 = vld [vmem:[#allocation10 + $0x5f0] sm:$0xf]
    %v2821 = vld [vmem:[#allocation10 + $0x5f4] sm:$0xff]
    %v2822 = vld [vmem:[#allocation10 + $0x5fc] sm:$0xf]
    %v2823 = vld [vmem:[#allocation5 + $0xc] sm:$0x7]
    %v2825 = vlaneseq
    %v2826 = vshrl.u32 %v2825, 7
    %v2827 = vsub.s32 0, %v2826
    %v2828 = vrot.slane %v2823, %v2827
    %v2829 = vlaneseq
    %v2830 = vshrl.u32 %v2829, 7
    %v2831 = vsub.s32 1, %v2830
    %v2832 = vrot.slane %v2823, %v2831
    %v2833 = vlaneseq
    %v2834 = vshrl.u32 %v2833, 7
    %v2835 = vsub.s32 2, %v2834
    %v2836 = vrot.slane %v2823, %v2835
    %v3096 = vunpack.c.l.b16 %v2567
    %v3097 = vunpack.c.h.b16 %v2567
    %v3098 = vunpack.c.l.b16 %v2568
    %v3099 = vunpack.c.l.b16 %v2569
    %v3100 = vunpack.c.h.b16 %v2569
    %v3101 = vunpack.c.l.b16 %v2570
    %v3102 = vunpack.c.l.b16 %v2571
    %v3103 = vunpack.c.h.b16 %v2571
    %v3104 = vunpack.c.l.b16 %v2572
    %v3105 = vunpack.c.l.b16 %v2573
    %v3106 = vunpack.c.h.b16 %v2573
    %v3107 = vunpack.c.l.b16 %v2574
    %v3108 = vunpack.c.l.b16 %v2575
    %v3109 = vunpack.c.h.b16 %v2575
    %v3110 = vunpack.c.l.b16 %v2576
    %v3111 = vunpack.c.l.b16 %v2577
    %v3112 = vunpack.c.h.b16 %v2577
    %v3113 = vunpack.c.l.b16 %v2578
    %v3114 = vunpack.c.l.b16 %v2579
    %v3115 = vunpack.c.h.b16 %v2579
    %v3116 = vunpack.c.l.b16 %v2580
    %v3117 = vunpack.c.l.b16 %v2581
    %v3118 = vunpack.c.h.b16 %v2581
    %v3119 = vunpack.c.l.b16 %v2582
    %v3120 = vunpack.c.l.b16 %v2583
    %v3121 = vunpack.c.h.b16 %v2583
    %v3122 = vunpack.c.l.b16 %v2584
    %v3123 = vunpack.c.l.b16 %v2585
    %v3124 = vunpack.c.h.b16 %v2585
    %v3125 = vunpack.c.l.b16 %v2586
    %v3126 = vunpack.c.l.b16 %v2587
    %v3127 = vunpack.c.h.b16 %v2587
    %v3128 = vunpack.c.l.b16 %v2588
    %v3129 = vunpack.c.l.b16 %v2589
    %v3130 = vunpack.c.h.b16 %v2589
    %v3131 = vunpack.c.l.b16 %v2590
    %v3132 = vunpack.c.l.b16 %v2591
    %v3133 = vunpack.c.h.b16 %v2591
    %v3134 = vunpack.c.l.b16 %v2592
    %v3135 = vunpack.c.l.b16 %v2593
    %v3136 = vunpack.c.h.b16 %v2593
    %v3137 = vunpack.c.l.b16 %v2594
    %v3138 = vunpack.c.l.b16 %v2595
    %v3139 = vunpack.c.h.b16 %v2595
    %v3140 = vunpack.c.l.b16 %v2596
    %v3141 = vunpack.c.l.b16 %v2597
    %v3142 = vunpack.c.h.b16 %v2597
    %v3143 = vunpack.c.l.b16 %v2598
    %v3144 = vunpack.c.l.b16 %v2599
    %v3145 = vunpack.c.h.b16 %v2599
    %v3146 = vunpack.c.l.b16 %v2600
    %v3147 = vunpack.c.l.b16 %v2601
    %v3148 = vunpack.c.h.b16 %v2601
    %v3149 = vunpack.c.l.b16 %v2602
    %v3150 = vunpack.c.l.b16 %v2603
    %v3151 = vunpack.c.h.b16 %v2603
    %v3152 = vunpack.c.l.b16 %v2604
    %v3153 = vunpack.c.l.b16 %v2605
    %v3154 = vunpack.c.h.b16 %v2605
    %v3155 = vunpack.c.l.b16 %v2606
    %v3156 = vunpack.c.l.b16 %v2607
    %v3157 = vunpack.c.h.b16 %v2607
    %v3158 = vunpack.c.l.b16 %v2608
    %v3159 = vunpack.c.l.b16 %v2609
    %v3160 = vunpack.c.h.b16 %v2609
    %v3161 = vunpack.c.l.b16 %v2610
    %v3162 = vunpack.c.l.b16 %v2611
    %v3163 = vunpack.c.h.b16 %v2611
    %v3164 = vunpack.c.l.b16 %v2612
    %v3165 = vunpack.c.l.b16 %v2613
    %v3166 = vunpack.c.h.b16 %v2613
    %v3167 = vunpack.c.l.b16 %v2614
    %v3168 = vunpack.c.l.b16 %v2615
    %v3169 = vunpack.c.h.b16 %v2615
    %v3170 = vunpack.c.l.b16 %v2616
    %v3171 = vunpack.c.l.b16 %v2617
    %v3172 = vunpack.c.h.b16 %v2617
    %v3173 = vunpack.c.l.b16 %v2618
    %v3174 = vunpack.c.l.b16 %v2619
    %v3175 = vunpack.c.h.b16 %v2619
    %v3176 = vunpack.c.l.b16 %v2620
    %v3177 = vunpack.c.l.b16 %v2621
    %v3178 = vunpack.c.h.b16 %v2621
    %v3179 = vunpack.c.l.b16 %v2622
    %v3180 = vunpack.c.l.b16 %v2623
    %v3181 = vunpack.c.h.b16 %v2623
    %v3182 = vunpack.c.l.b16 %v2624
    %v3183 = vunpack.c.l.b16 %v2625
    %v3184 = vunpack.c.h.b16 %v2625
    %v3185 = vunpack.c.l.b16 %v2626
    %v3186 = vunpack.c.l.b16 %v2627
    %v3187 = vunpack.c.h.b16 %v2627
    %v3188 = vunpack.c.l.b16 %v2628
    %v3189 = vunpack.c.l.b16 %v2629
    %v3190 = vunpack.c.h.b16 %v2629
    %v3191 = vunpack.c.l.b16 %v2630
    %v3192 = vunpack.c.l.b16 %v2631
    %v3193 = vunpack.c.h.b16 %v2631
    %v3194 = vunpack.c.l.b16 %v2632
    %v3195 = vunpack.c.l.b16 %v2633
    %v3196 = vunpack.c.h.b16 %v2633
    %v3197 = vunpack.c.l.b16 %v2634
    %v3198 = vunpack.c.l.b16 %v2635
    %v3199 = vunpack.c.h.b16 %v2635
    %v3200 = vunpack.c.l.b16 %v2636
    %v3201 = vunpack.c.l.b16 %v2637
    %v3202 = vunpack.c.h.b16 %v2637
    %v3203 = vunpack.c.l.b16 %v2638
    %v3204 = vunpack.c.l.b16 %v2639
    %v3205 = vunpack.c.h.b16 %v2639
    %v3206 = vunpack.c.l.b16 %v2640
    %v3207 = vunpack.c.l.b16 %v2641
    %v3208 = vunpack.c.h.b16 %v2641
    %v3209 = vunpack.c.l.b16 %v2642
    %v3210 = vunpack.c.l.b16 %v2643
    %v3211 = vunpack.c.h.b16 %v2643
    %v3212 = vunpack.c.l.b16 %v2644
    %v3213 = vunpack.c.l.b16 %v2645
    %v3214 = vunpack.c.h.b16 %v2645
    %v3215 = vunpack.c.l.b16 %v2646
    %v3216 = vunpack.c.l.b16 %v2647
    %v3217 = vunpack.c.h.b16 %v2647
    %v3218 = vunpack.c.l.b16 %v2648
    %v3219 = vunpack.c.l.b16 %v2649
    %v3220 = vunpack.c.h.b16 %v2649
    %v3221 = vunpack.c.l.b16 %v2650
    %v3222 = vunpack.c.l.b16 %v2651
    %v3223 = vunpack.c.h.b16 %v2651
    %v3224 = vunpack.c.l.b16 %v2652
    %v3225 = vunpack.c.l.b16 %v2653
    %v3226 = vunpack.c.h.b16 %v2653
    %v3227 = vunpack.c.l.b16 %v2654
    %v3228 = vunpack.c.l.b16 %v2655
    %v3229 = vunpack.c.h.b16 %v2655
    %v3230 = vunpack.c.l.b16 %v2656
    %v3231 = vunpack.c.l.b16 %v2657
    %v3232 = vunpack.c.h.b16 %v2657
    %v3233 = vunpack.c.l.b16 %v2658
    %v3234 = vunpack.c.l.b16 %v2659
    %v3235 = vunpack.c.h.b16 %v2659
    %v3236 = vunpack.c.l.b16 %v2660
    %v3237 = vunpack.c.l.b16 %v2661
    %v3238 = vunpack.c.h.b16 %v2661
    %v3239 = vunpack.c.l.b16 %v2662
    %v3240 = vunpack.c.l.b16 %v2663
    %v3241 = vunpack.c.h.b16 %v2663
    %v3242 = vunpack.c.l.b16 %v2664
    %v3243 = vunpack.c.l.b16 %v2665
    %v3244 = vunpack.c.h.b16 %v2665
    %v3245 = vunpack.c.l.b16 %v2666
    %v3246 = vunpack.c.l.b16 %v2667
    %v3247 = vunpack.c.h.b16 %v2667
    %v3248 = vunpack.c.l.b16 %v2668
    %v3249 = vunpack.c.l.b16 %v2669
    %v3250 = vunpack.c.h.b16 %v2669
    %v3251 = vunpack.c.l.b16 %v2670
    %v3252 = vunpack.c.l.b16 %v2671
    %v3253 = vunpack.c.h.b16 %v2671
    %v3254 = vunpack.c.l.b16 %v2672
    %v3255 = vunpack.c.l.b16 %v2673
    %v3256 = vunpack.c.h.b16 %v2673
    %v3257 = vunpack.c.l.b16 %v2674
    %v3258 = vunpack.c.l.b16 %v2675
    %v3259 = vunpack.c.h.b16 %v2675
    %v3260 = vunpack.c.l.b16 %v2676
    %v3261 = vunpack.c.l.b16 %v2677
    %v3262 = vunpack.c.h.b16 %v2677
    %v3263 = vunpack.c.l.b16 %v2678
    %v3264 = vunpack.c.l.b16 %v2679
    %v3265 = vunpack.c.h.b16 %v2679
    %v3266 = vunpack.c.l.b16 %v2680
    %v3267 = vunpack.c.l.b16 %v2681
    %v3268 = vunpack.c.h.b16 %v2681
    %v3269 = vunpack.c.l.b16 %v2682
    %v3270 = vunpack.c.l.b16 %v2683
    %v3271 = vunpack.c.h.b16 %v2683
    %v3272 = vunpack.c.l.b16 %v2684
    %v3273 = vunpack.c.l.b16 %v2685
    %v3274 = vunpack.c.h.b16 %v2685
    %v3275 = vunpack.c.l.b16 %v2686
    %v3276 = vunpack.c.l.b16 %v2687
    %v3277 = vunpack.c.h.b16 %v2687
    %v3278 = vunpack.c.l.b16 %v2688
    %v3279 = vunpack.c.l.b16 %v2689
    %v3280 = vunpack.c.h.b16 %v2689
    %v3281 = vunpack.c.l.b16 %v2690
    %v3282 = vunpack.c.l.b16 %v2691
    %v3283 = vunpack.c.h.b16 %v2691
    %v3284 = vunpack.c.l.b16 %v2692
    %v3285 = vunpack.c.l.b16 %v2693
    %v3286 = vunpack.c.h.b16 %v2693
    %v3287 = vunpack.c.l.b16 %v2694
    %v3288 = vunpack.c.l.b16 %v2695
    %v3289 = vunpack.c.h.b16 %v2695
    %v3290 = vunpack.c.l.b16 %v2696
    %v3291 = vunpack.c.l.b16 %v2697
    %v3292 = vunpack.c.h.b16 %v2697
    %v3293 = vunpack.c.l.b16 %v2698
    %v3294 = vunpack.c.l.b16 %v2699
    %v3295 = vunpack.c.h.b16 %v2699
    %v3296 = vunpack.c.l.b16 %v2700
    %v3297 = vunpack.c.l.b16 %v2701
    %v3298 = vunpack.c.h.b16 %v2701
    %v3299 = vunpack.c.l.b16 %v2702
    %v3300 = vunpack.c.l.b16 %v2703
    %v3301 = vunpack.c.h.b16 %v2703
    %v3302 = vunpack.c.l.b16 %v2704
    %v3303 = vunpack.c.l.b16 %v2705
    %v3304 = vunpack.c.h.b16 %v2705
    %v3305 = vunpack.c.l.b16 %v2706
    %v3306 = vunpack.c.l.b16 %v2707
    %v3307 = vunpack.c.h.b16 %v2707
    %v3308 = vunpack.c.l.b16 %v2708
    %v3309 = vunpack.c.l.b16 %v2709
    %v3310 = vunpack.c.h.b16 %v2709
    %v3311 = vunpack.c.l.b16 %v2710
    %v3312 = vunpack.c.l.b16 %v2711
    %v3313 = vunpack.c.h.b16 %v2711
    %v3314 = vunpack.c.l.b16 %v2712
    %v3315 = vunpack.c.l.b16 %v2713
    %v3316 = vunpack.c.h.b16 %v2713
    %v3317 = vunpack.c.l.b16 %v2714
    %v3318 = vunpack.c.l.b16 %v2715
    %v3319 = vunpack.c.h.b16 %v2715
    %v3320 = vunpack.c.l.b16 %v2716
    %v3321 = vunpack.c.l.b16 %v2717
    %v3322 = vunpack.c.h.b16 %v2717
    %v3323 = vunpack.c.l.b16 %v2718
    %v3324 = vunpack.c.l.b16 %v2719
    %v3325 = vunpack.c.h.b16 %v2719
    %v3326 = vunpack.c.l.b16 %v2720
    %v3327 = vunpack.c.l.b16 %v2721
    %v3328 = vunpack.c.h.b16 %v2721
    %v3329 = vunpack.c.l.b16 %v2722
    %v3330 = vunpack.c.l.b16 %v2723
    %v3331 = vunpack.c.h.b16 %v2723
    %v3332 = vunpack.c.l.b16 %v2724
    %v3333 = vunpack.c.l.b16 %v2725
    %v3334 = vunpack.c.h.b16 %v2725
    %v3335 = vunpack.c.l.b16 %v2726
    %v3336 = vunpack.c.l.b16 %v2727
    %v3337 = vunpack.c.h.b16 %v2727
    %v3338 = vunpack.c.l.b16 %v2728
    %v3339 = vunpack.c.l.b16 %v2729
    %v3340 = vunpack.c.h.b16 %v2729
    %v3341 = vunpack.c.l.b16 %v2730
    %v3342 = vunpack.c.l.b16 %v2731
    %v3343 = vunpack.c.h.b16 %v2731
    %v3344 = vunpack.c.l.b16 %v2732
    %v3345 = vunpack.c.l.b16 %v2733
    %v3346 = vunpack.c.h.b16 %v2733
    %v3347 = vunpack.c.l.b16 %v2734
    %v3348 = vunpack.c.l.b16 %v2735
    %v3349 = vunpack.c.h.b16 %v2735
    %v3350 = vunpack.c.l.b16 %v2736
    %v3351 = vunpack.c.l.b16 %v2737
    %v3352 = vunpack.c.h.b16 %v2737
    %v3353 = vunpack.c.l.b16 %v2738
    %v3354 = vunpack.c.l.b16 %v2739
    %v3355 = vunpack.c.h.b16 %v2739
    %v3356 = vunpack.c.l.b16 %v2740
    %v3357 = vunpack.c.l.b16 %v2741
    %v3358 = vunpack.c.h.b16 %v2741
    %v3359 = vunpack.c.l.b16 %v2742
    %v3360 = vunpack.c.l.b16 %v2743
    %v3361 = vunpack.c.h.b16 %v2743
    %v3362 = vunpack.c.l.b16 %v2744
    %v3363 = vunpack.c.l.b16 %v2745
    %v3364 = vunpack.c.h.b16 %v2745
    %v3365 = vunpack.c.l.b16 %v2746
    %v3366 = vunpack.c.l.b16 %v2747
    %v3367 = vunpack.c.h.b16 %v2747
    %v3368 = vunpack.c.l.b16 %v2748
    %v3369 = vunpack.c.l.b16 %v2749
    %v3370 = vunpack.c.h.b16 %v2749
    %v3371 = vunpack.c.l.b16 %v2750
    %v3372 = vunpack.c.l.b16 %v2751
    %v3373 = vunpack.c.h.b16 %v2751
    %v3374 = vunpack.c.l.b16 %v2752
    %v3375 = vunpack.c.l.b16 %v2753
    %v3376 = vunpack.c.h.b16 %v2753
    %v3377 = vunpack.c.l.b16 %v2754
    %v3378 = vunpack.c.l.b16 %v2755
    %v3379 = vunpack.c.h.b16 %v2755
    %v3380 = vunpack.c.l.b16 %v2756
    %v3381 = vunpack.c.l.b16 %v2757
    %v3382 = vunpack.c.h.b16 %v2757
    %v3383 = vunpack.c.l.b16 %v2758
    %v3384 = vunpack.c.l.b16 %v2759
    %v3385 = vunpack.c.h.b16 %v2759
    %v3386 = vunpack.c.l.b16 %v2760
    %v3387 = vunpack.c.l.b16 %v2761
    %v3388 = vunpack.c.h.b16 %v2761
    %v3389 = vunpack.c.l.b16 %v2762
    %v3390 = vunpack.c.l.b16 %v2763
    %v3391 = vunpack.c.h.b16 %v2763
    %v3392 = vunpack.c.l.b16 %v2764
    %v3393 = vunpack.c.l.b16 %v2765
    %v3394 = vunpack.c.h.b16 %v2765
    %v3395 = vunpack.c.l.b16 %v2766
    %v3396 = vunpack.c.l.b16 %v2767
    %v3397 = vunpack.c.h.b16 %v2767
    %v3398 = vunpack.c.l.b16 %v2768
    %v3399 = vunpack.c.l.b16 %v2769
    %v3400 = vunpack.c.h.b16 %v2769
    %v3401 = vunpack.c.l.b16 %v2770
    %v3402 = vunpack.c.l.b16 %v2771
    %v3403 = vunpack.c.h.b16 %v2771
    %v3404 = vunpack.c.l.b16 %v2772
    %v3405 = vunpack.c.l.b16 %v2773
    %v3406 = vunpack.c.h.b16 %v2773
    %v3407 = vunpack.c.l.b16 %v2774
    %v3408 = vunpack.c.l.b16 %v2775
    %v3409 = vunpack.c.h.b16 %v2775
    %v3410 = vunpack.c.l.b16 %v2776
    %v3411 = vunpack.c.l.b16 %v2777
    %v3412 = vunpack.c.h.b16 %v2777
    %v3413 = vunpack.c.l.b16 %v2778
    %v3414 = vunpack.c.l.b16 %v2779
    %v3415 = vunpack.c.h.b16 %v2779
    %v3416 = vunpack.c.l.b16 %v2780
    %v3417 = vunpack.c.l.b16 %v2781
    %v3418 = vunpack.c.h.b16 %v2781
    %v3419 = vunpack.c.l.b16 %v2782
    %v3420 = vunpack.c.l.b16 %v2783
    %v3421 = vunpack.c.h.b16 %v2783
    %v3422 = vunpack.c.l.b16 %v2784
    %v3423 = vunpack.c.l.b16 %v2785
    %v3424 = vunpack.c.h.b16 %v2785
    %v3425 = vunpack.c.l.b16 %v2786
    %v3426 = vunpack.c.l.b16 %v2787
    %v3427 = vunpack.c.h.b16 %v2787
    %v3428 = vunpack.c.l.b16 %v2788
    %v3429 = vunpack.c.l.b16 %v2789
    %v3430 = vunpack.c.h.b16 %v2789
    %v3431 = vunpack.c.l.b16 %v2790
    %v3432 = vunpack.c.l.b16 %v2791
    %v3433 = vunpack.c.h.b16 %v2791
    %v3434 = vunpack.c.l.b16 %v2792
    %v3435 = vunpack.c.l.b16 %v2793
    %v3436 = vunpack.c.h.b16 %v2793
    %v3437 = vunpack.c.l.b16 %v2794
    %v3438 = vunpack.c.l.b16 %v2795
    %v3439 = vunpack.c.h.b16 %v2795
    %v3440 = vunpack.c.l.b16 %v2796
    %v3441 = vunpack.c.l.b16 %v2797
    %v3442 = vunpack.c.h.b16 %v2797
    %v3443 = vunpack.c.l.b16 %v2798
    %v3444 = vunpack.c.l.b16 %v2799
    %v3445 = vunpack.c.h.b16 %v2799
    %v3446 = vunpack.c.l.b16 %v2800
    %v3447 = vunpack.c.l.b16 %v2801
    %v3448 = vunpack.c.h.b16 %v2801
    %v3449 = vunpack.c.l.b16 %v2802
    %v3450 = vunpack.c.l.b16 %v2803
    %v3451 = vunpack.c.h.b16 %v2803
    %v3452 = vunpack.c.l.b16 %v2804
    %v3453 = vunpack.c.l.b16 %v2805
    %v3454 = vunpack.c.h.b16 %v2805
    %v3455 = vunpack.c.l.b16 %v2806
    %v3456 = vunpack.c.l.b16 %v2807
    %v3457 = vunpack.c.h.b16 %v2807
    %v3458 = vunpack.c.l.b16 %v2808
    %v3459 = vunpack.c.l.b16 %v2809
    %v3460 = vunpack.c.h.b16 %v2809
    %v3461 = vunpack.c.l.b16 %v2810
    %v3462 = vunpack.c.l.b16 %v2811
    %v3463 = vunpack.c.h.b16 %v2811
    %v3464 = vunpack.c.l.b16 %v2812
    %v3465 = vunpack.c.l.b16 %v2813
    %v3466 = vunpack.c.h.b16 %v2813
    %v3467 = vunpack.c.l.b16 %v2814
    %v3468 = vunpack.c.l.b16 %v2815
    %v3469 = vunpack.c.h.b16 %v2815
    %v3470 = vunpack.c.l.b16 %v2816
    %v3471 = vunpack.c.l.b16 %v2817
    %v3472 = vunpack.c.h.b16 %v2817
    %v3473 = vunpack.c.l.b16 %v2818
    %v3474 = vunpack.c.l.b16 %v2819
    %v3475 = vunpack.c.h.b16 %v2819
    %v3476 = vunpack.c.l.b16 %v2820
    %v3477 = vunpack.c.l.b16 %v2821
    %v3478 = vunpack.c.h.b16 %v2821
    %v3479 = vunpack.c.l.b16 %v2822
    %v3480 = vpack.c.b16 %v3099, %v3096
    %v3481 = vpack.c.b16 %v3100, %v3097
    %v3482 = vpack.c.b16 %v3101, %v3098
    %v3483 = vpack.c.b16 %v3105, %v3102
    %v3484 = vpack.c.b16 %v3106, %v3103
    %v3485 = vpack.c.b16 %v3107, %v3104
    %v3486 = vpack.c.b16 %v3111, %v3108
    %v3487 = vpack.c.b16 %v3112, %v3109
    %v3488 = vpack.c.b16 %v3113, %v3110
    %v3489 = vpack.c.b16 %v3117, %v3114
    %v3490 = vpack.c.b16 %v3118, %v3115
    %v3491 = vpack.c.b16 %v3119, %v3116
    %v3492 = vpack.c.b16 %v3123, %v3120
    %v3493 = vpack.c.b16 %v3124, %v3121
    %v3494 = vpack.c.b16 %v3125, %v3122
    %v3495 = vpack.c.b16 %v3129, %v3126
    %v3496 = vpack.c.b16 %v3130, %v3127
    %v3497 = vpack.c.b16 %v3131, %v3128
    %v3498 = vpack.c.b16 %v3135, %v3132
    %v3499 = vpack.c.b16 %v3136, %v3133
    %v3500 = vpack.c.b16 %v3137, %v3134
    %v3501 = vpack.c.b16 %v3141, %v3138
    %v3502 = vpack.c.b16 %v3142, %v3139
    %v3503 = vpack.c.b16 %v3143, %v3140
    %v3504 = vpack.c.b16 %v3147, %v3144
    %v3505 = vpack.c.b16 %v3148, %v3145
    %v3506 = vpack.c.b16 %v3149, %v3146
    %v3507 = vpack.c.b16 %v3153, %v3150
    %v3508 = vpack.c.b16 %v3154, %v3151
    %v3509 = vpack.c.b16 %v3155, %v3152
    %v3510 = vpack.c.b16 %v3159, %v3156
    %v3511 = vpack.c.b16 %v3160, %v3157
    %v3512 = vpack.c.b16 %v3161, %v3158
    %v3513 = vpack.c.b16 %v3165, %v3162
    %v3514 = vpack.c.b16 %v3166, %v3163
    %v3515 = vpack.c.b16 %v3167, %v3164
    %v3516 = vpack.c.b16 %v3171, %v3168
    %v3517 = vpack.c.b16 %v3172, %v3169
    %v3518 = vpack.c.b16 %v3173, %v3170
    %v3519 = vpack.c.b16 %v3177, %v3174
    %v3520 = vpack.c.b16 %v3178, %v3175
    %v3521 = vpack.c.b16 %v3179, %v3176
    %v3522 = vpack.c.b16 %v3183, %v3180
    %v3523 = vpack.c.b16 %v3184, %v3181
    %v3524 = vpack.c.b16 %v3185, %v3182
    %v3525 = vpack.c.b16 %v3189, %v3186
    %v3526 = vpack.c.b16 %v3190, %v3187
    %v3527 = vpack.c.b16 %v3191, %v3188
    %v3528 = vpack.c.b16 %v3195, %v3192
    %v3529 = vpack.c.b16 %v3196, %v3193
    %v3530 = vpack.c.b16 %v3197, %v3194
    %v3531 = vpack.c.b16 %v3201, %v3198
    %v3532 = vpack.c.b16 %v3202, %v3199
    %v3533 = vpack.c.b16 %v3203, %v3200
    %v3534 = vpack.c.b16 %v3207, %v3204
    %v3535 = vpack.c.b16 %v3208, %v3205
    %v3536 = vpack.c.b16 %v3209, %v3206
    %v3537 = vpack.c.b16 %v3213, %v3210
    %v3538 = vpack.c.b16 %v3214, %v3211
    %v3539 = vpack.c.b16 %v3215, %v3212
    %v3540 = vpack.c.b16 %v3219, %v3216
    %v3541 = vpack.c.b16 %v3220, %v3217
    %v3542 = vpack.c.b16 %v3221, %v3218
    %v3543 = vpack.c.b16 %v3225, %v3222
    %v3544 = vpack.c.b16 %v3226, %v3223
    %v3545 = vpack.c.b16 %v3227, %v3224
    %v3546 = vpack.c.b16 %v3231, %v3228
    %v3547 = vpack.c.b16 %v3232, %v3229
    %v3548 = vpack.c.b16 %v3233, %v3230
    %v3549 = vpack.c.b16 %v3237, %v3234
    %v3550 = vpack.c.b16 %v3238, %v3235
    %v3551 = vpack.c.b16 %v3239, %v3236
    %v3552 = vpack.c.b16 %v3243, %v3240
    %v3553 = vpack.c.b16 %v3244, %v3241
    %v3554 = vpack.c.b16 %v3245, %v3242
    %v3555 = vpack.c.b16 %v3249, %v3246
    %v3556 = vpack.c.b16 %v3250, %v3247
    %v3557 = vpack.c.b16 %v3251, %v3248
    %v3558 = vpack.c.b16 %v3255, %v3252
    %v3559 = vpack.c.b16 %v3256, %v3253
    %v3560 = vpack.c.b16 %v3257, %v3254
    %v3561 = vpack.c.b16 %v3261, %v3258
    %v3562 = vpack.c.b16 %v3262, %v3259
    %v3563 = vpack.c.b16 %v3263, %v3260
    %v3564 = vpack.c.b16 %v3267, %v3264
    %v3565 = vpack.c.b16 %v3268, %v3265
    %v3566 = vpack.c.b16 %v3269, %v3266
    %v3567 = vpack.c.b16 %v3273, %v3270
    %v3568 = vpack.c.b16 %v3274, %v3271
    %v3569 = vpack.c.b16 %v3275, %v3272
    %v3570 = vpack.c.b16 %v3279, %v3276
    %v3571 = vpack.c.b16 %v3280, %v3277
    %v3572 = vpack.c.b16 %v3281, %v3278
    %v3573 = vpack.c.b16 %v3285, %v3282
    %v3574 = vpack.c.b16 %v3286, %v3283
    %v3575 = vpack.c.b16 %v3287, %v3284
    %v3576 = vpack.c.b16 %v3291, %v3288
    %v3577 = vpack.c.b16 %v3292, %v3289
    %v3578 = vpack.c.b16 %v3293, %v3290
    %v3579 = vpack.c.b16 %v3297, %v3294
    %v3580 = vpack.c.b16 %v3298, %v3295
    %v3581 = vpack.c.b16 %v3299, %v3296
    %v3582 = vpack.c.b16 %v3303, %v3300
    %v3583 = vpack.c.b16 %v3304, %v3301
    %v3584 = vpack.c.b16 %v3305, %v3302
    %v3585 = vpack.c.b16 %v3309, %v3306
    %v3586 = vpack.c.b16 %v3310, %v3307
    %v3587 = vpack.c.b16 %v3311, %v3308
    %v3588 = vpack.c.b16 %v3315, %v3312
    %v3589 = vpack.c.b16 %v3316, %v3313
    %v3590 = vpack.c.b16 %v3317, %v3314
    %v3591 = vpack.c.b16 %v3321, %v3318
    %v3592 = vpack.c.b16 %v3322, %v3319
    %v3593 = vpack.c.b16 %v3323, %v3320
    %v3594 = vpack.c.b16 %v3327, %v3324
    %v3595 = vpack.c.b16 %v3328, %v3325
    %v3596 = vpack.c.b16 %v3329, %v3326
    %v3597 = vpack.c.b16 %v3333, %v3330
    %v3598 = vpack.c.b16 %v3334, %v3331
    %v3599 = vpack.c.b16 %v3335, %v3332
    %v3600 = vpack.c.b16 %v3339, %v3336
    %v3601 = vpack.c.b16 %v3340, %v3337
    %v3602 = vpack.c.b16 %v3341, %v3338
    %v3603 = vpack.c.b16 %v3345, %v3342
    %v3604 = vpack.c.b16 %v3346, %v3343
    %v3605 = vpack.c.b16 %v3347, %v3344
    %v3606 = vpack.c.b16 %v3351, %v3348
    %v3607 = vpack.c.b16 %v3352, %v3349
    %v3608 = vpack.c.b16 %v3353, %v3350
    %v3609 = vpack.c.b16 %v3357, %v3354
    %v3610 = vpack.c.b16 %v3358, %v3355
    %v3611 = vpack.c.b16 %v3359, %v3356
    %v3612 = vpack.c.b16 %v3363, %v3360
    %v3613 = vpack.c.b16 %v3364, %v3361
    %v3614 = vpack.c.b16 %v3365, %v3362
    %v3615 = vpack.c.b16 %v3369, %v3366
    %v3616 = vpack.c.b16 %v3370, %v3367
    %v3617 = vpack.c.b16 %v3371, %v3368
    %v3618 = vpack.c.b16 %v3375, %v3372
    %v3619 = vpack.c.b16 %v3376, %v3373
    %v3620 = vpack.c.b16 %v3377, %v3374
    %v3621 = vpack.c.b16 %v3381, %v3378
    %v3622 = vpack.c.b16 %v3382, %v3379
    %v3623 = vpack.c.b16 %v3383, %v3380
    %v3624 = vpack.c.b16 %v3387, %v3384
    %v3625 = vpack.c.b16 %v3388, %v3385
    %v3626 = vpack.c.b16 %v3389, %v3386
    %v3627 = vpack.c.b16 %v3393, %v3390
    %v3628 = vpack.c.b16 %v3394, %v3391
    %v3629 = vpack.c.b16 %v3395, %v3392
    %v3630 = vpack.c.b16 %v3399, %v3396
    %v3631 = vpack.c.b16 %v3400, %v3397
    %v3632 = vpack.c.b16 %v3401, %v3398
    %v3633 = vpack.c.b16 %v3405, %v3402
    %v3634 = vpack.c.b16 %v3406, %v3403
    %v3635 = vpack.c.b16 %v3407, %v3404
    %v3636 = vpack.c.b16 %v3411, %v3408
    %v3637 = vpack.c.b16 %v3412, %v3409
    %v3638 = vpack.c.b16 %v3413, %v3410
    %v3639 = vpack.c.b16 %v3417, %v3414
    %v3640 = vpack.c.b16 %v3418, %v3415
    %v3641 = vpack.c.b16 %v3419, %v3416
    %v3642 = vpack.c.b16 %v3423, %v3420
    %v3643 = vpack.c.b16 %v3424, %v3421
    %v3644 = vpack.c.b16 %v3425, %v3422
    %v3645 = vpack.c.b16 %v3429, %v3426
    %v3646 = vpack.c.b16 %v3430, %v3427
    %v3647 = vpack.c.b16 %v3431, %v3428
    %v3648 = vpack.c.b16 %v3435, %v3432
    %v3649 = vpack.c.b16 %v3436, %v3433
    %v3650 = vpack.c.b16 %v3437, %v3434
    %v3651 = vpack.c.b16 %v3441, %v3438
    %v3652 = vpack.c.b16 %v3442, %v3439
    %v3653 = vpack.c.b16 %v3443, %v3440
    %v3654 = vpack.c.b16 %v3447, %v3444
    %v3655 = vpack.c.b16 %v3448, %v3445
    %v3656 = vpack.c.b16 %v3449, %v3446
    %v3657 = vpack.c.b16 %v3453, %v3450
    %v3658 = vpack.c.b16 %v3454, %v3451
    %v3659 = vpack.c.b16 %v3455, %v3452
    %v3660 = vpack.c.b16 %v3459, %v3456
    %v3661 = vpack.c.b16 %v3460, %v3457
    %v3662 = vpack.c.b16 %v3461, %v3458
    %v3663 = vpack.c.b16 %v3465, %v3462
    %v3664 = vpack.c.b16 %v3466, %v3463
    %v3665 = vpack.c.b16 %v3467, %v3464
    %v3666 = vpack.c.b16 %v3471, %v3468
    %v3667 = vpack.c.b16 %v3472, %v3469
    %v3668 = vpack.c.b16 %v3473, %v3470
    %v3669 = vpack.c.b16 %v3477, %v3474
    %v3670 = vpack.c.b16 %v3478, %v3475
    %v3671 = vpack.c.b16 %v3479, %v3476
    %3864 = vmatprep.subr.bf16.mxu0 %v3502
    %3865 = vmatpush1.bf16.msra.mxu0 %v3501
    %3866 = vmatprep.subr.bf16.mxu0 %v3499
    %3867 = vmatpush1.bf16.msra.mxu0 %v3498
    %3868 = vmatprep.subr.bf16.mxu0 %v3496
    %3869 = vmatpush1.bf16.msra.mxu0 %v3495
    %3870 = vmatprep.subr.bf16.mxu0 %v3493
    %3871 = vmatpush1.bf16.msra.mxu0 %v3492
    %3872 = vmatprep.subr.bf16.mxu0 %v3490
    %3873 = vmatpush1.bf16.msra.mxu0 %v3489
    %3874 = vmatprep.subr.bf16.mxu0 %v3487
    %3875 = vmatpush1.bf16.msra.mxu0 %v3486
    %3876 = vmatprep.subr.bf16.mxu0 %v3484
    %3877 = vmatpush1.bf16.msra.mxu0 %v3483
    %3878 = vmatprep.subr.bf16.mxu0 %v3481
    %3879 = vmatpush1.bf16.msra.mxu0 %v3480
    %3880 = vmatprep.subr.bf16.mxu0 %v3526
    %3881 = vmatpush2.bf16.msra.mxu0 %v3525
    %3882 = vmatprep.subr.bf16.mxu0 %v3523
    %3883 = vmatpush2.bf16.msra.mxu0 %v3522
    %3884 = vmatprep.subr.bf16.mxu0 %v3520
    %3885 = vmatpush2.bf16.msra.mxu0 %v3519
    %3886 = vmatprep.subr.bf16.mxu0 %v3517
    %3887 = vmatpush2.bf16.msra.mxu0 %v3516
    %3888 = vmatprep.subr.bf16.mxu0 %v3514
    %3889 = vmatpush2.bf16.msra.mxu0 %v3513
    %3890 = vmatprep.subr.bf16.mxu0 %v3511
    %3891 = vmatpush2.bf16.msra.mxu0 %v3510
    %3892 = vmatprep.subr.bf16.mxu0 %v3508
    %3893 = vmatpush2.bf16.msra.mxu0 %v3507
    %3894 = vmatprep.subr.bf16.mxu0 %v3505
    %3895 = vmatpush2.bf16.msra.mxu0 %v3504
    %3896 = vmatprep.mubr.bf16.mxu0 %v2560
    %3897 = vmatmul.mubr.bf16.gmra.mxu0 %v2559
    %v3898 = vpop.f32.mrf.mxu0
    %v3899 = vadd.f32 %v2828, %v3898
    %v3900 = vpop.f32.mrf.mxu0
    %v3901 = vadd.f32 %v2832, %v3900
    %v3902 = vpop.f32.mrf.mxu0
    %v3903 = vadd.f32 %v2828, %v3902
    %v3904 = vpop.f32.mrf.mxu0
    %v3905 = vadd.f32 %v2832, %v3904
    %3906 = vdwg.mxu0
    %3907 = vmatprep.subr.bf16.mxu0 %v3550
    %3908 = vmatpush1.bf16.msra.mxu0 %v3549
    %3909 = vmatprep.subr.bf16.mxu0 %v3547
    %3910 = vmatpush1.bf16.msra.mxu0 %v3546
    %3911 = vmatprep.subr.bf16.mxu0 %v3544
    %3912 = vmatpush1.bf16.msra.mxu0 %v3543
    %3913 = vmatprep.subr.bf16.mxu0 %v3541
    %3914 = vmatpush1.bf16.msra.mxu0 %v3540
    %3915 = vmatprep.subr.bf16.mxu0 %v3538
    %3916 = vmatpush1.bf16.msra.mxu0 %v3537
    %3917 = vmatprep.subr.bf16.mxu0 %v3535
    %3918 = vmatpush1.bf16.msra.mxu0 %v3534
    %3919 = vmatprep.subr.bf16.mxu0 %v3532
    %3920 = vmatpush1.bf16.msra.mxu0 %v3531
    %3921 = vmatprep.subr.bf16.mxu0 %v3529
    %3922 = vmatpush1.bf16.msra.mxu0 %v3528
    %3923 = vmatprep.subr.bf16.mxu0 %v3574
    %3924 = vmatpush2.bf16.msra.mxu0 %v3573
    %3925 = vmatprep.subr.bf16.mxu0 %v3571
    %3926 = vmatpush2.bf16.msra.mxu0 %v3570
    %3927 = vmatprep.subr.bf16.mxu0 %v3568
    %3928 = vmatpush2.bf16.msra.mxu0 %v3567
    %3929 = vmatprep.subr.bf16.mxu0 %v3565
    %3930 = vmatpush2.bf16.msra.mxu0 %v3564
    %3931 = vmatprep.subr.bf16.mxu0 %v3562
    %3932 = vmatpush2.bf16.msra.mxu0 %v3561
    %3933 = vmatprep.subr.bf16.mxu0 %v3559
    %3934 = vmatpush2.bf16.msra.mxu0 %v3558
    %3935 = vmatprep.subr.bf16.mxu0 %v3556
    %3936 = vmatpush2.bf16.msra.mxu0 %v3555
    %3937 = vmatprep.subr.bf16.mxu0 %v3553
    %3938 = vmatpush2.bf16.msra.mxu0 %v3552
    %3939 = vmatprep.mubr.bf16.mxu0 %v2562
    %3940 = vmatmul.mubr.bf16.gmra.mxu0 %v2561
    %v3941 = vpop.f32.mrf.mxu0
    %v3942 = vadd.f32 %v3899, %v3941
    %v3943 = vpop.f32.mrf.mxu0
    %v3944 = vadd.f32 %v3901, %v3943
    %v3945 = vpop.f32.mrf.mxu0
    %v3946 = vadd.f32 %v3903, %v3945
    %v3947 = vpop.f32.mrf.mxu0
    %v3948 = vadd.f32 %v3905, %v3947
    %3949 = vdwg.mxu0
    %3950 = vmatprep.subr.bf16.mxu0 %v3598
    %3951 = vmatpush1.bf16.msra.mxu0 %v3597
    %3952 = vmatprep.subr.bf16.mxu0 %v3595
    %3953 = vmatpush1.bf16.msra.mxu0 %v3594
    %3954 = vmatprep.subr.bf16.mxu0 %v3592
    %3955 = vmatpush1.bf16.msra.mxu0 %v3591
    %3956 = vmatprep.subr.bf16.mxu0 %v3589
    %3957 = vmatpush1.bf16.msra.mxu0 %v3588
    %3958 = vmatprep.subr.bf16.mxu0 %v3586
    %3959 = vmatpush1.bf16.msra.mxu0 %v3585
    %3960 = vmatprep.subr.bf16.mxu0 %v3583
    %3961 = vmatpush1.bf16.msra.mxu0 %v3582
    %3962 = vmatprep.subr.bf16.mxu0 %v3580
    %3963 = vmatpush1.bf16.msra.mxu0 %v3579
    %3964 = vmatprep.subr.bf16.mxu0 %v3577
    %3965 = vmatpush1.bf16.msra.mxu0 %v3576
    %3966 = vmatprep.subr.bf16.mxu0 %v3622
    %3967 = vmatpush2.bf16.msra.mxu0 %v3621
    %3968 = vmatprep.subr.bf16.mxu0 %v3619
    %3969 = vmatpush2.bf16.msra.mxu0 %v3618
    %3970 = vmatprep.subr.bf16.mxu0 %v3616
    %3971 = vmatpush2.bf16.msra.mxu0 %v3615
    %3972 = vmatprep.subr.bf16.mxu0 %v3613
    %3973 = vmatpush2.bf16.msra.mxu0 %v3612
    %3974 = vmatprep.subr.bf16.mxu0 %v3610
    %3975 = vmatpush2.bf16.msra.mxu0 %v3609
    %3976 = vmatprep.subr.bf16.mxu0 %v3607
    %3977 = vmatpush2.bf16.msra.mxu0 %v3606
    %3978 = vmatprep.subr.bf16.mxu0 %v3604
    %3979 = vmatpush2.bf16.msra.mxu0 %v3603
    %3980 = vmatprep.subr.bf16.mxu0 %v3601
    %3981 = vmatpush2.bf16.msra.mxu0 %v3600
    %3982 = vmatprep.mubr.bf16.mxu0 %v2564
    %3983 = vmatmul.mubr.bf16.gmra.mxu0 %v2563
    %v3984 = vpop.f32.mrf.mxu0
    %v3985 = vadd.f32 %v3942, %v3984
    %v3986 = vpop.f32.mrf.mxu0
    %v3987 = vadd.f32 %v3944, %v3986
    %v3988 = vpop.f32.mrf.mxu0
    %v3989 = vadd.f32 %v3946, %v3988
    %v3990 = vpop.f32.mrf.mxu0
    %v3991 = vadd.f32 %v3948, %v3990
    %3992 = vdwg.mxu0
    %3993 = vmatprep.subr.bf16.mxu0 %v3646
    %3994 = vmatpush1.bf16.msra.mxu0 %v3645
    %3995 = vmatprep.subr.bf16.mxu0 %v3643
    %3996 = vmatpush1.bf16.msra.mxu0 %v3642
    %3997 = vmatprep.subr.bf16.mxu0 %v3640
    %3998 = vmatpush1.bf16.msra.mxu0 %v3639
    %3999 = vmatprep.subr.bf16.mxu0 %v3637
    %4000 = vmatpush1.bf16.msra.mxu0 %v3636
    %4001 = vmatprep.subr.bf16.mxu0 %v3634
    %4002 = vmatpush1.bf16.msra.mxu0 %v3633
    %4003 = vmatprep.subr.bf16.mxu0 %v3631
    %4004 = vmatpush1.bf16.msra.mxu0 %v3630
    %4005 = vmatprep.subr.bf16.mxu0 %v3628
    %4006 = vmatpush1.bf16.msra.mxu0 %v3627
    %4007 = vmatprep.subr.bf16.mxu0 %v3625
    %4008 = vmatpush1.bf16.msra.mxu0 %v3624
    %4009 = vmatprep.subr.bf16.mxu0 %v3670
    %4010 = vmatpush2.bf16.msra.mxu0 %v3669
    %4011 = vmatprep.subr.bf16.mxu0 %v3667
    %4012 = vmatpush2.bf16.msra.mxu0 %v3666
    %4013 = vmatprep.subr.bf16.mxu0 %v3664
    %4014 = vmatpush2.bf16.msra.mxu0 %v3663
    %4015 = vmatprep.subr.bf16.mxu0 %v3661
    %4016 = vmatpush2.bf16.msra.mxu0 %v3660
    %4017 = vmatprep.subr.bf16.mxu0 %v3658
    %4018 = vmatpush2.bf16.msra.mxu0 %v3657
    %4019 = vmatprep.subr.bf16.mxu0 %v3655
    %4020 = vmatpush2.bf16.msra.mxu0 %v3654
    %4021 = vmatprep.subr.bf16.mxu0 %v3652
    %4022 = vmatpush2.bf16.msra.mxu0 %v3651
    %4023 = vmatprep.subr.bf16.mxu0 %v3649
    %4024 = vmatpush2.bf16.msra.mxu0 %v3648
    %4025 = vmatprep.mubr.bf16.mxu0 %v2566
    %4026 = vmatmul.mubr.bf16.gmra.mxu0 %v2565
    %v4027 = vpop.f32.mrf.mxu0
    %v4028 = vadd.f32 %v3985, %v4027
    %v4029 = vpop.f32.mrf.mxu0
    %v4030 = vadd.f32 %v3987, %v4029
    %v4031 = vpop.f32.mrf.mxu0
    %v4032 = vadd.f32 %v3989, %v4031
    %v4033 = vpop.f32.mrf.mxu0
    %v4034 = vadd.f32 %v3991, %v4033
    %4035 = vdwg.mxu0
    %4036 = vmatprep.subr.bf16.mxu0 0
    %4037 = vmatpush1.bf16.msra.mxu0 %v3503
    %4038 = vmatprep.subr.bf16.mxu0 0
    %4039 = vmatpush1.bf16.msra.mxu0 %v3500
    %4040 = vmatprep.subr.bf16.mxu0 0
    %4041 = vmatpush1.bf16.msra.mxu0 %v3497
    %4042 = vmatprep.subr.bf16.mxu0 0
    %4043 = vmatpush1.bf16.msra.mxu0 %v3494
    %4044 = vmatprep.subr.bf16.mxu0 0
    %4045 = vmatpush1.bf16.msra.mxu0 %v3491
    %4046 = vmatprep.subr.bf16.mxu0 0
    %4047 = vmatpush1.bf16.msra.mxu0 %v3488
    %4048 = vmatprep.subr.bf16.mxu0 0
    %4049 = vmatpush1.bf16.msra.mxu0 %v3485
    %4050 = vmatprep.subr.bf16.mxu0 0
    %4051 = vmatpush1.bf16.msra.mxu0 %v3482
    %4052 = vmatprep.subr.bf16.mxu0 0
    %4053 = vmatpush2.bf16.msra.mxu0 %v3527
    %4054 = vmatprep.subr.bf16.mxu0 0
    %4055 = vmatpush2.bf16.msra.mxu0 %v3524
    %4056 = vmatprep.subr.bf16.mxu0 0
    %4057 = vmatpush2.bf16.msra.mxu0 %v3521
    %4058 = vmatprep.subr.bf16.mxu0 0
    %4059 = vmatpush2.bf16.msra.mxu0 %v3518
    %4060 = vmatprep.subr.bf16.mxu0 0
    %4061 = vmatpush2.bf16.msra.mxu0 %v3515
    %4062 = vmatprep.subr.bf16.mxu0 0
    %4063 = vmatpush2.bf16.msra.mxu0 %v3512
    %4064 = vmatprep.subr.bf16.mxu0 0
    %4065 = vmatpush2.bf16.msra.mxu0 %v3509
    %4066 = vmatprep.subr.bf16.mxu0 0
    %4067 = vmatpush2.bf16.msra.mxu0 %v3506
    %4068 = vmatprep.mubr.bf16.mxu0 %v2560
    %4069 = vmatmul.mubr.bf16.gmra.mxu0 %v2559
    %v4070 = vpop.f32.mrf.mxu0
    %v4071 = vadd.f32 %v2836, %v4070
    %v4072 = vpop.f32.mrf.mxu0
    %v4073 = vpop.f32.mrf.mxu0
    %v4074 = vadd.f32 %v2836, %v4073
    %v4075 = vpop.f32.mrf.mxu0
    %4076 = vdwg.mxu0
    %4077 = vmatprep.subr.bf16.mxu0 0
    %4078 = vmatpush1.bf16.msra.mxu0 %v3551
    %4079 = vmatprep.subr.bf16.mxu0 0
    %4080 = vmatpush1.bf16.msra.mxu0 %v3548
    %4081 = vmatprep.subr.bf16.mxu0 0
    %4082 = vmatpush1.bf16.msra.mxu0 %v3545
    %4083 = vmatprep.subr.bf16.mxu0 0
    %4084 = vmatpush1.bf16.msra.mxu0 %v3542
    %4085 = vmatprep.subr.bf16.mxu0 0
    %4086 = vmatpush1.bf16.msra.mxu0 %v3539
    %4087 = vmatprep.subr.bf16.mxu0 0
    %4088 = vmatpush1.bf16.msra.mxu0 %v3536
    %4089 = vmatprep.subr.bf16.mxu0 0
    %4090 = vmatpush1.bf16.msra.mxu0 %v3533
    %4091 = vmatprep.subr.bf16.mxu0 0
    %4092 = vmatpush1.bf16.msra.mxu0 %v3530
    %4093 = vmatprep.subr.bf16.mxu0 0
    %4094 = vmatpush2.bf16.msra.mxu0 %v3575
    %4095 = vmatprep.subr.bf16.mxu0 0
    %4096 = vmatpush2.bf16.msra.mxu0 %v3572
    %4097 = vmatprep.subr.bf16.mxu0 0
    %4098 = vmatpush2.bf16.msra.mxu0 %v3569
    %4099 = vmatprep.subr.bf16.mxu0 0
    %4100 = vmatpush2.bf16.msra.mxu0 %v3566
    %4101 = vmatprep.subr.bf16.mxu0 0
    %4102 = vmatpush2.bf16.msra.mxu0 %v3563
    %4103 = vmatprep.subr.bf16.mxu0 0
    %4104 = vmatpush2.bf16.msra.mxu0 %v3560
    %4105 = vmatprep.subr.bf16.mxu0 0
    %4106 = vmatpush2.bf16.msra.mxu0 %v3557
    %4107 = vmatprep.subr.bf16.mxu0 0
    %4108 = vmatpush2.bf16.msra.mxu0 %v3554
    %4109 = vmatprep.mubr.bf16.mxu0 %v2562
    %4110 = vmatmul.mubr.bf16.gmra.mxu0 %v2561
    %v4111 = vpop.f32.mrf.mxu0
    %v4112 = vadd.f32 %v4071, %v4111
    %v4113 = vpop.f32.mrf.mxu0
    %v4114 = vpop.f32.mrf.mxu0
    %v4115 = vadd.f32 %v4074, %v4114
    %v4116 = vpop.f32.mrf.mxu0
    %4117 = vdwg.mxu0
    %4118 = vmatprep.subr.bf16.mxu0 0
    %4119 = vmatpush1.bf16.msra.mxu0 %v3599
    %4120 = vmatprep.subr.bf16.mxu0 0
    %4121 = vmatpush1.bf16.msra.mxu0 %v3596
    %4122 = vmatprep.subr.bf16.mxu0 0
    %4123 = vmatpush1.bf16.msra.mxu0 %v3593
    %4124 = vmatprep.subr.bf16.mxu0 0
    %4125 = vmatpush1.bf16.msra.mxu0 %v3590
    %4126 = vmatprep.subr.bf16.mxu0 0
    %4127 = vmatpush1.bf16.msra.mxu0 %v3587
    %4128 = vmatprep.subr.bf16.mxu0 0
    %4129 = vmatpush1.bf16.msra.mxu0 %v3584
    %4130 = vmatprep.subr.bf16.mxu0 0
    %4131 = vmatpush1.bf16.msra.mxu0 %v3581
    %4132 = vmatprep.subr.bf16.mxu0 0
    %4133 = vmatpush1.bf16.msra.mxu0 %v3578
    %4134 = vmatprep.subr.bf16.mxu0 0
    %4135 = vmatpush2.bf16.msra.mxu0 %v3623
    %4136 = vmatprep.subr.bf16.mxu0 0
    %4137 = vmatpush2.bf16.msra.mxu0 %v3620
    %4138 = vmatprep.subr.bf16.mxu0 0
    %4139 = vmatpush2.bf16.msra.mxu0 %v3617
    %4140 = vmatprep.subr.bf16.mxu0 0
    %4141 = vmatpush2.bf16.msra.mxu0 %v3614
    %4142 = vmatprep.subr.bf16.mxu0 0
    %4143 = vmatpush2.bf16.msra.mxu0 %v3611
    %4144 = vmatprep.subr.bf16.mxu0 0
    %4145 = vmatpush2.bf16.msra.mxu0 %v3608
    %4146 = vmatprep.subr.bf16.mxu0 0
    %4147 = vmatpush2.bf16.msra.mxu0 %v3605
    %4148 = vmatprep.subr.bf16.mxu0 0
    %4149 = vmatpush2.bf16.msra.mxu0 %v3602
    %4150 = vmatprep.mubr.bf16.mxu0 %v2564
    %4151 = vmatmul.mubr.bf16.gmra.mxu0 %v2563
    %v4152 = vpop.f32.mrf.mxu0
    %v4153 = vadd.f32 %v4112, %v4152
    %v4154 = vpop.f32.mrf.mxu0
    %v4155 = vpop.f32.mrf.mxu0
    %v4156 = vadd.f32 %v4115, %v4155
    %v4157 = vpop.f32.mrf.mxu0
    %4158 = vdwg.mxu0
    %4159 = vmatprep.subr.bf16.mxu0 0
    %4160 = vmatpush1.bf16.msra.mxu0 %v3647
    %4161 = vmatprep.subr.bf16.mxu0 0
    %4162 = vmatpush1.bf16.msra.mxu0 %v3644
    %4163 = vmatprep.subr.bf16.mxu0 0
    %4164 = vmatpush1.bf16.msra.mxu0 %v3641
    %4165 = vmatprep.subr.bf16.mxu0 0
    %4166 = vmatpush1.bf16.msra.mxu0 %v3638
    %4167 = vmatprep.subr.bf16.mxu0 0
    %4168 = vmatpush1.bf16.msra.mxu0 %v3635
    %4169 = vmatprep.subr.bf16.mxu0 0
    %4170 = vmatpush1.bf16.msra.mxu0 %v3632
    %4171 = vmatprep.subr.bf16.mxu0 0
    %4172 = vmatpush1.bf16.msra.mxu0 %v3629
    %4173 = vmatprep.subr.bf16.mxu0 0
    %4174 = vmatpush1.bf16.msra.mxu0 %v3626
    %4175 = vmatprep.subr.bf16.mxu0 0
    %4176 = vmatpush2.bf16.msra.mxu0 %v3671
    %4177 = vmatprep.subr.bf16.mxu0 0
    %4178 = vmatpush2.bf16.msra.mxu0 %v3668
    %4179 = vmatprep.subr.bf16.mxu0 0
    %4180 = vmatpush2.bf16.msra.mxu0 %v3665
    %4181 = vmatprep.subr.bf16.mxu0 0
    %4182 = vmatpush2.bf16.msra.mxu0 %v3662
    %4183 = vmatprep.subr.bf16.mxu0 0
    %4184 = vmatpush2.bf16.msra.mxu0 %v3659
    %4185 = vmatprep.subr.bf16.mxu0 0
    %4186 = vmatpush2.bf16.msra.mxu0 %v3656
    %4187 = vmatprep.subr.bf16.mxu0 0
    %4188 = vmatpush2.bf16.msra.mxu0 %v3653
    %4189 = vmatprep.subr.bf16.mxu0 0
    %4190 = vmatpush2.bf16.msra.mxu0 %v3650
    %4191 = vmatprep.mubr.bf16.mxu0 %v2566
    %4192 = vmatmul.mubr.bf16.gmra.mxu0 %v2565
    %v4193 = vpop.f32.mrf.mxu0
    %v4194 = vadd.f32 %v4153, %v4193
    %v4195 = vpop.f32.mrf.mxu0
    %v4196 = vpop.f32.mrf.mxu0
    %v4197 = vadd.f32 %v4156, %v4196
    %v4198 = vpop.f32.mrf.mxu0
    %4199 = vdwg.mxu0
    %v4200 = vmax.f32 %v4028, 0.0
    %v4201 = vmax.f32 %v4030, 0.0
    %v4202 = vmax.f32 %v4194, 0.0
    %v4203 = vmax.f32 %v4032, 0.0
    %v4204 = vmax.f32 %v4034, 0.0
    %v4205 = vmax.f32 %v4197, 0.0
    %v4206 = vpack.c.bf16 %v4203, %v4200
    %v4207 = vpack.c.bf16 %v4204, %v4201
    %v4208 = vpack.c.bf16 %v4205, %v4202
    %v4209 = vld [vmem:[#allocation11] sm:$0xf]
    %v4210 = vld [vmem:[#allocation11 + $0x4] sm:$0xf]
    %v4211 = vld [vmem:[#allocation11 + $0x8] sm:$0xf]
    %v4212 = vld [vmem:[#allocation11 + $0xc] sm:$0xf]
    %v4213 = vld [vmem:[#allocation11 + $0x10] sm:$0xf]
    %v4214 = vld [vmem:[#allocation11 + $0x14] sm:$0xf]
    %v4215 = vld [vmem:[#allocation11 + $0x18] sm:$0xf]
    %v4216 = vld [vmem:[#allocation11 + $0x1c] sm:$0xf]
    %v4217 = vld [vmem:[#allocation11 + $0x20] sm:$0xf]
    %v4218 = vld [vmem:[#allocation11 + $0x24] sm:$0xf]
    %v4219 = vld [vmem:[#allocation11 + $0x28] sm:$0xf]
    %v4220 = vld [vmem:[#allocation11 + $0x2c] sm:$0xf]
    %v4221 = vld [vmem:[#allocation11 + $0x30] sm:$0xf]
    %v4222 = vld [vmem:[#allocation11 + $0x34] sm:$0xf]
    %v4223 = vld [vmem:[#allocation11 + $0x38] sm:$0xf]
    %v4224 = vld [vmem:[#allocation11 + $0x3c] sm:$0xf]
    %v4225 = vld [vmem:[#allocation11 + $0x40] sm:$0xf]
    %v4226 = vld [vmem:[#allocation11 + $0x44] sm:$0xf]
    %v4227 = vld [vmem:[#allocation11 + $0x48] sm:$0xf]
    %v4228 = vld [vmem:[#allocation11 + $0x4c] sm:$0xf]
    %v4229 = vld [vmem:[#allocation11 + $0x50] sm:$0xf]
    %v4230 = vld [vmem:[#allocation11 + $0x54] sm:$0xf]
    %v4231 = vld [vmem:[#allocation11 + $0x58] sm:$0xf]
    %v4232 = vld [vmem:[#allocation11 + $0x5c] sm:$0xf]
    %v4233 = vld [vmem:[#allocation11 + $0x60] sm:$0xf]
    %v4234 = vld [vmem:[#allocation11 + $0x64] sm:$0xf]
    %v4235 = vld [vmem:[#allocation11 + $0x68] sm:$0xf]
    %v4236 = vld [vmem:[#allocation11 + $0x6c] sm:$0xf]
    %v4237 = vld [vmem:[#allocation11 + $0x70] sm:$0xf]
    %v4238 = vld [vmem:[#allocation11 + $0x74] sm:$0xf]
    %v4239 = vld [vmem:[#allocation11 + $0x78] sm:$0xf]
    %v4240 = vld [vmem:[#allocation11 + $0x7c] sm:$0xf]
    %v4241 = vld [vmem:[#allocation11 + $0x80] sm:$0xf]
    %v4242 = vld [vmem:[#allocation11 + $0x84] sm:$0xf]
    %v4243 = vld [vmem:[#allocation11 + $0x88] sm:$0xf]
    %v4244 = vld [vmem:[#allocation11 + $0x8c] sm:$0xf]
    %v4245 = vld [vmem:[#allocation11 + $0x90] sm:$0xf]
    %v4246 = vld [vmem:[#allocation11 + $0x94] sm:$0xf]
    %v4247 = vld [vmem:[#allocation11 + $0x98] sm:$0xf]
    %v4248 = vld [vmem:[#allocation11 + $0x9c] sm:$0xf]
    %v4249 = vld [vmem:[#allocation11 + $0xa0] sm:$0xf]
    %v4250 = vld [vmem:[#allocation11 + $0xa4] sm:$0xf]
    %v4251 = vld [vmem:[#allocation11 + $0xa8] sm:$0xf]
    %v4252 = vld [vmem:[#allocation11 + $0xac] sm:$0xf]
    %v4253 = vld [vmem:[#allocation11 + $0xb0] sm:$0xf]
    %v4254 = vld [vmem:[#allocation11 + $0xb4] sm:$0xf]
    %v4255 = vld [vmem:[#allocation11 + $0xb8] sm:$0xf]
    %v4256 = vld [vmem:[#allocation11 + $0xbc] sm:$0xf]
    %v4257 = vld [vmem:[#allocation5 + $0xf] sm:$0x1]
    %v4259 = vlaneseq
    %v4260 = vshrl.u32 %v4259, 7
    %v4261 = vsub.s32 0, %v4260
    %v4262 = vrot.slane %v4257, %v4261
    %v4312 = vunpack.c.l.b16 %v4209
    %v4313 = vunpack.c.l.b16 %v4210
    %v4314 = vunpack.c.l.b16 %v4211
    %v4315 = vunpack.c.l.b16 %v4212
    %v4316 = vunpack.c.l.b16 %v4213
    %v4317 = vunpack.c.l.b16 %v4214
    %v4318 = vunpack.c.l.b16 %v4215
    %v4319 = vunpack.c.l.b16 %v4216
    %v4320 = vunpack.c.l.b16 %v4217
    %v4321 = vunpack.c.l.b16 %v4218
    %v4322 = vunpack.c.l.b16 %v4219
    %v4323 = vunpack.c.l.b16 %v4220
    %v4324 = vunpack.c.l.b16 %v4221
    %v4325 = vunpack.c.l.b16 %v4222
    %v4326 = vunpack.c.l.b16 %v4223
    %v4327 = vunpack.c.l.b16 %v4224
    %v4328 = vunpack.c.l.b16 %v4225
    %v4329 = vunpack.c.l.b16 %v4226
    %v4330 = vunpack.c.l.b16 %v4227
    %v4331 = vunpack.c.l.b16 %v4228
    %v4332 = vunpack.c.l.b16 %v4229
    %v4333 = vunpack.c.l.b16 %v4230
    %v4334 = vunpack.c.l.b16 %v4231
    %v4335 = vunpack.c.l.b16 %v4232
    %v4336 = vunpack.c.l.b16 %v4233
    %v4337 = vunpack.c.l.b16 %v4234
    %v4338 = vunpack.c.l.b16 %v4235
    %v4339 = vunpack.c.l.b16 %v4236
    %v4340 = vunpack.c.l.b16 %v4237
    %v4341 = vunpack.c.l.b16 %v4238
    %v4342 = vunpack.c.l.b16 %v4239
    %v4343 = vunpack.c.l.b16 %v4240
    %v4344 = vunpack.c.l.b16 %v4241
    %v4345 = vunpack.c.l.b16 %v4242
    %v4346 = vunpack.c.l.b16 %v4243
    %v4347 = vunpack.c.l.b16 %v4244
    %v4348 = vunpack.c.l.b16 %v4245
    %v4349 = vunpack.c.l.b16 %v4246
    %v4350 = vunpack.c.l.b16 %v4247
    %v4351 = vunpack.c.l.b16 %v4248
    %v4352 = vunpack.c.l.b16 %v4249
    %v4353 = vunpack.c.l.b16 %v4250
    %v4354 = vunpack.c.l.b16 %v4251
    %v4355 = vunpack.c.l.b16 %v4252
    %v4356 = vunpack.c.l.b16 %v4253
    %v4357 = vunpack.c.l.b16 %v4254
    %v4358 = vunpack.c.l.b16 %v4255
    %v4359 = vunpack.c.l.b16 %v4256
    %v4360 = vpack.c.b16 %v4313, %v4312
    %v4361 = vpack.c.b16 %v4315, %v4314
    %v4362 = vpack.c.b16 %v4317, %v4316
    %v4363 = vpack.c.b16 %v4319, %v4318
    %v4364 = vpack.c.b16 %v4321, %v4320
    %v4365 = vpack.c.b16 %v4323, %v4322
    %v4366 = vpack.c.b16 %v4325, %v4324
    %v4367 = vpack.c.b16 %v4327, %v4326
    %v4368 = vpack.c.b16 %v4329, %v4328
    %v4369 = vpack.c.b16 %v4331, %v4330
    %v4370 = vpack.c.b16 %v4333, %v4332
    %v4371 = vpack.c.b16 %v4335, %v4334
    %v4372 = vpack.c.b16 %v4337, %v4336
    %v4373 = vpack.c.b16 %v4339, %v4338
    %v4374 = vpack.c.b16 %v4341, %v4340
    %v4375 = vpack.c.b16 %v4343, %v4342
    %v4376 = vpack.c.b16 %v4345, %v4344
    %v4377 = vpack.c.b16 %v4347, %v4346
    %v4378 = vpack.c.b16 %v4349, %v4348
    %v4379 = vpack.c.b16 %v4351, %v4350
    %v4380 = vpack.c.b16 %v4353, %v4352
    %v4381 = vpack.c.b16 %v4355, %v4354
    %v4382 = vpack.c.b16 %v4357, %v4356
    %v4383 = vpack.c.b16 %v4359, %v4358
    %4408 = vmatprep.subr.bf16.mxu0 0
    %4409 = vmatpush1.bf16.msra.mxu0 %v4367
    %4410 = vmatprep.subr.bf16.mxu0 0
    %4411 = vmatpush1.bf16.msra.mxu0 %v4366
    %4412 = vmatprep.subr.bf16.mxu0 0
    %4413 = vmatpush1.bf16.msra.mxu0 %v4365
    %4414 = vmatprep.subr.bf16.mxu0 0
    %4415 = vmatpush1.bf16.msra.mxu0 %v4364
    %4416 = vmatprep.subr.bf16.mxu0 0
    %4417 = vmatpush1.bf16.msra.mxu0 %v4363
    %4418 = vmatprep.subr.bf16.mxu0 0
    %4419 = vmatpush1.bf16.msra.mxu0 %v4362
    %4420 = vmatprep.subr.bf16.mxu0 0
    %4421 = vmatpush1.bf16.msra.mxu0 %v4361
    %4422 = vmatprep.subr.bf16.mxu0 0
    %4423 = vmatpush1.bf16.msra.mxu0 %v4360
    %4424 = vmatprep.subr.bf16.mxu0 0
    %4425 = vmatpush2.bf16.msra.mxu0 %v4375
    %4426 = vmatprep.subr.bf16.mxu0 0
    %4427 = vmatpush2.bf16.msra.mxu0 %v4374
    %4428 = vmatprep.subr.bf16.mxu0 0
    %4429 = vmatpush2.bf16.msra.mxu0 %v4373
    %4430 = vmatprep.subr.bf16.mxu0 0
    %4431 = vmatpush2.bf16.msra.mxu0 %v4372
    %4432 = vmatprep.subr.bf16.mxu0 0
    %4433 = vmatpush2.bf16.msra.mxu0 %v4371
    %4434 = vmatprep.subr.bf16.mxu0 0
    %4435 = vmatpush2.bf16.msra.mxu0 %v4370
    %4436 = vmatprep.subr.bf16.mxu0 0
    %4437 = vmatpush2.bf16.msra.mxu0 %v4369
    %4438 = vmatprep.subr.bf16.mxu0 0
    %4439 = vmatpush2.bf16.msra.mxu0 %v4368
    %4440 = vmatprep.mubr.bf16.mxu0 %v4207
    %4441 = vmatmul.mubr.bf16.gmra.mxu0 %v4206
    %v4442 = vpop.f32.mrf.mxu0
    %v4443 = vadd.f32 %v4262, %v4442
    %v4444 = vpop.f32.mrf.mxu0
    %v4445 = vpop.f32.mrf.mxu0
    %v4446 = vadd.f32 %v4262, %v4445
    %v4447 = vpop.f32.mrf.mxu0
    %4448 = vdwg.mxu0
    %4449 = vmatprep.subr.bf16.mxu0 0
    %4450 = vmatpush1.bf16.msra.mxu0 %v4383
    %4451 = vmatprep.subr.bf16.mxu0 0
    %4452 = vmatpush1.bf16.msra.mxu0 %v4382
    %4453 = vmatprep.subr.bf16.mxu0 0
    %4454 = vmatpush1.bf16.msra.mxu0 %v4381
    %4455 = vmatprep.subr.bf16.mxu0 0
    %4456 = vmatpush1.bf16.msra.mxu0 %v4380
    %4457 = vmatprep.subr.bf16.mxu0 0
    %4458 = vmatpush1.bf16.msra.mxu0 %v4379
    %4459 = vmatprep.subr.bf16.mxu0 0
    %4460 = vmatpush1.bf16.msra.mxu0 %v4378
    %4461 = vmatprep.subr.bf16.mxu0 0
    %4462 = vmatpush1.bf16.msra.mxu0 %v4377
    %4463 = vmatprep.subr.bf16.mxu0 0
    %4464 = vmatpush1.bf16.msra.mxu0 %v4376
    %4465 = vmatprep.subr.bf16.mxu0 0
    %4466 = vmatpush2.bf16.msra.mxu0 0
    %4467 = vmatprep.subr.bf16.mxu0 0
    %4468 = vmatpush2.bf16.msra.mxu0 0
    %4469 = vmatprep.subr.bf16.mxu0 0
    %4470 = vmatpush2.bf16.msra.mxu0 0
    %4471 = vmatprep.subr.bf16.mxu0 0
    %4472 = vmatpush2.bf16.msra.mxu0 0
    %4473 = vmatprep.subr.bf16.mxu0 0
    %4474 = vmatpush2.bf16.msra.mxu0 0
    %4475 = vmatprep.subr.bf16.mxu0 0
    %4476 = vmatpush2.bf16.msra.mxu0 0
    %4477 = vmatprep.subr.bf16.mxu0 0
    %4478 = vmatpush2.bf16.msra.mxu0 0
    %4479 = vmatprep.subr.bf16.mxu0 0
    %4480 = vmatpush2.bf16.msra.mxu0 0
    %4481 = vmatprep.mubr.bf16.mxu0 0
    %4482 = vmatmul.mubr.bf16.gmra.mxu0 %v4208
    %v4483 = vpop.f32.mrf.mxu0
    %v4484 = vadd.f32 %v4443, %v4483
    %v4485 = vpop.f32.mrf.mxu0
    %v4486 = vpop.f32.mrf.mxu0
    %v4487 = vadd.f32 %v4446, %v4486
    %v4488 = vpop.f32.mrf.mxu0
    %4489 = vdwg.mxu0
    %v4490 = vmax.f32 %v4484, 0.0
    %v4491 = vmax.f32 %v4487, 0.0
    %v4492 = vpack.c.bf16 %v4491, %v4490
    %v4493 = vld [vmem:[#allocation11 + $0xc0] sm:$0xf]
    %v4494 = vld [vmem:[#allocation11 + $0xc4] sm:$0xf]
    %v4495 = vld [vmem:[#allocation11 + $0xc8] sm:$0xf]
    %v4496 = vld [vmem:[#allocation11 + $0xcc] sm:$0xf]
    %v4497 = vld [vmem:[#allocation11 + $0xd0] sm:$0xf]
    %v4498 = vld [vmem:[#allocation11 + $0xd4] sm:$0xf]
    %v4499 = vld [vmem:[#allocation11 + $0xd8] sm:$0xf]
    %v4500 = vld [vmem:[#allocation11 + $0xdc] sm:$0xf]
    %v4501 = vld [vmem:[#allocation11 + $0xe0] sm:$0xf]
    %v4502 = vld [vmem:[#allocation11 + $0xe4] sm:$0xf]
    %v4503 = vld [vmem:[#allocation11 + $0xe8] sm:$0xf]
    %v4504 = vld [vmem:[#allocation11 + $0xec] sm:$0xf]
    %v4505 = vld [vmem:[#allocation11 + $0xf0] sm:$0xf]
    %v4506 = vld [vmem:[#allocation11 + $0xf4] sm:$0xf]
    %v4507 = vld [vmem:[#allocation11 + $0xf8] sm:$0xf]
    %v4508 = vld [vmem:[#allocation11 + $0xfc] sm:$0xf]
    %v4509 = vld [vmem:[#allocation5 + $0x10] sm:$0x1]
    %v4511 = vlaneseq
    %v4512 = vshrl.u32 %v4511, 7
    %v4513 = vsub.s32 0, %v4512
    %v4514 = vrot.slane %v4509, %v4513
    %v4532 = vunpack.c.l.b16 %v4493
    %v4533 = vunpack.c.l.b16 %v4494
    %v4534 = vunpack.c.l.b16 %v4495
    %v4535 = vunpack.c.l.b16 %v4496
    %v4536 = vunpack.c.l.b16 %v4497
    %v4537 = vunpack.c.l.b16 %v4498
    %v4538 = vunpack.c.l.b16 %v4499
    %v4539 = vunpack.c.l.b16 %v4500
    %v4540 = vunpack.c.l.b16 %v4501
    %v4541 = vunpack.c.l.b16 %v4502
    %v4542 = vunpack.c.l.b16 %v4503
    %v4543 = vunpack.c.l.b16 %v4504
    %v4544 = vunpack.c.l.b16 %v4505
    %v4545 = vunpack.c.l.b16 %v4506
    %v4546 = vunpack.c.l.b16 %v4507
    %v4547 = vunpack.c.l.b16 %v4508
    %v4548 = vpack.c.b16 %v4533, %v4532
    %v4549 = vpack.c.b16 %v4535, %v4534
    %v4550 = vpack.c.b16 %v4537, %v4536
    %v4551 = vpack.c.b16 %v4539, %v4538
    %v4552 = vpack.c.b16 %v4541, %v4540
    %v4553 = vpack.c.b16 %v4543, %v4542
    %v4554 = vpack.c.b16 %v4545, %v4544
    %v4555 = vpack.c.b16 %v4547, %v4546
    %4564 = vmatprep.subr.bf16.mxu0 0
    %4565 = vmatpush1.bf16.msra.mxu0 %v4555
    %4566 = vmatprep.subr.bf16.mxu0 0
    %4567 = vmatpush1.bf16.msra.mxu0 %v4554
    %4568 = vmatprep.subr.bf16.mxu0 0
    %4569 = vmatpush1.bf16.msra.mxu0 %v4553
    %4570 = vmatprep.subr.bf16.mxu0 0
    %4571 = vmatpush1.bf16.msra.mxu0 %v4552
    %4572 = vmatprep.subr.bf16.mxu0 0
    %4573 = vmatpush1.bf16.msra.mxu0 %v4551
    %4574 = vmatprep.subr.bf16.mxu0 0
    %4575 = vmatpush1.bf16.msra.mxu0 %v4550
    %4576 = vmatprep.subr.bf16.mxu0 0
    %4577 = vmatpush1.bf16.msra.mxu0 %v4549
    %4578 = vmatprep.subr.bf16.mxu0 0
    %4579 = vmatpush1.bf16.msra.mxu0 %v4548
    %4580 = vmatprep.subr.bf16.mxu0 0
    %4581 = vmatpush2.bf16.msra.mxu0 0
    %4582 = vmatprep.subr.bf16.mxu0 0
    %4583 = vmatpush2.bf16.msra.mxu0 0
    %4584 = vmatprep.subr.bf16.mxu0 0
    %4585 = vmatpush2.bf16.msra.mxu0 0
    %4586 = vmatprep.subr.bf16.mxu0 0
    %4587 = vmatpush2.bf16.msra.mxu0 0
    %4588 = vmatprep.subr.bf16.mxu0 0
    %4589 = vmatpush2.bf16.msra.mxu0 0
    %4590 = vmatprep.subr.bf16.mxu0 0
    %4591 = vmatpush2.bf16.msra.mxu0 0
    %4592 = vmatprep.subr.bf16.mxu0 0
    %4593 = vmatpush2.bf16.msra.mxu0 0
    %4594 = vmatprep.subr.bf16.mxu0 0
    %4595 = vmatpush2.bf16.msra.mxu0 0
    %4596 = vmatprep.mubr.bf16.mxu0 0
    %4597 = vmatmul.mubr.bf16.gmra.mxu0 %v4492
    %v4598 = vpop.f32.mrf.mxu0
    %v4599 = vadd.f32 %v4514, %v4598
    %v4600 = vpop.f32.mrf.mxu0
    %v4601 = vpop.f32.mrf.mxu0
    %v4602 = vadd.f32 %v4514, %v4601
    %v4603 = vpop.f32.mrf.mxu0
    %4604 = vdwg.mxu0
    %4605 = vst [vmem:[#allocation13] sm:$0xff] %v4599
    %4606 = vst [vmem:[#allocation13 + $0x8] sm:$0xff] %v4602
    // Predicated region
    $region50: #{tpu_custom_call.1} parent=1 // pred_check
      _
    $region51: #{tpu_custom_call.1} parent=1 // pred_check_branch
      %4608 = sbr.rel (0) target = $region53
    $region52: #{tpu_custom_call.1} parent=1 // pred_region
      %s4610 = ssub.s32 256, 256
      %4611 = vsyncadd [#allocation4], %s4610
      %s4612 = sshll.u32 [#allocation13], 4
      %s4613 = int_to_ptr.vmem [resolvable:$true] %s4612
      %4618 = dma.vmem_to_hbm [thread:$0]  %s4613, 256, %s6, [#allocation4], 128, 128, 8
    $region53: #{tpu_custom_call.1} parent=1 // pred_fallthru
      _
    // Predicated region
    $region54: #{tpu_custom_call.1} parent=1 // pred_check
      _
    $region55: #{tpu_custom_call.1} parent=1 // pred_check_branch
      %4620 = sbr.rel (0) target = $region57
    $region56: #{tpu_custom_call.1} parent=1 // pred_region
      %4621 = dma.done [#allocation4], 256
    $region57: #{tpu_custom_call.1} parent=1 // pred_fallthru
      _
    %4622 = vsyncpa [#allocation3], 1
    %4623 = vsyncpa [#allocation6], 1
    %4624 = vsyncpa [#allocation9], 1
    %4625 = vsyncpa [#allocation12], 1
    %4626 = vsyncpa [#allocation4], 1

</llo_original>
